<compile_context>
chip_gen: v7x
topology: tpu7x:2x2x1
jax: 0.10.0
libtpu: 0.0.40
codegen_flags: <defaults>
</compile_context>

<pallas_src>
import functools

import jax
import jax.numpy as jnp
from jax.experimental import pallas as pl
from jax.experimental.pallas import tpu as pltpu


# ----------------------------- Pallas kernels ------------------------------ #

def _activate(x, act):
    if act == "relu":
        return jnp.maximum(x, 0.0)
    if act == "tanh":
        return jnp.tanh(x)
    return x


def _mm_act_kernel(x_ref, w_ref, o_ref, *, act):
    # x: (tm, Kp) bf16, w: (Kp, Np) bf16 -> f32 accumulate on the MXU.
    acc = jnp.dot(x_ref[...], w_ref[...], preferred_element_type=jnp.float32)
    o_ref[...] = _activate(acc, act).astype(o_ref.dtype)


def _mm_bias_act_kernel(x_ref, w_ref, b_ref, o_ref, *, act):
    acc = jnp.dot(x_ref[...], w_ref[...], preferred_element_type=jnp.float32)
    acc = acc + b_ref[...]                      # (1, Np) broadcasts over rows
    o_ref[...] = _activate(acc, act).astype(o_ref.dtype)


def _round_up(x, m):
    return ((x + m - 1) // m) * m


def phase_matmul_act(p_all, w_all, b, act, out_dtype):
    """Per-phase matmul with fused bias/activation.

    p_all: (P, M, Kd)   patch slabs (one per output phase)
    w_all: (P, Kd, Nd)  per-phase weight matrices
    b:     (Nd,) or None
    returns (P, M, Nd) in out_dtype
    """
    P, M, Kd = p_all.shape
    P2, Kd2, Nd = w_all.shape
    assert P == P2 and Kd == Kd2

    tm = min(_round_up(M, 16), 512)             # per-layer M tile
    Mp = _round_up(M, tm)
    Kp = _round_up(Kd, 128)
    Np = _round_up(Nd, 128)

    p_pad = jnp.pad(p_all.astype(jnp.bfloat16),
                    ((0, 0), (0, Mp - M), (0, Kp - Kd)))
    w_pad = jnp.pad(w_all.astype(jnp.bfloat16),
                    ((0, 0), (0, Kp - Kd), (0, Np - Nd)))

    in_specs = [
        pl.BlockSpec((None, tm, Kp), lambda ph, m: (ph, m, 0)),
        pl.BlockSpec((None, Kp, Np), lambda ph, m: (ph, 0, 0)),
    ]
    args = [p_pad, w_pad]
    if b is not None:
        b_pad = jnp.pad(b.astype(jnp.float32), (0, Np - Nd)).reshape(1, Np)
        in_specs.append(pl.BlockSpec((1, Np), lambda ph, m: (0, 0)))
        args.append(b_pad)
        kernel = functools.partial(_mm_bias_act_kernel, act=act)
    else:
        kernel = functools.partial(_mm_act_kernel, act=act)

    out = pl.pallas_call(
        kernel,
        out_shape=jax.ShapeDtypeStruct((P, Mp, Np), out_dtype),
        grid=(P, Mp // tm),
        in_specs=in_specs,
        out_specs=pl.BlockSpec((None, tm, Np), lambda ph, m: (ph, m, 0)),
        compiler_params=pltpu.CompilerParams(
            dimension_semantics=("parallel", "parallel")),
    )(*args)
    return out[:, :M, :Nd]


# --------------------- ConvTranspose2d (phase-decomposed) ------------------- #

def _phase_weights(w):
    # w: (Cin, Cout, 4, 4) torch ConvTranspose2d layout.
    # Output phase (r, c) of a k=4, s=2, p=1 transposed conv only touches kernel
    # taps kh = 3 - 2d - r, kw = 3 - 2e - c for d, e in {0, 1}.
    Cin, Cout, K, _ = w.shape
    assert K == 4
    phases = []
    for r in (0, 1):
        for c in (0, 1):
            taps = [w[:, :, 3 - 2 * d - r, 3 - 2 * e - c]
                    for d in (0, 1) for e in (0, 1)]
            phases.append(jnp.concatenate(taps, axis=0))       # (4*Cin, Cout)
    return jnp.stack(phases, axis=0)                           # (4, 4*Cin, Cout)


def conv_transpose2d_s2(x, w, b, act, out_dtype):
    """PyTorch ConvTranspose2d(k=4, s=2, p=1) on NHWC activations."""
    N, H, W, Cin = x.shape
    _, Cout, K, _ = w.shape
    xp = jnp.pad(x.astype(jnp.bfloat16), ((0, 0), (1, 1), (1, 1), (0, 0)))

    # TODO(synk): stream the 4 taps straight from the padded NHWC activation via
    # element-offset BlockSpecs instead of materializing the (4x) patch slabs.
    p_phases = []
    for r in (0, 1):
        for c in (0, 1):
            taps = [xp[:, r + d:r + d + H, c + e:c + e + W, :]
                    for d in (0, 1) for e in (0, 1)]
            p = jnp.concatenate(taps, axis=-1).reshape(N * H * W, 4 * Cin)
            p_phases.append(p)
    p_all = jnp.stack(p_phases, axis=0)                        # (4, N*H*W, 4*Cin)

    w_all = _phase_weights(w)                                  # (4, 4*Cin, Cout)
    out = phase_matmul_act(p_all, w_all, b, act, out_dtype)    # (4, N*H*W, Cout)

    # pixel-shuffle the 4 phases back into (N, 2H, 2W, Cout)
    out = out.reshape(2, 2, N, H, W, Cout)
    out = jnp.transpose(out, (2, 3, 0, 4, 1, 5)).reshape(N, 2 * H, 2 * W, Cout)
    return out


def conv_transpose2d_first(x, w, act, out_dtype):
    """PyTorch ConvTranspose2d(k=4, s=1, p=0) on a 1x1 spatial NHWC input."""
    N, H, W, Cin = x.shape
    assert H == 1 and W == 1
    _, Cout, K, _ = w.shape
    p = x.reshape(1, N, Cin)
    w_mat = jnp.transpose(w, (0, 2, 3, 1)).reshape(1, Cin, K * K * Cout)
    out = phase_matmul_act(p, w_mat, None, act, out_dtype)     # (1, N, K*K*Cout)
    return out.reshape(N, K, K, Cout)                          # NHWC


# ------------------------------- Generator ---------------------------------- #

def init_generator_params(key, channels_noise, channels_img, features_g):
    fg = features_g
    dims = [
        (channels_noise, fg * 16),   # 1x1  -> 4x4,   k=4 s=1 p=0, no bias, ReLU
        (fg * 16, fg * 8),           # 4x4  -> 8x8,   k=4 s=2 p=1, no bias, ReLU
        (fg * 8, fg * 4),            # 8x8  -> 16x16
        (fg * 4, fg * 2),            # 16x16-> 32x32
        (fg * 2, channels_img),      # 32x32-> 64x64, bias=True, Tanh
    ]
    weights = []
    for li, (cin, cout) in enumerate(dims):
        key, wk = jax.random.split(key)
        fan_in = cin if li == 0 else 4 * cin      # effective taps per output
        scale = (2.0 / fan_in) ** 0.5
        weights.append(scale * jax.random.normal(wk, (cin, cout, 4, 4), jnp.float32))
    key, bk = jax.random.split(key)
    b_last = 0.1 * jax.random.normal(bk, (channels_img,), jnp.float32)
    return weights, b_last


def generator_forward(x_nchw, weights, b_last):
    w1, w2, w3, w4, w5 = weights
    h = jnp.transpose(x_nchw, (0, 2, 3, 1))                    # NCHW -> NHWC once
    h = conv_transpose2d_first(h, w1, "relu", jnp.bfloat16)
    h = conv_transpose2d_s2(h, w2, None, "relu", jnp.bfloat16)
    h = conv_transpose2d_s2(h, w3, None, "relu", jnp.bfloat16)
    h = conv_transpose2d_s2(h, w4, None, "relu", jnp.bfloat16)
    h = conv_transpose2d_s2(h, w5, b_last, "tanh", jnp.float32)
    return jnp.transpose(h, (0, 3, 1, 2))                      # back to NCHW


# ------------------------- pure-JAX reference (f32) -------------------------- #

def _ref_conv_transpose(x, w, b, stride, padding, act):
    K = w.shape[-1]
    wf = jnp.transpose(w[:, :, ::-1, ::-1], (1, 0, 2, 3))      # (Cout, Cin, K, K)
    y = jax.lax.conv_general_dilated(
        x, wf, window_strides=(1, 1),
        padding=[(K - 1 - padding, K - 1 - padding)] * 2,
        lhs_dilation=(stride, stride),
        dimension_numbers=("NCHW", "OIHW", "NCHW"),
        precision=jax.lax.Precision.HIGHEST)
    if b is not None:
        y = y + b.reshape(1, -1, 1, 1)
    return jnp.maximum(y, 0.0) if act == "relu" else jnp.tanh(y)


def generator_reference(x, weights, b_last):
    w1, w2, w3, w4, w5 = weights
    h = _ref_conv_transpose(x, w1, None, 1, 0, "relu")
    h = _ref_conv_transpose(h, w2, None, 2, 1, "relu")
    h = _ref_conv_transpose(h, w3, None, 2, 1, "relu")
    h = _ref_conv_transpose(h, w4, None, 2, 1, "relu")
    h = _ref_conv_transpose(h, w5, b_last, 2, 1, "tanh")
    return h


if __name__ == "__main__":
    channels_noise, channels_img, features_g = 8, 3, 4
    batch = 2

    key = jax.random.PRNGKey(0)
    key, xk = jax.random.split(key)
    x = jax.random.normal(xk, (batch, channels_noise, 1, 1), jnp.float32)

    weights, b_last = init_generator_params(key, channels_noise, channels_img, features_g)

    fwd = jax.jit(generator_forward)
    out = jax.block_until_ready(fwd(x, weights, b_last))

    assert out.shape == (batch, channels_img, 64, 64), out.shape
    assert bool(jnp.all(jnp.isfinite(out)))
    assert bool(jnp.all(jnp.abs(out) <= 1.0 + 1e-6))           # tanh range

    ref = jax.block_until_ready(jax.jit(generator_reference)(x, weights, b_last))
    max_err = float(jnp.max(jnp.abs(out - ref)))
    assert max_err < 0.1, f"max |pallas - ref| = {max_err}"    # bf16-operand tolerance

    print("KERNEL_OK")
</pallas_src>

<mosaic_0001>
module attributes {stable_mosaic.version = 11 : i64} {
  func.func @_mm_act_kernel(%arg0: i32, %arg1: i32, %arg2: memref<1x16x128xbf16, #tpu.memory_space<vmem>>, %arg3: memref<1x128x1024xbf16, #tpu.memory_space<vmem>>, %arg4: memref<1x16x1024xbf16, #tpu.memory_space<vmem>>) attributes {dimension_semantics = [#tpu.dimension_semantics<parallel>, #tpu.dimension_semantics<parallel>], iteration_bounds = array<i64: 1, 1>, scalar_prefetch = 0 : i64, scratch_operands = 0 : i64, tpu.core_type = #tpu.core_type<tc>, window_params = [{transform_indices = @transform_0, window_bounds = array<i64: 1, 16, 128>}, {transform_indices = @transform_1, window_bounds = array<i64: 1, 128, 1024>}, {transform_indices = @transform_2, window_bounds = array<i64: 1, 16, 1024>}]} {
    %c0 = arith.constant 0 : index
    %c0_0 = arith.constant 0 : index
    %c0_1 = arith.constant 0 : index
    %0 = vector.load %arg2[%c0, %c0_0, %c0_1] : memref<1x16x128xbf16, #tpu.memory_space<vmem>>, vector<1x16x128xbf16>
    %1 = vector.shape_cast %0 : vector<1x16x128xbf16> to vector<16x128xbf16>
    %c0_2 = arith.constant 0 : index
    %c0_3 = arith.constant 0 : index
    %c0_4 = arith.constant 0 : index
    %2 = vector.load %arg3[%c0_2, %c0_3, %c0_4] : memref<1x128x1024xbf16, #tpu.memory_space<vmem>>, vector<1x128x1024xbf16>
    %3 = vector.shape_cast %2 : vector<1x128x1024xbf16> to vector<128x1024xbf16>
    %cst = arith.constant dense<0.000000e+00> : vector<16x1024xf32>
    %4 = tpu.matmul %1, %3, %cst {dimension_numbers = #tpu.dot_dimension_numbers<[1], [0], [0], [1], [0, 0, 1, 1], [], []>} : vector<16x128xbf16>, vector<128x1024xbf16>, vector<16x1024xf32> -> vector<16x1024xf32>
    %cst_5 = arith.constant 0.000000e+00 : f32
    %5 = vector.broadcast %cst_5 : f32 to vector<16x1024xf32>
    %6 = arith.maximumf %4, %5 : vector<16x1024xf32>
    %7 = arith.truncf %6 : vector<16x1024xf32> to vector<16x1024xbf16>
    %c0_6 = arith.constant 0 : index
    %c0_7 = arith.constant 0 : index
    %c0_8 = arith.constant 0 : index
    %8 = vector.load %arg4[%c0_6, %c0_7, %c0_8] : memref<1x16x1024xbf16, #tpu.memory_space<vmem>>, vector<1x16x1024xbf16>
    %9 = vector.shape_cast %8 : vector<1x16x1024xbf16> to vector<16x1024xbf16>
    %10 = vector.shape_cast %7 : vector<16x1024xbf16> to vector<1x16x1024xbf16>
    tpu.vector_store %arg4[%c0_6, %c0_7, %c0_8], %10 {strides = array<i32>} : memref<1x16x1024xbf16, #tpu.memory_space<vmem>>, vector<1x16x1024xbf16>,
    return
  }
  func.func @transform_0(%arg0: i32, %arg1: i32) -> (i32, i32, i32) {
    %c0_i32 = arith.constant 0 : i32
    %c0_i32_0 = arith.constant 0 : i32
    return %arg0, %arg1, %c0_i32 : i32, i32, i32
  }
  func.func @transform_1(%arg0: i32, %arg1: i32) -> (i32, i32, i32) {
    %c0_i32 = arith.constant 0 : i32
    %c0_i32_0 = arith.constant 0 : i32
    %c0_i32_1 = arith.constant 0 : i32
    return %arg0, %c0_i32, %c0_i32_0 : i32, i32, i32
  }
  func.func @transform_2(%arg0: i32, %arg1: i32) -> (i32, i32, i32) {
    %c0_i32 = arith.constant 0 : i32
    %c0_i32_0 = arith.constant 0 : i32
    return %arg0, %arg1, %c0_i32 : i32, i32, i32
  }
}

module attributes {stable_mosaic.version = 11 : i64} {
  func.func @_mm_act_kernel(%arg0: i32, %arg1: i32, %arg2: memref<1x32x256xbf16, #tpu.memory_space<vmem>>, %arg3: memref<1x256x128xbf16, #tpu.memory_space<vmem>>, %arg4: memref<1x32x128xbf16, #tpu.memory_space<vmem>>) attributes {dimension_semantics = [#tpu.dimension_semantics<parallel>, #tpu.dimension_semantics<parallel>], iteration_bounds = array<i64: 4, 1>, scalar_prefetch = 0 : i64, scratch_operands = 0 : i64, tpu.core_type = #tpu.core_type<tc>, window_params = [{transform_indices = @transform_0, window_bounds = array<i64: 1, 32, 256>}, {transform_indices = @transform_1, window_bounds = array<i64: 1, 256, 128>}, {transform_indices = @transform_2, window_bounds = array<i64: 1, 32, 128>}]} {
    %c0 = arith.constant 0 : index
    %c0_0 = arith.constant 0 : index
    %c0_1 = arith.constant 0 : index
    %0 = vector.load %arg2[%c0, %c0_0, %c0_1] : memref<1x32x256xbf16, #tpu.memory_space<vmem>>, vector<1x32x256xbf16>
    %1 = vector.shape_cast %0 : vector<1x32x256xbf16> to vector<32x256xbf16>
    %c0_2 = arith.constant 0 : index
    %c0_3 = arith.constant 0 : index
    %c0_4 = arith.constant 0 : index
    %2 = vector.load %arg3[%c0_2, %c0_3, %c0_4] : memref<1x256x128xbf16, #tpu.memory_space<vmem>>, vector<1x256x128xbf16>
    %3 = vector.shape_cast %2 : vector<1x256x128xbf16> to vector<256x128xbf16>
    %cst = arith.constant dense<0.000000e+00> : vector<32x128xf32>
    %4 = tpu.matmul %1, %3, %cst {dimension_numbers = #tpu.dot_dimension_numbers<[1], [0], [0], [1], [0, 0, 1, 1], [], []>} : vector<32x256xbf16>, vector<256x128xbf16>, vector<32x128xf32> -> vector<32x128xf32>
    %cst_5 = arith.constant 0.000000e+00 : f32
    %5 = vector.broadcast %cst_5 : f32 to vector<32x128xf32>
    %6 = arith.maximumf %4, %5 : vector<32x128xf32>
    %7 = arith.truncf %6 : vector<32x128xf32> to vector<32x128xbf16>
    %c0_6 = arith.constant 0 : index
    %c0_7 = arith.constant 0 : index
    %c0_8 = arith.constant 0 : index
    %8 = vector.load %arg4[%c0_6, %c0_7, %c0_8] : memref<1x32x128xbf16, #tpu.memory_space<vmem>>, vector<1x32x128xbf16>
    %9 = vector.shape_cast %8 : vector<1x32x128xbf16> to vector<32x128xbf16>
    %10 = vector.shape_cast %7 : vector<32x128xbf16> to vector<1x32x128xbf16>
    tpu.vector_store %arg4[%c0_6, %c0_7, %c0_8], %10 {strides = array<i32>} : memref<1x32x128xbf16, #tpu.memory_space<vmem>>, vector<1x32x128xbf16>,
    return
  }
  func.func @transform_0(%arg0: i32, %arg1: i32) -> (i32, i32, i32) {
    %c0_i32 = arith.constant 0 : i32
    %c0_i32_0 = arith.constant 0 : i32
    return %arg0, %arg1, %c0_i32 : i32, i32, i32
  }
  func.func @transform_1(%arg0: i32, %arg1: i32) -> (i32, i32, i32) {
    %c0_i32 = arith.constant 0 : i32
    %c0_i32_0 = arith.constant 0 : i32
    %c0_i32_1 = arith.constant 0 : i32
    return %arg0, %c0_i32, %c0_i32_0 : i32, i32, i32
  }
  func.func @transform_2(%arg0: i32, %arg1: i32) -> (i32, i32, i32) {
    %c0_i32 = arith.constant 0 : i32
    %c0_i32_0 = arith.constant 0 : i32
    return %arg0, %arg1, %c0_i32 : i32, i32, i32
  }
}

module attributes {stable_mosaic.version = 11 : i64} {
  func.func @_mm_act_kernel(%arg0: i32, %arg1: i32, %arg2: memref<1x128x128xbf16, #tpu.memory_space<vmem>>, %arg3: memref<1x128x128xbf16, #tpu.memory_space<vmem>>, %arg4: memref<1x128x128xbf16, #tpu.memory_space<vmem>>) attributes {dimension_semantics = [#tpu.dimension_semantics<parallel>, #tpu.dimension_semantics<parallel>], iteration_bounds = array<i64: 4, 1>, scalar_prefetch = 0 : i64, scratch_operands = 0 : i64, tpu.core_type = #tpu.core_type<tc>, window_params = [{transform_indices = @transform_0, window_bounds = array<i64: 1, 128, 128>}, {transform_indices = @transform_1, window_bounds = array<i64: 1, 128, 128>}, {transform_indices = @transform_2, window_bounds = array<i64: 1, 128, 128>}]} {
    %c0 = arith.constant 0 : index
    %c0_0 = arith.constant 0 : index
    %c0_1 = arith.constant 0 : index
    %0 = vector.load %arg2[%c0, %c0_0, %c0_1] : memref<1x128x128xbf16, #tpu.memory_space<vmem>>, vector<1x128x128xbf16>
    %1 = vector.shape_cast %0 : vector<1x128x128xbf16> to vector<128x128xbf16>
    %c0_2 = arith.constant 0 : index
    %c0_3 = arith.constant 0 : index
    %c0_4 = arith.constant 0 : index
    %2 = vector.load %arg3[%c0_2, %c0_3, %c0_4] : memref<1x128x128xbf16, #tpu.memory_space<vmem>>, vector<1x128x128xbf16>
    %3 = vector.shape_cast %2 : vector<1x128x128xbf16> to vector<128x128xbf16>
    %cst = arith.constant dense<0.000000e+00> : vector<128x128xf32>
    %4 = tpu.matmul %1, %3, %cst {dimension_numbers = #tpu.dot_dimension_numbers<[1], [0], [0], [1], [0, 0, 1, 1], [], []>} : vector<128x128xbf16>, vector<128x128xbf16>, vector<128x128xf32> -> vector<128x128xf32>
    %cst_5 = arith.constant 0.000000e+00 : f32
    %5 = vector.broadcast %cst_5 : f32 to vector<128x128xf32>
    %6 = arith.maximumf %4, %5 : vector<128x128xf32>
    %7 = arith.truncf %6 : vector<128x128xf32> to vector<128x128xbf16>
    %c0_6 = arith.constant 0 : index
    %c0_7 = arith.constant 0 : index
    %c0_8 = arith.constant 0 : index
    %8 = vector.load %arg4[%c0_6, %c0_7, %c0_8] : memref<1x128x128xbf16, #tpu.memory_space<vmem>>, vector<1x128x128xbf16>
    %9 = vector.shape_cast %8 : vector<1x128x128xbf16> to vector<128x128xbf16>
    %10 = vector.shape_cast %7 : vector<128x128xbf16> to vector<1x128x128xbf16>
    tpu.vector_store %arg4[%c0_6, %c0_7, %c0_8], %10 {strides = array<i32>} : memref<1x128x128xbf16, #tpu.memory_space<vmem>>, vector<1x128x128xbf16>,
    return
  }
  func.func @transform_0(%arg0: i32, %arg1: i32) -> (i32, i32, i32) {
    %c0_i32 = arith.constant 0 : i32
    %c0_i32_0 = arith.constant 0 : i32
    return %arg0, %arg1, %c0_i32 : i32, i32, i32
  }
  func.func @transform_1(%arg0: i32, %arg1: i32) -> (i32, i32, i32) {
    %c0_i32 = arith.constant 0 : i32
    %c0_i32_0 = arith.constant 0 : i32
    %c0_i32_1 = arith.constant 0 : i32
    return %arg0, %c0_i32, %c0_i32_0 : i32, i32, i32
  }
  func.func @transform_2(%arg0: i32, %arg1: i32) -> (i32, i32, i32) {
    %c0_i32 = arith.constant 0 : i32
    %c0_i32_0 = arith.constant 0 : i32
    return %arg0, %arg1, %c0_i32 : i32, i32, i32
  }
}

module attributes {stable_mosaic.version = 11 : i64} {
  func.func @_mm_act_kernel(%arg0: i32, %arg1: i32, %arg2: memref<1x512x128xbf16, #tpu.memory_space<vmem>>, %arg3: memref<1x128x128xbf16, #tpu.memory_space<vmem>>, %arg4: memref<1x512x128xbf16, #tpu.memory_space<vmem>>) attributes {dimension_semantics = [#tpu.dimension_semantics<parallel>, #tpu.dimension_semantics<parallel>], iteration_bounds = array<i64: 4, 1>, scalar_prefetch = 0 : i64, scratch_operands = 0 : i64, tpu.core_type = #tpu.core_type<tc>, window_params = [{transform_indices = @transform_0, window_bounds = array<i64: 1, 512, 128>}, {transform_indices = @transform_1, window_bounds = array<i64: 1, 128, 128>}, {transform_indices = @transform_2, window_bounds = array<i64: 1, 512, 128>}]} {
    %c0 = arith.constant 0 : index
    %c0_0 = arith.constant 0 : index
    %c0_1 = arith.constant 0 : index
    %0 = vector.load %arg2[%c0, %c0_0, %c0_1] : memref<1x512x128xbf16, #tpu.memory_space<vmem>>, vector<1x512x128xbf16>
    %1 = vector.shape_cast %0 : vector<1x512x128xbf16> to vector<512x128xbf16>
    %c0_2 = arith.constant 0 : index
    %c0_3 = arith.constant 0 : index
    %c0_4 = arith.constant 0 : index
    %2 = vector.load %arg3[%c0_2, %c0_3, %c0_4] : memref<1x128x128xbf16, #tpu.memory_space<vmem>>, vector<1x128x128xbf16>
    %3 = vector.shape_cast %2 : vector<1x128x128xbf16> to vector<128x128xbf16>
    %cst = arith.constant dense<0.000000e+00> : vector<512x128xf32>
    %4 = tpu.matmul %1, %3, %cst {dimension_numbers = #tpu.dot_dimension_numbers<[1], [0], [0], [1], [0, 0, 1, 1], [], []>} : vector<512x128xbf16>, vector<128x128xbf16>, vector<512x128xf32> -> vector<512x128xf32>
    %cst_5 = arith.constant 0.000000e+00 : f32
    %5 = vector.broadcast %cst_5 : f32 to vector<512x128xf32>
    %6 = arith.maximumf %4, %5 : vector<512x128xf32>
    %7 = arith.truncf %6 : vector<512x128xf32> to vector<512x128xbf16>
    %c0_6 = arith.constant 0 : index
    %c0_7 = arith.constant 0 : index
    %c0_8 = arith.constant 0 : index
    %8 = vector.load %arg4[%c0_6, %c0_7, %c0_8] : memref<1x512x128xbf16, #tpu.memory_space<vmem>>, vector<1x512x128xbf16>
    %9 = vector.shape_cast %8 : vector<1x512x128xbf16> to vector<512x128xbf16>
    %10 = vector.shape_cast %7 : vector<512x128xbf16> to vector<1x512x128xbf16>
    tpu.vector_store %arg4[%c0_6, %c0_7, %c0_8], %10 {strides = array<i32>} : memref<1x512x128xbf16, #tpu.memory_space<vmem>>, vector<1x512x128xbf16>,
    return
  }
  func.func @transform_0(%arg0: i32, %arg1: i32) -> (i32, i32, i32) {
    %c0_i32 = arith.constant 0 : i32
    %c0_i32_0 = arith.constant 0 : i32
    return %arg0, %arg1, %c0_i32 : i32, i32, i32
  }
  func.func @transform_1(%arg0: i32, %arg1: i32) -> (i32, i32, i32) {
    %c0_i32 = arith.constant 0 : i32
    %c0_i32_0 = arith.constant 0 : i32
    %c0_i32_1 = arith.constant 0 : i32
    return %arg0, %c0_i32, %c0_i32_0 : i32, i32, i32
  }
  func.func @transform_2(%arg0: i32, %arg1: i32) -> (i32, i32, i32) {
    %c0_i32 = arith.constant 0 : i32
    %c0_i32_0 = arith.constant 0 : i32
    return %arg0, %arg1, %c0_i32 : i32, i32, i32
  }
}

module attributes {stable_mosaic.version = 11 : i64} {
  func.func @_mm_bias_act_kernel(%arg0: i32, %arg1: i32, %arg2: memref<1x512x128xbf16, #tpu.memory_space<vmem>>, %arg3: memref<1x128x128xbf16, #tpu.memory_space<vmem>>, %arg4: memref<1x128xf32, #tpu.memory_space<vmem>>, %arg5: memref<1x512x128xf32, #tpu.memory_space<vmem>>) attributes {dimension_semantics = [#tpu.dimension_semantics<parallel>, #tpu.dimension_semantics<parallel>], iteration_bounds = array<i64: 4, 4>, scalar_prefetch = 0 : i64, scratch_operands = 0 : i64, tpu.core_type = #tpu.core_type<tc>, window_params = [{transform_indices = @transform_0, window_bounds = array<i64: 1, 512, 128>}, {transform_indices = @transform_1, window_bounds = array<i64: 1, 128, 128>}, {pipeline_mode = #tpu.pipeline_mode<synchronous>, transform_indices = @transform_2, window_bounds = array<i64: 1, 128>}, {transform_indices = @transform_3, window_bounds = array<i64: 1, 512, 128>}]} {
    %c0 = arith.constant 0 : index
    %c0_0 = arith.constant 0 : index
    %c0_1 = arith.constant 0 : index
    %0 = vector.load %arg2[%c0, %c0_0, %c0_1] : memref<1x512x128xbf16, #tpu.memory_space<vmem>>, vector<1x512x128xbf16>
    %1 = vector.shape_cast %0 : vector<1x512x128xbf16> to vector<512x128xbf16>
    %c0_2 = arith.constant 0 : index
    %c0_3 = arith.constant 0 : index
    %c0_4 = arith.constant 0 : index
    %2 = vector.load %arg3[%c0_2, %c0_3, %c0_4] : memref<1x128x128xbf16, #tpu.memory_space<vmem>>, vector<1x128x128xbf16>
    %3 = vector.shape_cast %2 : vector<1x128x128xbf16> to vector<128x128xbf16>
    %cst = arith.constant dense<0.000000e+00> : vector<512x128xf32>
    %4 = tpu.matmul %1, %3, %cst {dimension_numbers = #tpu.dot_dimension_numbers<[1], [0], [0], [1], [0, 0, 1, 1], [], []>} : vector<512x128xbf16>, vector<128x128xbf16>, vector<512x128xf32> -> vector<512x128xf32>
    %c0_5 = arith.constant 0 : index
    %c0_6 = arith.constant 0 : index
    %5 = vector.load %arg4[%c0_5, %c0_6] : memref<1x128xf32, #tpu.memory_space<vmem>>, vector<1x128xf32>
    %6 = vector.broadcast %5 : vector<1x128xf32> to vector<512x128xf32>
    %7 = arith.addf %4, %6 : vector<512x128xf32>
    %8 = math.tanh %7 : vector<512x128xf32>
    %c0_7 = arith.constant 0 : index
    %c0_8 = arith.constant 0 : index
    %c0_9 = arith.constant 0 : index
    %9 = vector.load %arg5[%c0_7, %c0_8, %c0_9] : memref<1x512x128xf32, #tpu.memory_space<vmem>>, vector<1x512x128xf32>
    %10 = vector.shape_cast %9 : vector<1x512x128xf32> to vector<512x128xf32>
    %11 = vector.shape_cast %8 : vector<512x128xf32> to vector<1x512x128xf32>
    tpu.vector_store %arg5[%c0_7, %c0_8, %c0_9], %11 {strides = array<i32>} : memref<1x512x128xf32, #tpu.memory_space<vmem>>, vector<1x512x128xf32>,
    return
  }
  func.func @transform_0(%arg0: i32, %arg1: i32) -> (i32, i32, i32) {
    %c0_i32 = arith.constant 0 : i32
    %c0_i32_0 = arith.constant 0 : i32
    return %arg0, %arg1, %c0_i32 : i32, i32, i32
  }
  func.func @transform_1(%arg0: i32, %arg1: i32) -> (i32, i32, i32) {
    %c0_i32 = arith.constant 0 : i32
    %c0_i32_0 = arith.constant 0 : i32
    %c0_i32_1 = arith.constant 0 : i32
    return %arg0, %c0_i32, %c0_i32_0 : i32, i32, i32
  }
  func.func @transform_2(%arg0: i32, %arg1: i32) -> (i32, i32) {
    %c0_i32 = arith.constant 0 : i32
    %c0_i32_0 = arith.constant 0 : i32
    %c0_i32_1 = arith.constant 0 : i32
    return %c0_i32, %c0_i32_0 : i32, i32
  }
  func.func @transform_3(%arg0: i32, %arg1: i32) -> (i32, i32, i32) {
    %c0_i32 = arith.constant 0 : i32
    %c0_i32_0 = arith.constant 0 : i32
    return %arg0, %arg1, %c0_i32 : i32, i32, i32
  }
}

</mosaic_0001>

<llo_original>
// kernel: generator_forward.6
$region0: #{generator_forward.6}
  #allocation0 [shape = 'u32[]', space=smem, size = 0x4, offset = 0x4, fixed_abs, tag = 'smem constant byte address 0x4 - core index']
  #allocation1 [shape = 'u32[144,128]{1,0:T(1,128)}', space=vmem, size = 0x12000, scoped, tag = 'internal scratch']
  %s0 = inlined_call_operand.vmem [shape: bf16[4,32,256], index: 0, kind: input, shape index: {}]
  %s1 = inlined_call_operand.vmem [shape: bf16[4,256,128], index: 1, kind: input, shape index: {}]
  %s2 = inlined_call_operand.vmem [shape: bf16[4,32,128], index: 2, kind: output, shape index: {}]
  %s3 = sld [smem:[#allocation0]]
  $region41: #{generator_forward.6} parent=0
    _
  %s5 = ssub.s32 1, %s3
  %s6 = scalar_select 0, %s5, %s3
  loop: start=0, step=1, limit=6
  $region2: #{generator_forward.6} parent=0 // loop_pre_header
    _
  $region3: #{generator_forward.6} parent=0 // loop_header
    %s8 = sphi 0, %s12
    %p9 = scmp.ge.s32.totalorder %s8, 6
    %s15 = sphi 0, %s27
    %s16 = sphi 0, %s23
    %s17 = sphi 0, %s15
    %s18 = sphi 0, %s16
    %s19 = sphi 0, %s17
    %s20 = sphi 0, %s18
    %s32 = sphi 0, %s34
    %s35 = sphi 0, %s32
    %s36 = sphi 0, %s35
    %s52 = sphi 0, %s36
    %s58 = sphi 0, %s60
    %s61 = sphi 0, %s58
    %s62 = sphi 0, %s61
    %s78 = sphi 0, %s62
    %s86 = sphi 0, %s88
    %s89 = sphi 0, %s86
    %s90 = sphi 0, %s89
    %s106 = sphi 0, %s90
  $region4: #{generator_forward.6} parent=0 // loop_header_branch
    %11 = sbr.rel (%p9) target = $region8
  $region5: #{generator_forward.6} parent=0 // loop_body
    %s13 = ssub.s32 %s8, 1
    %s14 = ssub.s32 %s8, 2
    %s21 = sadd.s32 1, %s16
    %p22 = scmp.ge.s32.totalorder %s21, 1
    %s23 = scalar_select %p22, 0, %s21
    %s24 = sadd.s32 1, %s15
    %s25 = scalar_select %p22, %s24, %s15
    %p26 = scmp.ge.s32.totalorder %s25, 4
    %s27 = scalar_select %p26, 0, %s25
    %s28 = ssub.s32 %s15, %s27
    %s29 = ssub.s32 %s16, %s23
    %s30 = sor.u32 %s28, %s29
    %p31 = scmp.eq.s32.totalorder %s30, 0
    %s33 = sadd.s32 %s32, 1
    %s34 = scalar_select %p31, %s32, %s33
    %p37 = pneg %p31
    %p38 = scmp.eq.s32.totalorder %s8, 3
    %p39 = por %p37, %p38
    %p40 = scmp.ne.s32.totalorder %s32, %s35
    %p41 = scmp.eq.s32.totalorder %s8, 0
    %p42 = por %p40, %p41
    %p43 = scmp.ne.s32.totalorder %s32, %s35
    %p44 = scmp.eq.s32.totalorder %s13, 3
    %p45 = por %p43, %p44
    %p46 = scmp.ne.s32.totalorder %s35, %s36
    %p47 = scmp.eq.s32.totalorder %s13, 0
    %p48 = por %p46, %p47
    %p49 = scmp.ne.s32.totalorder %s35, %s36
    %p50 = scmp.eq.s32.totalorder %s14, 3
    %p51 = por %p49, %p50
    %p53 = scmp.ne.s32.totalorder %s36, %s52
    %p54 = scmp.eq.s32.totalorder %s14, 0
    %p55 = por %p53, %p54
    %s56 = ssub.s32 %s15, %s27
    %p57 = scmp.eq.s32.totalorder %s56, 0
    %s59 = sadd.s32 %s58, 1
    %s60 = scalar_select %p57, %s58, %s59
    %p63 = pneg %p57
    %p64 = scmp.eq.s32.totalorder %s8, 3
    %p65 = por %p63, %p64
    %p66 = scmp.ne.s32.totalorder %s58, %s61
    %p67 = scmp.eq.s32.totalorder %s8, 0
    %p68 = por %p66, %p67
    %p69 = scmp.ne.s32.totalorder %s58, %s61
    %p70 = scmp.eq.s32.totalorder %s13, 3
    %p71 = por %p69, %p70
    %p72 = scmp.ne.s32.totalorder %s61, %s62
    %p73 = scmp.eq.s32.totalorder %s13, 0
    %p74 = por %p72, %p73
    %p75 = scmp.ne.s32.totalorder %s61, %s62
    %p76 = scmp.eq.s32.totalorder %s14, 3
    %p77 = por %p75, %p76
    %p79 = scmp.ne.s32.totalorder %s62, %s78
    %p80 = scmp.eq.s32.totalorder %s14, 0
    %p81 = por %p79, %p80
    %s82 = ssub.s32 %s15, %s27
    %s83 = ssub.s32 %s16, %s23
    %s84 = sor.u32 %s82, %s83
    %p85 = scmp.eq.s32.totalorder %s84, 0
    %s87 = sadd.s32 %s86, 1
    %s88 = scalar_select %p85, %s86, %s87
    %p91 = pneg %p85
    %p92 = scmp.eq.s32.totalorder %s8, 3
    %p93 = por %p91, %p92
    %p94 = scmp.ne.s32.totalorder %s86, %s89
    %p95 = scmp.eq.s32.totalorder %s8, 0
    %p96 = por %p94, %p95
    %p97 = scmp.ne.s32.totalorder %s86, %s89
    %p98 = scmp.eq.s32.totalorder %s13, 3
    %p99 = por %p97, %p98
    %p100 = scmp.ne.s32.totalorder %s89, %s90
    %p101 = scmp.eq.s32.totalorder %s13, 0
    %p102 = por %p100, %p101
    %p103 = scmp.ne.s32.totalorder %s89, %s90
    %p104 = scmp.eq.s32.totalorder %s14, 3
    %p105 = por %p103, %p104
    %p107 = scmp.ne.s32.totalorder %s90, %s106
    %p108 = scmp.eq.s32.totalorder %s14, 0
    %p109 = por %p107, %p108
    %p110 = scmp.le.s32.totalorder 1, %s8
    %p111 = scmp.lt.s32.totalorder %s8, 5
    %p112 = pnand %p110, %p111
    %p113 = pneg %p112
    // Predicated region
    $region9: #{generator_forward.6} parent=5 // pred_check
      _
    $region10: #{generator_forward.6} parent=5 // pred_check_branch
      %115 = sbr.rel (%p112) target = $region12
    $region11: #{generator_forward.6} parent=5 // pred_region
      %s116 = ssub.s32 %s8, 1
    $region12: #{generator_forward.6} parent=5 // pred_fallthru
      _
    %p117 = scmp.lt.s32.totalorder %s8, 4
    // Predicated region
    $region13: #{generator_forward.6} parent=5 // pred_check
      %p118 = pneg %p117
    $region14: #{generator_forward.6} parent=5 // pred_check_branch
      %120 = sbr.rel (%p118) target = $region16
    $region15: #{generator_forward.6} parent=5 // pred_region
      // Predicated region
      $region17: #{generator_forward.6} parent=15 // pred_check
        %p121 = pneg %p42
      $region18: #{generator_forward.6} parent=15 // pred_check_branch
        %123 = sbr.rel (%p121) target = $region20
      $region19: #{generator_forward.6} parent=15 // pred_region
        %s124 = smul.u32 4, %s16
        %p125 = scmp.lt.s32.totalorder %s15, 3
        %s126 = scalar_select %p125, %s15, 3
        %p127 = scmp.lt.s32.totalorder %s124, 3
        %s128 = scalar_select %p127, %s124, 3
        %s129 = smul.addr %s128, 2
        %s130 = smul.addr %s126, 8
        %s131 = sadd.s32 %s129, %s130
        %s132 = smul.addr %s131, 4
        %s133 = scalar_lea.vmem %s0, %s132
        %s134 = smul.u32 4, %s16
      $region20: #{generator_forward.6} parent=15 // pred_fallthru
        _
      // Predicated region
      $region21: #{generator_forward.6} parent=15 // pred_check
        %p135 = pneg %p68
      $region22: #{generator_forward.6} parent=15 // pred_check_branch
        %137 = sbr.rel (%p135) target = $region24
      $region23: #{generator_forward.6} parent=15 // pred_region
        %p138 = scmp.lt.s32.totalorder %s15, 3
        %s139 = scalar_select %p138, %s15, 3
        %s140 = smul.addr %s139, 32
        %s141 = smul.addr %s140, 4
        %s142 = scalar_lea.vmem %s1, %s141
      $region24: #{generator_forward.6} parent=15 // pred_fallthru
        _
    $region16: #{generator_forward.6} parent=5 // pred_fallthru
      _
    %p143 = scmp.le.s32.totalorder 1, %s8
    %p144 = scmp.lt.s32.totalorder %s8, 5
    %p145 = pnand %p143, %p144
    %p146 = pneg %p145
    // Predicated region
    $region25: #{generator_forward.6} parent=5 // pred_check
      _
    $region26: #{generator_forward.6} parent=5 // pred_check_branch
      %148 = sbr.rel (%p145) target = $region28
    $region27: #{generator_forward.6} parent=5 // pred_region
      %s149 = ssub.s32 %s8, 1
      %s150 = smul.u32 4, %s18
      %p151 = scmp.lt.s32.totalorder %s17, 3
      %s152 = scalar_select %p151, %s17, 3
      %p153 = scmp.lt.s32.totalorder %s150, 3
      %s154 = scalar_select %p153, %s150, 3
      %s155 = smul.addr %s154, 2
      %s156 = smul.addr %s152, 8
      %s157 = sadd.s32 %s155, %s156
      %s158 = smul.addr %s157, 4
      %s159 = scalar_lea.vmem %s0, %s158
      %p160 = pneg %p48
      %p161 = pneg %p45
      %p162 = scmp.lt.s32.totalorder %s17, 3
      %s163 = scalar_select %p162, %s17, 3
      %s164 = smul.addr %s163, 32
      %s165 = smul.addr %s164, 4
      %s166 = scalar_lea.vmem %s1, %s165
      %p167 = pneg %p74
      %p168 = pneg %p71
      %p169 = pneg %p102
      %p170 = pneg %p99
      %s171 = smul.u32 4, %s18
      %p172 = scmp.lt.s32.totalorder %s17, 3
      %s173 = scalar_select %p172, %s17, 3
      %p174 = scmp.lt.s32.totalorder %s171, 3
      %s175 = scalar_select %p174, %s171, 3
      %s176 = smul.addr %s173, 4
      %s177 = sadd.s32 %s175, %s176
      %s178 = smul.addr %s177, 4
      %s179 = scalar_lea.vmem %s2, %s178
      %s180 = smul.u32 4, %s18
      %p181 = scmp.lt.s32.totalorder %s17, 3
      %s182 = scalar_select %p181, %s17, 3
      %p183 = scmp.lt.s32.totalorder %s180, 3
      %s184 = scalar_select %p183, %s180, 3
      %s185 = smul.addr %s184, 2
      %s186 = smul.addr %s182, 8
      %s187 = sadd.s32 %s185, %s186
      %s188 = smul.addr %s187, 4
      %s189 = scalar_lea.vmem %s0, %s188
      %s190 = smul.u32 4, %s18
      %p191 = scmp.lt.s32.totalorder %s17, 3
      %s192 = scalar_select %p191, %s17, 3
      %s193 = smul.addr %s192, 32
      %s194 = smul.addr %s193, 4
      %s195 = scalar_lea.vmem %s1, %s194
      %s196 = smul.u32 4, %s18
      %p197 = scmp.lt.s32.totalorder %s17, 3
      %s198 = scalar_select %p197, %s17, 3
      %p199 = scmp.lt.s32.totalorder %s196, 3
      %s200 = scalar_select %p199, %s196, 3
      %s201 = smul.addr %s198, 4
      %s202 = sadd.s32 %s200, %s201
      %s203 = smul.addr %s202, 4
      %s204 = scalar_lea.vmem %s2, %s203
      %s205 = smul.u32 4, %s18
      %v207 = vld [vmem:[%s189] sm:$0xff]
      %v208 = vld [vmem:[%s189 + $0x8] sm:$0xff]
      %v209 = vld [vmem:[%s189 + $0x10] sm:$0xff]
      %v210 = vld [vmem:[%s189 + $0x18] sm:$0xff]
      %v211 = vld [vmem:[%s195] sm:$0xf]
      %v212 = vld [vmem:[%s195 + $0x4] sm:$0xf]
      %v213 = vld [vmem:[%s195 + $0x8] sm:$0xf]
      %v214 = vld [vmem:[%s195 + $0xc] sm:$0xf]
      %v215 = vld [vmem:[%s195 + $0x10] sm:$0xf]
      %v216 = vld [vmem:[%s195 + $0x14] sm:$0xf]
      %v217 = vld [vmem:[%s195 + $0x18] sm:$0xf]
      %v218 = vld [vmem:[%s195 + $0x1c] sm:$0xf]
      %v219 = vld [vmem:[%s195 + $0x20] sm:$0xf]
      %v220 = vld [vmem:[%s195 + $0x24] sm:$0xf]
      %v221 = vld [vmem:[%s195 + $0x28] sm:$0xf]
      %v222 = vld [vmem:[%s195 + $0x2c] sm:$0xf]
      %v223 = vld [vmem:[%s195 + $0x30] sm:$0xf]
      %v224 = vld [vmem:[%s195 + $0x34] sm:$0xf]
      %v225 = vld [vmem:[%s195 + $0x38] sm:$0xf]
      %v226 = vld [vmem:[%s195 + $0x3c] sm:$0xf]
      %v227 = vld [vmem:[%s195 + $0x40] sm:$0xf]
      %v228 = vld [vmem:[%s195 + $0x44] sm:$0xf]
      %v229 = vld [vmem:[%s195 + $0x48] sm:$0xf]
      %v230 = vld [vmem:[%s195 + $0x4c] sm:$0xf]
      %v231 = vld [vmem:[%s195 + $0x50] sm:$0xf]
      %v232 = vld [vmem:[%s195 + $0x54] sm:$0xf]
      %v233 = vld [vmem:[%s195 + $0x58] sm:$0xf]
      %v234 = vld [vmem:[%s195 + $0x5c] sm:$0xf]
      %v235 = vld [vmem:[%s195 + $0x60] sm:$0xf]
      %v236 = vld [vmem:[%s195 + $0x64] sm:$0xf]
      %v237 = vld [vmem:[%s195 + $0x68] sm:$0xf]
      %v238 = vld [vmem:[%s195 + $0x6c] sm:$0xf]
      %v239 = vld [vmem:[%s195 + $0x70] sm:$0xf]
      %v240 = vld [vmem:[%s195 + $0x74] sm:$0xf]
      %v241 = vld [vmem:[%s195 + $0x78] sm:$0xf]
      %v242 = vld [vmem:[%s195 + $0x7c] sm:$0xf]
      %v247 = vunpack.c.l.b16 %v207
      %v248 = vunpack.c.h.b16 %v207
      %v249 = vunpack.c.l.b16 %v208
      %v250 = vunpack.c.h.b16 %v208
      %v251 = vunpack.c.l.b16 %v209
      %v252 = vunpack.c.h.b16 %v209
      %v253 = vunpack.c.l.b16 %v210
      %v254 = vunpack.c.h.b16 %v210
      %v255 = vpack.c.b16 %v249, %v247
      %v256 = vpack.c.b16 %v250, %v248
      %v257 = vpack.c.b16 %v253, %v251
      %v258 = vpack.c.b16 %v254, %v252
      %v295 = vunpack.c.l.b16 %v211
      %v296 = vunpack.c.l.b16 %v212
      %v297 = vunpack.c.l.b16 %v213
      %v298 = vunpack.c.l.b16 %v214
      %v299 = vunpack.c.l.b16 %v215
      %v300 = vunpack.c.l.b16 %v216
      %v301 = vunpack.c.l.b16 %v217
      %v302 = vunpack.c.l.b16 %v218
      %v303 = vunpack.c.l.b16 %v219
      %v304 = vunpack.c.l.b16 %v220
      %v305 = vunpack.c.l.b16 %v221
      %v306 = vunpack.c.l.b16 %v222
      %v307 = vunpack.c.l.b16 %v223
      %v308 = vunpack.c.l.b16 %v224
      %v309 = vunpack.c.l.b16 %v225
      %v310 = vunpack.c.l.b16 %v226
      %v311 = vunpack.c.l.b16 %v227
      %v312 = vunpack.c.l.b16 %v228
      %v313 = vunpack.c.l.b16 %v229
      %v314 = vunpack.c.l.b16 %v230
      %v315 = vunpack.c.l.b16 %v231
      %v316 = vunpack.c.l.b16 %v232
      %v317 = vunpack.c.l.b16 %v233
      %v318 = vunpack.c.l.b16 %v234
      %v319 = vunpack.c.l.b16 %v235
      %v320 = vunpack.c.l.b16 %v236
      %v321 = vunpack.c.l.b16 %v237
      %v322 = vunpack.c.l.b16 %v238
      %v323 = vunpack.c.l.b16 %v239
      %v324 = vunpack.c.l.b16 %v240
      %v325 = vunpack.c.l.b16 %v241
      %v326 = vunpack.c.l.b16 %v242
      %v327 = vpack.c.b16 %v296, %v295
      %v328 = vpack.c.b16 %v298, %v297
      %v329 = vpack.c.b16 %v300, %v299
      %v330 = vpack.c.b16 %v302, %v301
      %v331 = vpack.c.b16 %v304, %v303
      %v332 = vpack.c.b16 %v306, %v305
      %v333 = vpack.c.b16 %v308, %v307
      %v334 = vpack.c.b16 %v310, %v309
      %v335 = vpack.c.b16 %v312, %v311
      %v336 = vpack.c.b16 %v314, %v313
      %v337 = vpack.c.b16 %v316, %v315
      %v338 = vpack.c.b16 %v318, %v317
      %v339 = vpack.c.b16 %v320, %v319
      %v340 = vpack.c.b16 %v322, %v321
      %v341 = vpack.c.b16 %v324, %v323
      %v342 = vpack.c.b16 %v326, %v325
      %359 = vmatprep.subr.bf16.mxu0 0
      %360 = vmatpush1.bf16.msra.mxu0 %v327
      %361 = vmatprep.subr.bf16.mxu0 0
      %362 = vmatpush1.bf16.msra.mxu0 %v328
      %363 = vmatprep.subr.bf16.mxu0 0
      %364 = vmatpush1.bf16.msra.mxu0 %v329
      %365 = vmatprep.subr.bf16.mxu0 0
      %366 = vmatpush1.bf16.msra.mxu0 %v330
      %367 = vmatprep.subr.bf16.mxu0 0
      %368 = vmatpush1.bf16.msra.mxu0 %v331
      %369 = vmatprep.subr.bf16.mxu0 0
      %370 = vmatpush1.bf16.msra.mxu0 %v332
      %371 = vmatprep.subr.bf16.mxu0 0
      %372 = vmatpush1.bf16.msra.mxu0 %v333
      %373 = vmatprep.subr.bf16.mxu0 0
      %374 = vmatpush1.bf16.msra.mxu0 %v334
      %375 = vmatprep.subr.bf16.mxu0 0
      %376 = vmatpush1.bf16.msra.mxu0 %v335
      %377 = vmatprep.subr.bf16.mxu0 0
      %378 = vmatpush1.bf16.msra.mxu0 %v336
      %379 = vmatprep.subr.bf16.mxu0 0
      %380 = vmatpush1.bf16.msra.mxu0 %v337
      %381 = vmatprep.subr.bf16.mxu0 0
      %382 = vmatpush1.bf16.msra.mxu0 %v338
      %383 = vmatprep.subr.bf16.mxu0 0
      %384 = vmatpush1.bf16.msra.mxu0 %v339
      %385 = vmatprep.subr.bf16.mxu0 0
      %386 = vmatpush1.bf16.msra.mxu0 %v340
      %387 = vmatprep.subr.bf16.mxu0 0
      %388 = vmatpush1.bf16.msra.mxu0 %v341
      %389 = vmatprep.subr.bf16.mxu0 0
      %390 = vmatpush1.bf16.msra.mxu0 %v342
      %391 = vmatprep.mubr.bf16.mxu0 %v256
      %392 = vmatmul.mubr.bf16.gmra.mrb[0].mxu0 %v255
      %v393 = vpop.f32.mrb[0].mxu0
      %v394 = vadd.f32 0.0, %v393
      %v395 = vpop.f32.mrb[0].mxu0
      %v396 = vpop.f32.mrb[0].mxu0
      %v397 = vadd.f32 0.0, %v396
      %v398 = vpop.f32.mrb[0].mxu0
      %399 = vmatprep.mubr.bf16.mxu0 %v258
      %400 = vmatmul.mubr.bf16.gmra.mrb[0].mxu0 %v257
      %v401 = vpop.f32.mrb[0].mxu0
      %v402 = vadd.f32 0.0, %v401
      %v403 = vpop.f32.mrb[0].mxu0
      %v404 = vpop.f32.mrb[0].mxu0
      %v405 = vadd.f32 0.0, %v404
      %v406 = vpop.f32.mrb[0].mxu0
      %407 = vdwg.mxu0
      %v408 = vmax.f32 %v394, 0.0
      %v409 = vmax.f32 %v397, 0.0
      %v410 = vmax.f32 %v402, 0.0
      %v411 = vmax.f32 %v405, 0.0
      %v412 = vpack.c.bf16 %v409, %v408
      %v413 = vpack.c.bf16 %v411, %v410
      %v416 = vunpack.c.l.b16 %v412
      %v417 = vunpack.c.h.b16 %v412
      %v418 = vunpack.c.l.b16 %v413
      %v419 = vunpack.c.h.b16 %v413
      %v420 = vpack.c.b16 %v416, %v416
      %v421 = vpack.c.b16 %v417, %v417
      %v422 = vpack.c.b16 %v418, %v418
      %v423 = vpack.c.b16 %v419, %v419
      %428 = vst [vmem:[%s204] sm:$0xf] %v420
      %429 = vst [vmem:[%s204 + $0x4] sm:$0xf] %v421
      %430 = vst [vmem:[%s204 + $0x8] sm:$0xf] %v422
      %431 = vst [vmem:[%s204 + $0xc] sm:$0xf] %v423
      %s432 = smul.u32 4, %s18
      %p433 = scmp.lt.s32.totalorder %s17, 3
      %s434 = scalar_select %p433, %s17, 3
      %p435 = scmp.lt.s32.totalorder %s432, 3
      %s436 = scalar_select %p435, %s432, 3
      %s437 = smul.addr %s434, 4
      %s438 = sadd.s32 %s436, %s437
      %s439 = smul.addr %s438, 4
      %s440 = scalar_lea.vmem %s2, %s439
      // Predicated region
      $region29: #{generator_forward.6} parent=27 // pred_check
        %p441 = pneg %p99
      $region30: #{generator_forward.6} parent=27 // pred_check_branch
        %443 = sbr.rel (%p441) target = $region32
      $region31: #{generator_forward.6} parent=27 // pred_region
        %s444 = smul.u32 4, %s18
      $region32: #{generator_forward.6} parent=27 // pred_fallthru
        _
    $region28: #{generator_forward.6} parent=5 // pred_fallthru
      _
    %p445 = scmp.le.s32.totalorder 2, %s8
    // Predicated region
    $region33: #{generator_forward.6} parent=5 // pred_check
      %p446 = pneg %p445
    $region34: #{generator_forward.6} parent=5 // pred_check_branch
      %448 = sbr.rel (%p446) target = $region36
    $region35: #{generator_forward.6} parent=5 // pred_region
      %s449 = ssub.s32 %s8, 2
      // Predicated region
      $region37: #{generator_forward.6} parent=35 // pred_check
        %p450 = pneg %p105
      $region38: #{generator_forward.6} parent=35 // pred_check_branch
        %452 = sbr.rel (%p450) target = $region40
      $region39: #{generator_forward.6} parent=35 // pred_region
        %s453 = smul.u32 4, %s20
        %p454 = scmp.lt.s32.totalorder %s19, 3
        %s455 = scalar_select %p454, %s19, 3
        %p456 = scmp.lt.s32.totalorder %s453, 3
        %s457 = scalar_select %p456, %s453, 3
        %s458 = smul.addr %s455, 4
        %s459 = sadd.s32 %s457, %s458
        %s460 = smul.addr %s459, 4
        %s461 = scalar_lea.vmem %s2, %s460
      $region40: #{generator_forward.6} parent=35 // pred_fallthru
        _
    $region36: #{generator_forward.6} parent=5 // pred_fallthru
      _
  $region6: #{generator_forward.6} parent=0 // loop_footer
    %s12 = sadd.s32 1, %s8
  $region7: #{generator_forward.6} parent=0 // loop_footer_branch
    %7 = sbr.rel target = $region3
  $region8: #{generator_forward.6} parent=0 // loop_exit
    _

// kernel: generator_forward.5
$region0: #{generator_forward.5}
  #allocation0 [shape = 'u32[]', space=smem, size = 0x4, offset = 0x4, fixed_abs, tag = 'smem constant byte address 0x4 - core index']
  #allocation1 [shape = 'u32[144,128]{1,0:T(1,128)}', space=vmem, size = 0x12000, scoped, tag = 'internal scratch']
  %s0 = inlined_call_operand.vmem [shape: bf16[1,16,128], index: 0, kind: input, shape index: {}]
  %s1 = inlined_call_operand.vmem [shape: bf16[1,128,1024], index: 1, kind: input, shape index: {}]
  %s2 = inlined_call_operand.vmem [shape: bf16[1,16,1024], index: 2, kind: output, shape index: {}]
  %s3 = sld [smem:[#allocation0]]
  $region18: #{generator_forward.5} parent=0
    _
  %s5 = ssub.s32 1, %s3
  %s6 = scalar_select 0, %s5, %s3
  // Predicated region
  $region2: #{generator_forward.5} parent=0 // pred_check
    _
  $region3: #{generator_forward.5} parent=0 // pred_check_branch
    %8 = sbr.rel (0) target = $region5
  $region4: #{generator_forward.5} parent=0 // pred_region
    _
  $region5: #{generator_forward.5} parent=0 // pred_fallthru
    _
  // Predicated region
  $region6: #{generator_forward.5} parent=0 // pred_check
    _
  $region7: #{generator_forward.5} parent=0 // pred_check_branch
    %10 = sbr.rel (0) target = $region9
  $region8: #{generator_forward.5} parent=0 // pred_region
    _
  $region9: #{generator_forward.5} parent=0 // pred_fallthru
    _
  %v12 = vld [vmem:[%s0] sm:$0xf]
  %v13 = vld [vmem:[%s0 + $0x4] sm:$0xf]
  %v14 = vld [vmem:[%s1] sm:$0xff]
  %v15 = vld [vmem:[%s1 + $0x8] sm:$0xff]
  %v16 = vld [vmem:[%s1 + $0x10] sm:$0xff]
  %v17 = vld [vmem:[%s1 + $0x18] sm:$0xff]
  %v18 = vld [vmem:[%s1 + $0x20] sm:$0xff]
  %v19 = vld [vmem:[%s1 + $0x28] sm:$0xff]
  %v20 = vld [vmem:[%s1 + $0x30] sm:$0xff]
  %v21 = vld [vmem:[%s1 + $0x38] sm:$0xff]
  %v22 = vld [vmem:[%s1 + $0x40] sm:$0xff]
  %v23 = vld [vmem:[%s1 + $0x48] sm:$0xff]
  %v24 = vld [vmem:[%s1 + $0x50] sm:$0xff]
  %v25 = vld [vmem:[%s1 + $0x58] sm:$0xff]
  %v26 = vld [vmem:[%s1 + $0x60] sm:$0xff]
  %v27 = vld [vmem:[%s1 + $0x68] sm:$0xff]
  %v28 = vld [vmem:[%s1 + $0x70] sm:$0xff]
  %v29 = vld [vmem:[%s1 + $0x78] sm:$0xff]
  %v30 = vld [vmem:[%s1 + $0x80] sm:$0xff]
  %v31 = vld [vmem:[%s1 + $0x88] sm:$0xff]
  %v32 = vld [vmem:[%s1 + $0x90] sm:$0xff]
  %v33 = vld [vmem:[%s1 + $0x98] sm:$0xff]
  %v34 = vld [vmem:[%s1 + $0xa0] sm:$0xff]
  %v35 = vld [vmem:[%s1 + $0xa8] sm:$0xff]
  %v36 = vld [vmem:[%s1 + $0xb0] sm:$0xff]
  %v37 = vld [vmem:[%s1 + $0xb8] sm:$0xff]
  %v38 = vld [vmem:[%s1 + $0xc0] sm:$0xff]
  %v39 = vld [vmem:[%s1 + $0xc8] sm:$0xff]
  %v40 = vld [vmem:[%s1 + $0xd0] sm:$0xff]
  %v41 = vld [vmem:[%s1 + $0xd8] sm:$0xff]
  %v42 = vld [vmem:[%s1 + $0xe0] sm:$0xff]
  %v43 = vld [vmem:[%s1 + $0xe8] sm:$0xff]
  %v44 = vld [vmem:[%s1 + $0xf0] sm:$0xff]
  %v45 = vld [vmem:[%s1 + $0xf8] sm:$0xff]
  %v46 = vld [vmem:[%s1 + $0x100] sm:$0xff]
  %v47 = vld [vmem:[%s1 + $0x108] sm:$0xff]
  %v48 = vld [vmem:[%s1 + $0x110] sm:$0xff]
  %v49 = vld [vmem:[%s1 + $0x118] sm:$0xff]
  %v50 = vld [vmem:[%s1 + $0x120] sm:$0xff]
  %v51 = vld [vmem:[%s1 + $0x128] sm:$0xff]
  %v52 = vld [vmem:[%s1 + $0x130] sm:$0xff]
  %v53 = vld [vmem:[%s1 + $0x138] sm:$0xff]
  %v54 = vld [vmem:[%s1 + $0x140] sm:$0xff]
  %v55 = vld [vmem:[%s1 + $0x148] sm:$0xff]
  %v56 = vld [vmem:[%s1 + $0x150] sm:$0xff]
  %v57 = vld [vmem:[%s1 + $0x158] sm:$0xff]
  %v58 = vld [vmem:[%s1 + $0x160] sm:$0xff]
  %v59 = vld [vmem:[%s1 + $0x168] sm:$0xff]
  %v60 = vld [vmem:[%s1 + $0x170] sm:$0xff]
  %v61 = vld [vmem:[%s1 + $0x178] sm:$0xff]
  %v62 = vld [vmem:[%s1 + $0x180] sm:$0xff]
  %v63 = vld [vmem:[%s1 + $0x188] sm:$0xff]
  %v64 = vld [vmem:[%s1 + $0x190] sm:$0xff]
  %v65 = vld [vmem:[%s1 + $0x198] sm:$0xff]
  %v66 = vld [vmem:[%s1 + $0x1a0] sm:$0xff]
  %v67 = vld [vmem:[%s1 + $0x1a8] sm:$0xff]
  %v68 = vld [vmem:[%s1 + $0x1b0] sm:$0xff]
  %v69 = vld [vmem:[%s1 + $0x1b8] sm:$0xff]
  %v70 = vld [vmem:[%s1 + $0x1c0] sm:$0xff]
  %v71 = vld [vmem:[%s1 + $0x1c8] sm:$0xff]
  %v72 = vld [vmem:[%s1 + $0x1d0] sm:$0xff]
  %v73 = vld [vmem:[%s1 + $0x1d8] sm:$0xff]
  %v74 = vld [vmem:[%s1 + $0x1e0] sm:$0xff]
  %v75 = vld [vmem:[%s1 + $0x1e8] sm:$0xff]
  %v76 = vld [vmem:[%s1 + $0x1f0] sm:$0xff]
  %v77 = vld [vmem:[%s1 + $0x1f8] sm:$0xff]
  %v80 = vunpack.c.l.b16 %v12
  %v81 = vunpack.c.l.b16 %v13
  %v82 = vpack.c.b16 %v81, %v80
  %v148 = vunpack.c.l.b16 %v14
  %v149 = vunpack.c.h.b16 %v14
  %v150 = vunpack.c.l.b16 %v15
  %v151 = vunpack.c.h.b16 %v15
  %v152 = vunpack.c.l.b16 %v16
  %v153 = vunpack.c.h.b16 %v16
  %v154 = vunpack.c.l.b16 %v17
  %v155 = vunpack.c.h.b16 %v17
  %v156 = vunpack.c.l.b16 %v18
  %v157 = vunpack.c.h.b16 %v18
  %v158 = vunpack.c.l.b16 %v19
  %v159 = vunpack.c.h.b16 %v19
  %v160 = vunpack.c.l.b16 %v20
  %v161 = vunpack.c.h.b16 %v20
  %v162 = vunpack.c.l.b16 %v21
  %v163 = vunpack.c.h.b16 %v21
  %v164 = vunpack.c.l.b16 %v22
  %v165 = vunpack.c.h.b16 %v22
  %v166 = vunpack.c.l.b16 %v23
  %v167 = vunpack.c.h.b16 %v23
  %v168 = vunpack.c.l.b16 %v24
  %v169 = vunpack.c.h.b16 %v24
  %v170 = vunpack.c.l.b16 %v25
  %v171 = vunpack.c.h.b16 %v25
  %v172 = vunpack.c.l.b16 %v26
  %v173 = vunpack.c.h.b16 %v26
  %v174 = vunpack.c.l.b16 %v27
  %v175 = vunpack.c.h.b16 %v27
  %v176 = vunpack.c.l.b16 %v28
  %v177 = vunpack.c.h.b16 %v28
  %v178 = vunpack.c.l.b16 %v29
  %v179 = vunpack.c.h.b16 %v29
  %v180 = vunpack.c.l.b16 %v30
  %v181 = vunpack.c.h.b16 %v30
  %v182 = vunpack.c.l.b16 %v31
  %v183 = vunpack.c.h.b16 %v31
  %v184 = vunpack.c.l.b16 %v32
  %v185 = vunpack.c.h.b16 %v32
  %v186 = vunpack.c.l.b16 %v33
  %v187 = vunpack.c.h.b16 %v33
  %v188 = vunpack.c.l.b16 %v34
  %v189 = vunpack.c.h.b16 %v34
  %v190 = vunpack.c.l.b16 %v35
  %v191 = vunpack.c.h.b16 %v35
  %v192 = vunpack.c.l.b16 %v36
  %v193 = vunpack.c.h.b16 %v36
  %v194 = vunpack.c.l.b16 %v37
  %v195 = vunpack.c.h.b16 %v37
  %v196 = vunpack.c.l.b16 %v38
  %v197 = vunpack.c.h.b16 %v38
  %v198 = vunpack.c.l.b16 %v39
  %v199 = vunpack.c.h.b16 %v39
  %v200 = vunpack.c.l.b16 %v40
  %v201 = vunpack.c.h.b16 %v40
  %v202 = vunpack.c.l.b16 %v41
  %v203 = vunpack.c.h.b16 %v41
  %v204 = vunpack.c.l.b16 %v42
  %v205 = vunpack.c.h.b16 %v42
  %v206 = vunpack.c.l.b16 %v43
  %v207 = vunpack.c.h.b16 %v43
  %v208 = vunpack.c.l.b16 %v44
  %v209 = vunpack.c.h.b16 %v44
  %v210 = vunpack.c.l.b16 %v45
  %v211 = vunpack.c.h.b16 %v45
  %v212 = vunpack.c.l.b16 %v46
  %v213 = vunpack.c.h.b16 %v46
  %v214 = vunpack.c.l.b16 %v47
  %v215 = vunpack.c.h.b16 %v47
  %v216 = vunpack.c.l.b16 %v48
  %v217 = vunpack.c.h.b16 %v48
  %v218 = vunpack.c.l.b16 %v49
  %v219 = vunpack.c.h.b16 %v49
  %v220 = vunpack.c.l.b16 %v50
  %v221 = vunpack.c.h.b16 %v50
  %v222 = vunpack.c.l.b16 %v51
  %v223 = vunpack.c.h.b16 %v51
  %v224 = vunpack.c.l.b16 %v52
  %v225 = vunpack.c.h.b16 %v52
  %v226 = vunpack.c.l.b16 %v53
  %v227 = vunpack.c.h.b16 %v53
  %v228 = vunpack.c.l.b16 %v54
  %v229 = vunpack.c.h.b16 %v54
  %v230 = vunpack.c.l.b16 %v55
  %v231 = vunpack.c.h.b16 %v55
  %v232 = vunpack.c.l.b16 %v56
  %v233 = vunpack.c.h.b16 %v56
  %v234 = vunpack.c.l.b16 %v57
  %v235 = vunpack.c.h.b16 %v57
  %v236 = vunpack.c.l.b16 %v58
  %v237 = vunpack.c.h.b16 %v58
  %v238 = vunpack.c.l.b16 %v59
  %v239 = vunpack.c.h.b16 %v59
  %v240 = vunpack.c.l.b16 %v60
  %v241 = vunpack.c.h.b16 %v60
  %v242 = vunpack.c.l.b16 %v61
  %v243 = vunpack.c.h.b16 %v61
  %v244 = vunpack.c.l.b16 %v62
  %v245 = vunpack.c.h.b16 %v62
  %v246 = vunpack.c.l.b16 %v63
  %v247 = vunpack.c.h.b16 %v63
  %v248 = vunpack.c.l.b16 %v64
  %v249 = vunpack.c.h.b16 %v64
  %v250 = vunpack.c.l.b16 %v65
  %v251 = vunpack.c.h.b16 %v65
  %v252 = vunpack.c.l.b16 %v66
  %v253 = vunpack.c.h.b16 %v66
  %v254 = vunpack.c.l.b16 %v67
  %v255 = vunpack.c.h.b16 %v67
  %v256 = vunpack.c.l.b16 %v68
  %v257 = vunpack.c.h.b16 %v68
  %v258 = vunpack.c.l.b16 %v69
  %v259 = vunpack.c.h.b16 %v69
  %v260 = vunpack.c.l.b16 %v70
  %v261 = vunpack.c.h.b16 %v70
  %v262 = vunpack.c.l.b16 %v71
  %v263 = vunpack.c.h.b16 %v71
  %v264 = vunpack.c.l.b16 %v72
  %v265 = vunpack.c.h.b16 %v72
  %v266 = vunpack.c.l.b16 %v73
  %v267 = vunpack.c.h.b16 %v73
  %v268 = vunpack.c.l.b16 %v74
  %v269 = vunpack.c.h.b16 %v74
  %v270 = vunpack.c.l.b16 %v75
  %v271 = vunpack.c.h.b16 %v75
  %v272 = vunpack.c.l.b16 %v76
  %v273 = vunpack.c.h.b16 %v76
  %v274 = vunpack.c.l.b16 %v77
  %v275 = vunpack.c.h.b16 %v77
  %v276 = vpack.c.b16 %v156, %v148
  %v277 = vpack.c.b16 %v157, %v149
  %v278 = vpack.c.b16 %v158, %v150
  %v279 = vpack.c.b16 %v159, %v151
  %v280 = vpack.c.b16 %v160, %v152
  %v281 = vpack.c.b16 %v161, %v153
  %v282 = vpack.c.b16 %v162, %v154
  %v283 = vpack.c.b16 %v163, %v155
  %v284 = vpack.c.b16 %v172, %v164
  %v285 = vpack.c.b16 %v173, %v165
  %v286 = vpack.c.b16 %v174, %v166
  %v287 = vpack.c.b16 %v175, %v167
  %v288 = vpack.c.b16 %v176, %v168
  %v289 = vpack.c.b16 %v177, %v169
  %v290 = vpack.c.b16 %v178, %v170
  %v291 = vpack.c.b16 %v179, %v171
  %v292 = vpack.c.b16 %v188, %v180
  %v293 = vpack.c.b16 %v189, %v181
  %v294 = vpack.c.b16 %v190, %v182
  %v295 = vpack.c.b16 %v191, %v183
  %v296 = vpack.c.b16 %v192, %v184
  %v297 = vpack.c.b16 %v193, %v185
  %v298 = vpack.c.b16 %v194, %v186
  %v299 = vpack.c.b16 %v195, %v187
  %v300 = vpack.c.b16 %v204, %v196
  %v301 = vpack.c.b16 %v205, %v197
  %v302 = vpack.c.b16 %v206, %v198
  %v303 = vpack.c.b16 %v207, %v199
  %v304 = vpack.c.b16 %v208, %v200
  %v305 = vpack.c.b16 %v209, %v201
  %v306 = vpack.c.b16 %v210, %v202
  %v307 = vpack.c.b16 %v211, %v203
  %v308 = vpack.c.b16 %v220, %v212
  %v309 = vpack.c.b16 %v221, %v213
  %v310 = vpack.c.b16 %v222, %v214
  %v311 = vpack.c.b16 %v223, %v215
  %v312 = vpack.c.b16 %v224, %v216
  %v313 = vpack.c.b16 %v225, %v217
  %v314 = vpack.c.b16 %v226, %v218
  %v315 = vpack.c.b16 %v227, %v219
  %v316 = vpack.c.b16 %v236, %v228
  %v317 = vpack.c.b16 %v237, %v229
  %v318 = vpack.c.b16 %v238, %v230
  %v319 = vpack.c.b16 %v239, %v231
  %v320 = vpack.c.b16 %v240, %v232
  %v321 = vpack.c.b16 %v241, %v233
  %v322 = vpack.c.b16 %v242, %v234
  %v323 = vpack.c.b16 %v243, %v235
  %v324 = vpack.c.b16 %v252, %v244
  %v325 = vpack.c.b16 %v253, %v245
  %v326 = vpack.c.b16 %v254, %v246
  %v327 = vpack.c.b16 %v255, %v247
  %v328 = vpack.c.b16 %v256, %v248
  %v329 = vpack.c.b16 %v257, %v249
  %v330 = vpack.c.b16 %v258, %v250
  %v331 = vpack.c.b16 %v259, %v251
  %v332 = vpack.c.b16 %v268, %v260
  %v333 = vpack.c.b16 %v269, %v261
  %v334 = vpack.c.b16 %v270, %v262
  %v335 = vpack.c.b16 %v271, %v263
  %v336 = vpack.c.b16 %v272, %v264
  %v337 = vpack.c.b16 %v273, %v265
  %v338 = vpack.c.b16 %v274, %v266
  %v339 = vpack.c.b16 %v275, %v267
  %404 = vmatprep.subr.bf16.mxu0 %v277
  %405 = vmatpush1.bf16.msra.mxu0 %v276
  %406 = vmatprep.subr.bf16.mxu0 %v285
  %407 = vmatpush1.bf16.msra.mxu0 %v284
  %408 = vmatprep.subr.bf16.mxu0 %v293
  %409 = vmatpush1.bf16.msra.mxu0 %v292
  %410 = vmatprep.subr.bf16.mxu0 %v301
  %411 = vmatpush1.bf16.msra.mxu0 %v300
  %412 = vmatprep.subr.bf16.mxu0 %v309
  %413 = vmatpush1.bf16.msra.mxu0 %v308
  %414 = vmatprep.subr.bf16.mxu0 %v317
  %415 = vmatpush1.bf16.msra.mxu0 %v316
  %416 = vmatprep.subr.bf16.mxu0 %v325
  %417 = vmatpush1.bf16.msra.mxu0 %v324
  %418 = vmatprep.subr.bf16.mxu0 %v333
  %419 = vmatpush1.bf16.msra.mxu0 %v332
  %420 = vmatprep.subr.bf16.mxu0 0
  %421 = vmatpush1.bf16.msra.mxu0 0
  %422 = vmatprep.subr.bf16.mxu0 0
  %423 = vmatpush1.bf16.msra.mxu0 0
  %424 = vmatprep.subr.bf16.mxu0 0
  %425 = vmatpush1.bf16.msra.mxu0 0
  %426 = vmatprep.subr.bf16.mxu0 0
  %427 = vmatpush1.bf16.msra.mxu0 0
  %428 = vmatprep.subr.bf16.mxu0 0
  %429 = vmatpush1.bf16.msra.mxu0 0
  %430 = vmatprep.subr.bf16.mxu0 0
  %431 = vmatpush1.bf16.msra.mxu0 0
  %432 = vmatprep.subr.bf16.mxu0 0
  %433 = vmatpush1.bf16.msra.mxu0 0
  %434 = vmatprep.subr.bf16.mxu0 0
  %435 = vmatpush1.bf16.msra.mxu0 0
  %436 = vmatprep.mubr.bf16.mxu0 0
  %437 = vmatmul.mubr.bf16.gmra.mrb[0].mxu0 %v82
  %v438 = vpop.f32.mrb[0].mxu0
  %v439 = vadd.f32 0.0, %v438
  %v440 = vpop.f32.mrb[0].mxu0
  %v441 = vadd.f32 0.0, %v440
  %v442 = vpop.f32.mrb[0].mxu0
  %v443 = vadd.f32 0.0, %v442
  %v444 = vpop.f32.mrb[0].mxu0
  %v445 = vadd.f32 0.0, %v444
  %446 = vdwg.mxu0
  %447 = vmatprep.subr.bf16.mxu0 %v279
  %448 = vmatpush1.bf16.msra.mxu0 %v278
  %449 = vmatprep.subr.bf16.mxu0 %v287
  %450 = vmatpush1.bf16.msra.mxu0 %v286
  %451 = vmatprep.subr.bf16.mxu0 %v295
  %452 = vmatpush1.bf16.msra.mxu0 %v294
  %453 = vmatprep.subr.bf16.mxu0 %v303
  %454 = vmatpush1.bf16.msra.mxu0 %v302
  %455 = vmatprep.subr.bf16.mxu0 %v311
  %456 = vmatpush1.bf16.msra.mxu0 %v310
  %457 = vmatprep.subr.bf16.mxu0 %v319
  %458 = vmatpush1.bf16.msra.mxu0 %v318
  %459 = vmatprep.subr.bf16.mxu0 %v327
  %460 = vmatpush1.bf16.msra.mxu0 %v326
  %461 = vmatprep.subr.bf16.mxu0 %v335
  %462 = vmatpush1.bf16.msra.mxu0 %v334
  %463 = vmatprep.subr.bf16.mxu0 0
  %464 = vmatpush1.bf16.msra.mxu0 0
  %465 = vmatprep.subr.bf16.mxu0 0
  %466 = vmatpush1.bf16.msra.mxu0 0
  %467 = vmatprep.subr.bf16.mxu0 0
  %468 = vmatpush1.bf16.msra.mxu0 0
  %469 = vmatprep.subr.bf16.mxu0 0
  %470 = vmatpush1.bf16.msra.mxu0 0
  %471 = vmatprep.subr.bf16.mxu0 0
  %472 = vmatpush1.bf16.msra.mxu0 0
  %473 = vmatprep.subr.bf16.mxu0 0
  %474 = vmatpush1.bf16.msra.mxu0 0
  %475 = vmatprep.subr.bf16.mxu0 0
  %476 = vmatpush1.bf16.msra.mxu0 0
  %477 = vmatprep.subr.bf16.mxu0 0
  %478 = vmatpush1.bf16.msra.mxu0 0
  %479 = vmatprep.mubr.bf16.mxu0 0
  %480 = vmatmul.mubr.bf16.gmra.mrb[0].mxu0 %v82
  %v481 = vpop.f32.mrb[0].mxu0
  %v482 = vadd.f32 0.0, %v481
  %v483 = vpop.f32.mrb[0].mxu0
  %v484 = vadd.f32 0.0, %v483
  %v485 = vpop.f32.mrb[0].mxu0
  %v486 = vadd.f32 0.0, %v485
  %v487 = vpop.f32.mrb[0].mxu0
  %v488 = vadd.f32 0.0, %v487
  %489 = vdwg.mxu0
  %490 = vmatprep.subr.bf16.mxu0 %v281
  %491 = vmatpush1.bf16.msra.mxu0 %v280
  %492 = vmatprep.subr.bf16.mxu0 %v289
  %493 = vmatpush1.bf16.msra.mxu0 %v288
  %494 = vmatprep.subr.bf16.mxu0 %v297
  %495 = vmatpush1.bf16.msra.mxu0 %v296
  %496 = vmatprep.subr.bf16.mxu0 %v305
  %497 = vmatpush1.bf16.msra.mxu0 %v304
  %498 = vmatprep.subr.bf16.mxu0 %v313
  %499 = vmatpush1.bf16.msra.mxu0 %v312
  %500 = vmatprep.subr.bf16.mxu0 %v321
  %501 = vmatpush1.bf16.msra.mxu0 %v320
  %502 = vmatprep.subr.bf16.mxu0 %v329
  %503 = vmatpush1.bf16.msra.mxu0 %v328
  %504 = vmatprep.subr.bf16.mxu0 %v337
  %505 = vmatpush1.bf16.msra.mxu0 %v336
  %506 = vmatprep.subr.bf16.mxu0 0
  %507 = vmatpush1.bf16.msra.mxu0 0
  %508 = vmatprep.subr.bf16.mxu0 0
  %509 = vmatpush1.bf16.msra.mxu0 0
  %510 = vmatprep.subr.bf16.mxu0 0
  %511 = vmatpush1.bf16.msra.mxu0 0
  %512 = vmatprep.subr.bf16.mxu0 0
  %513 = vmatpush1.bf16.msra.mxu0 0
  %514 = vmatprep.subr.bf16.mxu0 0
  %515 = vmatpush1.bf16.msra.mxu0 0
  %516 = vmatprep.subr.bf16.mxu0 0
  %517 = vmatpush1.bf16.msra.mxu0 0
  %518 = vmatprep.subr.bf16.mxu0 0
  %519 = vmatpush1.bf16.msra.mxu0 0
  %520 = vmatprep.subr.bf16.mxu0 0
  %521 = vmatpush1.bf16.msra.mxu0 0
  %522 = vmatprep.mubr.bf16.mxu0 0
  %523 = vmatmul.mubr.bf16.gmra.mrb[0].mxu0 %v82
  %v524 = vpop.f32.mrb[0].mxu0
  %v525 = vadd.f32 0.0, %v524
  %v526 = vpop.f32.mrb[0].mxu0
  %v527 = vadd.f32 0.0, %v526
  %v528 = vpop.f32.mrb[0].mxu0
  %v529 = vadd.f32 0.0, %v528
  %v530 = vpop.f32.mrb[0].mxu0
  %v531 = vadd.f32 0.0, %v530
  %532 = vdwg.mxu0
  %533 = vmatprep.subr.bf16.mxu0 %v283
  %534 = vmatpush1.bf16.msra.mxu0 %v282
  %535 = vmatprep.subr.bf16.mxu0 %v291
  %536 = vmatpush1.bf16.msra.mxu0 %v290
  %537 = vmatprep.subr.bf16.mxu0 %v299
  %538 = vmatpush1.bf16.msra.mxu0 %v298
  %539 = vmatprep.subr.bf16.mxu0 %v307
  %540 = vmatpush1.bf16.msra.mxu0 %v306
  %541 = vmatprep.subr.bf16.mxu0 %v315
  %542 = vmatpush1.bf16.msra.mxu0 %v314
  %543 = vmatprep.subr.bf16.mxu0 %v323
  %544 = vmatpush1.bf16.msra.mxu0 %v322
  %545 = vmatprep.subr.bf16.mxu0 %v331
  %546 = vmatpush1.bf16.msra.mxu0 %v330
  %547 = vmatprep.subr.bf16.mxu0 %v339
  %548 = vmatpush1.bf16.msra.mxu0 %v338
  %549 = vmatprep.subr.bf16.mxu0 0
  %550 = vmatpush1.bf16.msra.mxu0 0
  %551 = vmatprep.subr.bf16.mxu0 0
  %552 = vmatpush1.bf16.msra.mxu0 0
  %553 = vmatprep.subr.bf16.mxu0 0
  %554 = vmatpush1.bf16.msra.mxu0 0
  %555 = vmatprep.subr.bf16.mxu0 0
  %556 = vmatpush1.bf16.msra.mxu0 0
  %557 = vmatprep.subr.bf16.mxu0 0
  %558 = vmatpush1.bf16.msra.mxu0 0
  %559 = vmatprep.subr.bf16.mxu0 0
  %560 = vmatpush1.bf16.msra.mxu0 0
  %561 = vmatprep.subr.bf16.mxu0 0
  %562 = vmatpush1.bf16.msra.mxu0 0
  %563 = vmatprep.subr.bf16.mxu0 0
  %564 = vmatpush1.bf16.msra.mxu0 0
  %565 = vmatprep.mubr.bf16.mxu0 0
  %566 = vmatmul.mubr.bf16.gmra.mrb[0].mxu0 %v82
  %v567 = vpop.f32.mrb[0].mxu0
  %v568 = vadd.f32 0.0, %v567
  %v569 = vpop.f32.mrb[0].mxu0
  %v570 = vadd.f32 0.0, %v569
  %v571 = vpop.f32.mrb[0].mxu0
  %v572 = vadd.f32 0.0, %v571
  %v573 = vpop.f32.mrb[0].mxu0
  %v574 = vadd.f32 0.0, %v573
  %575 = vdwg.mxu0
  %v576 = vmax.f32 %v439, 0.0
  %v577 = vmax.f32 %v441, 0.0
  %v578 = vmax.f32 %v482, 0.0
  %v579 = vmax.f32 %v484, 0.0
  %v580 = vmax.f32 %v525, 0.0
  %v581 = vmax.f32 %v527, 0.0
  %v582 = vmax.f32 %v568, 0.0
  %v583 = vmax.f32 %v570, 0.0
  %v584 = vmax.f32 %v443, 0.0
  %v585 = vmax.f32 %v445, 0.0
  %v586 = vmax.f32 %v486, 0.0
  %v587 = vmax.f32 %v488, 0.0
  %v588 = vmax.f32 %v529, 0.0
  %v589 = vmax.f32 %v531, 0.0
  %v590 = vmax.f32 %v572, 0.0
  %v591 = vmax.f32 %v574, 0.0
  %v592 = vpack.c.bf16 %v584, %v576
  %v593 = vpack.c.bf16 %v585, %v577
  %v594 = vpack.c.bf16 %v586, %v578
  %v595 = vpack.c.bf16 %v587, %v579
  %v596 = vpack.c.bf16 %v588, %v580
  %v597 = vpack.c.bf16 %v589, %v581
  %v598 = vpack.c.bf16 %v590, %v582
  %v599 = vpack.c.bf16 %v591, %v583
  %v608 = vunpack.c.l.b16 %v592
  %v609 = vunpack.c.l.b16 %v593
  %v610 = vunpack.c.l.b16 %v594
  %v611 = vunpack.c.l.b16 %v595
  %v612 = vunpack.c.l.b16 %v596
  %v613 = vunpack.c.l.b16 %v597
  %v614 = vunpack.c.l.b16 %v598
  %v615 = vunpack.c.l.b16 %v599
  %v616 = vunpack.c.h.b16 %v592
  %v617 = vunpack.c.h.b16 %v593
  %v618 = vunpack.c.h.b16 %v594
  %v619 = vunpack.c.h.b16 %v595
  %v620 = vunpack.c.h.b16 %v596
  %v621 = vunpack.c.h.b16 %v597
  %v622 = vunpack.c.h.b16 %v598
  %v623 = vunpack.c.h.b16 %v599
  %v624 = vpack.c.b16 %v609, %v608
  %v625 = vpack.c.b16 %v611, %v610
  %v626 = vpack.c.b16 %v613, %v612
  %v627 = vpack.c.b16 %v615, %v614
  %v628 = vpack.c.b16 %v617, %v616
  %v629 = vpack.c.b16 %v619, %v618
  %v630 = vpack.c.b16 %v621, %v620
  %v631 = vpack.c.b16 %v623, %v622
  %640 = vst [vmem:[%s2] sm:$0xff] %v624
  %641 = vst [vmem:[%s2 + $0x8] sm:$0xff] %v625
  %642 = vst [vmem:[%s2 + $0x10] sm:$0xff] %v626
  %643 = vst [vmem:[%s2 + $0x18] sm:$0xff] %v627
  %644 = vst [vmem:[%s2 + $0x20] sm:$0xff] %v628
  %645 = vst [vmem:[%s2 + $0x28] sm:$0xff] %v629
  %646 = vst [vmem:[%s2 + $0x30] sm:$0xff] %v630
  %647 = vst [vmem:[%s2 + $0x38] sm:$0xff] %v631
  // Predicated region
  $region10: #{generator_forward.5} parent=0 // pred_check
    _
  $region11: #{generator_forward.5} parent=0 // pred_check_branch
    %649 = sbr.rel (0) target = $region13
  $region12: #{generator_forward.5} parent=0 // pred_region
    _
  $region13: #{generator_forward.5} parent=0 // pred_fallthru
    _
  // Predicated region
  $region14: #{generator_forward.5} parent=0 // pred_check
    _
  $region15: #{generator_forward.5} parent=0 // pred_check_branch
    %651 = sbr.rel (0) target = $region17
  $region16: #{generator_forward.5} parent=0 // pred_region
    _
  $region17: #{generator_forward.5} parent=0 // pred_fallthru
    _

// kernel: generator_forward.7
$region0: #{generator_forward.7}
  #allocation0 [shape = 'u32[]', space=smem, size = 0x4, offset = 0x4, fixed_abs, tag = 'smem constant byte address 0x4 - core index']
  #allocation1 [shape = 'u32[144,128]{1,0:T(1,128)}', space=vmem, size = 0x12000, scoped, tag = 'internal scratch']
  %s0 = inlined_call_operand.vmem [shape: bf16[4,128,128], index: 0, kind: input, shape index: {}]
  %s1 = inlined_call_operand.vmem [shape: bf16[4,128,128], index: 1, kind: input, shape index: {}]
  %s2 = inlined_call_operand.vmem [shape: bf16[4,128,128], index: 2, kind: output, shape index: {}]
  %s3 = sld [smem:[#allocation0]]
  $region41: #{generator_forward.7} parent=0
    _
  %s5 = ssub.s32 1, %s3
  %s6 = scalar_select 0, %s5, %s3
  loop: start=0, step=1, limit=6
  $region2: #{generator_forward.7} parent=0 // loop_pre_header
    _
  $region3: #{generator_forward.7} parent=0 // loop_header
    %s8 = sphi 0, %s12
    %p9 = scmp.ge.s32.totalorder %s8, 6
    %s15 = sphi 0, %s27
    %s16 = sphi 0, %s23
    %s17 = sphi 0, %s15
    %s18 = sphi 0, %s16
    %s19 = sphi 0, %s17
    %s20 = sphi 0, %s18
    %s32 = sphi 0, %s34
    %s35 = sphi 0, %s32
    %s36 = sphi 0, %s35
    %s52 = sphi 0, %s36
    %s58 = sphi 0, %s60
    %s61 = sphi 0, %s58
    %s62 = sphi 0, %s61
    %s78 = sphi 0, %s62
    %s86 = sphi 0, %s88
    %s89 = sphi 0, %s86
    %s90 = sphi 0, %s89
    %s106 = sphi 0, %s90
  $region4: #{generator_forward.7} parent=0 // loop_header_branch
    %11 = sbr.rel (%p9) target = $region8
  $region5: #{generator_forward.7} parent=0 // loop_body
    %s13 = ssub.s32 %s8, 1
    %s14 = ssub.s32 %s8, 2
    %s21 = sadd.s32 1, %s16
    %p22 = scmp.ge.s32.totalorder %s21, 1
    %s23 = scalar_select %p22, 0, %s21
    %s24 = sadd.s32 1, %s15
    %s25 = scalar_select %p22, %s24, %s15
    %p26 = scmp.ge.s32.totalorder %s25, 4
    %s27 = scalar_select %p26, 0, %s25
    %s28 = ssub.s32 %s15, %s27
    %s29 = ssub.s32 %s16, %s23
    %s30 = sor.u32 %s28, %s29
    %p31 = scmp.eq.s32.totalorder %s30, 0
    %s33 = sadd.s32 %s32, 1
    %s34 = scalar_select %p31, %s32, %s33
    %p37 = pneg %p31
    %p38 = scmp.eq.s32.totalorder %s8, 3
    %p39 = por %p37, %p38
    %p40 = scmp.ne.s32.totalorder %s32, %s35
    %p41 = scmp.eq.s32.totalorder %s8, 0
    %p42 = por %p40, %p41
    %p43 = scmp.ne.s32.totalorder %s32, %s35
    %p44 = scmp.eq.s32.totalorder %s13, 3
    %p45 = por %p43, %p44
    %p46 = scmp.ne.s32.totalorder %s35, %s36
    %p47 = scmp.eq.s32.totalorder %s13, 0
    %p48 = por %p46, %p47
    %p49 = scmp.ne.s32.totalorder %s35, %s36
    %p50 = scmp.eq.s32.totalorder %s14, 3
    %p51 = por %p49, %p50
    %p53 = scmp.ne.s32.totalorder %s36, %s52
    %p54 = scmp.eq.s32.totalorder %s14, 0
    %p55 = por %p53, %p54
    %s56 = ssub.s32 %s15, %s27
    %p57 = scmp.eq.s32.totalorder %s56, 0
    %s59 = sadd.s32 %s58, 1
    %s60 = scalar_select %p57, %s58, %s59
    %p63 = pneg %p57
    %p64 = scmp.eq.s32.totalorder %s8, 3
    %p65 = por %p63, %p64
    %p66 = scmp.ne.s32.totalorder %s58, %s61
    %p67 = scmp.eq.s32.totalorder %s8, 0
    %p68 = por %p66, %p67
    %p69 = scmp.ne.s32.totalorder %s58, %s61
    %p70 = scmp.eq.s32.totalorder %s13, 3
    %p71 = por %p69, %p70
    %p72 = scmp.ne.s32.totalorder %s61, %s62
    %p73 = scmp.eq.s32.totalorder %s13, 0
    %p74 = por %p72, %p73
    %p75 = scmp.ne.s32.totalorder %s61, %s62
    %p76 = scmp.eq.s32.totalorder %s14, 3
    %p77 = por %p75, %p76
    %p79 = scmp.ne.s32.totalorder %s62, %s78
    %p80 = scmp.eq.s32.totalorder %s14, 0
    %p81 = por %p79, %p80
    %s82 = ssub.s32 %s15, %s27
    %s83 = ssub.s32 %s16, %s23
    %s84 = sor.u32 %s82, %s83
    %p85 = scmp.eq.s32.totalorder %s84, 0
    %s87 = sadd.s32 %s86, 1
    %s88 = scalar_select %p85, %s86, %s87
    %p91 = pneg %p85
    %p92 = scmp.eq.s32.totalorder %s8, 3
    %p93 = por %p91, %p92
    %p94 = scmp.ne.s32.totalorder %s86, %s89
    %p95 = scmp.eq.s32.totalorder %s8, 0
    %p96 = por %p94, %p95
    %p97 = scmp.ne.s32.totalorder %s86, %s89
    %p98 = scmp.eq.s32.totalorder %s13, 3
    %p99 = por %p97, %p98
    %p100 = scmp.ne.s32.totalorder %s89, %s90
    %p101 = scmp.eq.s32.totalorder %s13, 0
    %p102 = por %p100, %p101
    %p103 = scmp.ne.s32.totalorder %s89, %s90
    %p104 = scmp.eq.s32.totalorder %s14, 3
    %p105 = por %p103, %p104
    %p107 = scmp.ne.s32.totalorder %s90, %s106
    %p108 = scmp.eq.s32.totalorder %s14, 0
    %p109 = por %p107, %p108
    %p110 = scmp.le.s32.totalorder 1, %s8
    %p111 = scmp.lt.s32.totalorder %s8, 5
    %p112 = pnand %p110, %p111
    %p113 = pneg %p112
    // Predicated region
    $region9: #{generator_forward.7} parent=5 // pred_check
      _
    $region10: #{generator_forward.7} parent=5 // pred_check_branch
      %115 = sbr.rel (%p112) target = $region12
    $region11: #{generator_forward.7} parent=5 // pred_region
      %s116 = ssub.s32 %s8, 1
    $region12: #{generator_forward.7} parent=5 // pred_fallthru
      _
    %p117 = scmp.lt.s32.totalorder %s8, 4
    // Predicated region
    $region13: #{generator_forward.7} parent=5 // pred_check
      %p118 = pneg %p117
    $region14: #{generator_forward.7} parent=5 // pred_check_branch
      %120 = sbr.rel (%p118) target = $region16
    $region15: #{generator_forward.7} parent=5 // pred_region
      // Predicated region
      $region17: #{generator_forward.7} parent=15 // pred_check
        %p121 = pneg %p42
      $region18: #{generator_forward.7} parent=15 // pred_check_branch
        %123 = sbr.rel (%p121) target = $region20
      $region19: #{generator_forward.7} parent=15 // pred_region
        %s124 = smul.u32 16, %s16
        %p125 = scmp.lt.s32.totalorder %s15, 3
        %s126 = scalar_select %p125, %s15, 3
        %p127 = scmp.lt.s32.totalorder %s124, 15
        %s128 = scalar_select %p127, %s124, 15
        %s129 = smul.addr %s126, 16
        %s130 = sadd.s32 %s128, %s129
        %s131 = smul.addr %s130, 4
        %s132 = scalar_lea.vmem %s0, %s131
        %s133 = smul.u32 16, %s16
      $region20: #{generator_forward.7} parent=15 // pred_fallthru
        _
      // Predicated region
      $region21: #{generator_forward.7} parent=15 // pred_check
        %p134 = pneg %p68
      $region22: #{generator_forward.7} parent=15 // pred_check_branch
        %136 = sbr.rel (%p134) target = $region24
      $region23: #{generator_forward.7} parent=15 // pred_region
        %p137 = scmp.lt.s32.totalorder %s15, 3
        %s138 = scalar_select %p137, %s15, 3
        %s139 = smul.addr %s138, 16
        %s140 = smul.addr %s139, 4
        %s141 = scalar_lea.vmem %s1, %s140
      $region24: #{generator_forward.7} parent=15 // pred_fallthru
        _
    $region16: #{generator_forward.7} parent=5 // pred_fallthru
      _
    %p142 = scmp.le.s32.totalorder 1, %s8
    %p143 = scmp.lt.s32.totalorder %s8, 5
    %p144 = pnand %p142, %p143
    %p145 = pneg %p144
    // Predicated region
    $region25: #{generator_forward.7} parent=5 // pred_check
      _
    $region26: #{generator_forward.7} parent=5 // pred_check_branch
      %147 = sbr.rel (%p144) target = $region28
    $region27: #{generator_forward.7} parent=5 // pred_region
      %s148 = ssub.s32 %s8, 1
      %s149 = smul.u32 16, %s18
      %p150 = scmp.lt.s32.totalorder %s17, 3
      %s151 = scalar_select %p150, %s17, 3
      %p152 = scmp.lt.s32.totalorder %s149, 15
      %s153 = scalar_select %p152, %s149, 15
      %s154 = smul.addr %s151, 16
      %s155 = sadd.s32 %s153, %s154
      %s156 = smul.addr %s155, 4
      %s157 = scalar_lea.vmem %s0, %s156
      %p158 = pneg %p48
      %p159 = pneg %p45
      %p160 = scmp.lt.s32.totalorder %s17, 3
      %s161 = scalar_select %p160, %s17, 3
      %s162 = smul.addr %s161, 16
      %s163 = smul.addr %s162, 4
      %s164 = scalar_lea.vmem %s1, %s163
      %p165 = pneg %p74
      %p166 = pneg %p71
      %p167 = pneg %p102
      %p168 = pneg %p99
      %s169 = smul.u32 16, %s18
      %p170 = scmp.lt.s32.totalorder %s17, 3
      %s171 = scalar_select %p170, %s17, 3
      %p172 = scmp.lt.s32.totalorder %s169, 15
      %s173 = scalar_select %p172, %s169, 15
      %s174 = smul.addr %s171, 16
      %s175 = sadd.s32 %s173, %s174
      %s176 = smul.addr %s175, 4
      %s177 = scalar_lea.vmem %s2, %s176
      %s178 = smul.u32 16, %s18
      %p179 = scmp.lt.s32.totalorder %s17, 3
      %s180 = scalar_select %p179, %s17, 3
      %p181 = scmp.lt.s32.totalorder %s178, 15
      %s182 = scalar_select %p181, %s178, 15
      %s183 = smul.addr %s180, 16
      %s184 = sadd.s32 %s182, %s183
      %s185 = smul.addr %s184, 4
      %s186 = scalar_lea.vmem %s0, %s185
      %s187 = smul.u32 16, %s18
      %p188 = scmp.lt.s32.totalorder %s17, 3
      %s189 = scalar_select %p188, %s17, 3
      %s190 = smul.addr %s189, 16
      %s191 = smul.addr %s190, 4
      %s192 = scalar_lea.vmem %s1, %s191
      %s193 = smul.u32 16, %s18
      %p194 = scmp.lt.s32.totalorder %s17, 3
      %s195 = scalar_select %p194, %s17, 3
      %p196 = scmp.lt.s32.totalorder %s193, 15
      %s197 = scalar_select %p196, %s193, 15
      %s198 = smul.addr %s195, 16
      %s199 = sadd.s32 %s197, %s198
      %s200 = smul.addr %s199, 4
      %s201 = scalar_lea.vmem %s2, %s200
      %s202 = smul.u32 16, %s18
      %v204 = vld [vmem:[%s186] sm:$0xf]
      %v205 = vld [vmem:[%s186 + $0x4] sm:$0xf]
      %v206 = vld [vmem:[%s186 + $0x8] sm:$0xf]
      %v207 = vld [vmem:[%s186 + $0xc] sm:$0xf]
      %v208 = vld [vmem:[%s186 + $0x10] sm:$0xf]
      %v209 = vld [vmem:[%s186 + $0x14] sm:$0xf]
      %v210 = vld [vmem:[%s186 + $0x18] sm:$0xf]
      %v211 = vld [vmem:[%s186 + $0x1c] sm:$0xf]
      %v212 = vld [vmem:[%s186 + $0x20] sm:$0xf]
      %v213 = vld [vmem:[%s186 + $0x24] sm:$0xf]
      %v214 = vld [vmem:[%s186 + $0x28] sm:$0xf]
      %v215 = vld [vmem:[%s186 + $0x2c] sm:$0xf]
      %v216 = vld [vmem:[%s186 + $0x30] sm:$0xf]
      %v217 = vld [vmem:[%s186 + $0x34] sm:$0xf]
      %v218 = vld [vmem:[%s186 + $0x38] sm:$0xf]
      %v219 = vld [vmem:[%s186 + $0x3c] sm:$0xf]
      %v220 = vld [vmem:[%s192] sm:$0xf]
      %v221 = vld [vmem:[%s192 + $0x4] sm:$0xf]
      %v222 = vld [vmem:[%s192 + $0x8] sm:$0xf]
      %v223 = vld [vmem:[%s192 + $0xc] sm:$0xf]
      %v224 = vld [vmem:[%s192 + $0x10] sm:$0xf]
      %v225 = vld [vmem:[%s192 + $0x14] sm:$0xf]
      %v226 = vld [vmem:[%s192 + $0x18] sm:$0xf]
      %v227 = vld [vmem:[%s192 + $0x1c] sm:$0xf]
      %v228 = vld [vmem:[%s192 + $0x20] sm:$0xf]
      %v229 = vld [vmem:[%s192 + $0x24] sm:$0xf]
      %v230 = vld [vmem:[%s192 + $0x28] sm:$0xf]
      %v231 = vld [vmem:[%s192 + $0x2c] sm:$0xf]
      %v232 = vld [vmem:[%s192 + $0x30] sm:$0xf]
      %v233 = vld [vmem:[%s192 + $0x34] sm:$0xf]
      %v234 = vld [vmem:[%s192 + $0x38] sm:$0xf]
      %v235 = vld [vmem:[%s192 + $0x3c] sm:$0xf]
      %v252 = vunpack.c.l.b16 %v204
      %v253 = vunpack.c.l.b16 %v205
      %v254 = vunpack.c.l.b16 %v206
      %v255 = vunpack.c.l.b16 %v207
      %v256 = vunpack.c.l.b16 %v208
      %v257 = vunpack.c.l.b16 %v209
      %v258 = vunpack.c.l.b16 %v210
      %v259 = vunpack.c.l.b16 %v211
      %v260 = vunpack.c.l.b16 %v212
      %v261 = vunpack.c.l.b16 %v213
      %v262 = vunpack.c.l.b16 %v214
      %v263 = vunpack.c.l.b16 %v215
      %v264 = vunpack.c.l.b16 %v216
      %v265 = vunpack.c.l.b16 %v217
      %v266 = vunpack.c.l.b16 %v218
      %v267 = vunpack.c.l.b16 %v219
      %v268 = vpack.c.b16 %v253, %v252
      %v269 = vpack.c.b16 %v255, %v254
      %v270 = vpack.c.b16 %v257, %v256
      %v271 = vpack.c.b16 %v259, %v258
      %v272 = vpack.c.b16 %v261, %v260
      %v273 = vpack.c.b16 %v263, %v262
      %v274 = vpack.c.b16 %v265, %v264
      %v275 = vpack.c.b16 %v267, %v266
      %v300 = vunpack.c.l.b16 %v220
      %v301 = vunpack.c.l.b16 %v221
      %v302 = vunpack.c.l.b16 %v222
      %v303 = vunpack.c.l.b16 %v223
      %v304 = vunpack.c.l.b16 %v224
      %v305 = vunpack.c.l.b16 %v225
      %v306 = vunpack.c.l.b16 %v226
      %v307 = vunpack.c.l.b16 %v227
      %v308 = vunpack.c.l.b16 %v228
      %v309 = vunpack.c.l.b16 %v229
      %v310 = vunpack.c.l.b16 %v230
      %v311 = vunpack.c.l.b16 %v231
      %v312 = vunpack.c.l.b16 %v232
      %v313 = vunpack.c.l.b16 %v233
      %v314 = vunpack.c.l.b16 %v234
      %v315 = vunpack.c.l.b16 %v235
      %v316 = vpack.c.b16 %v301, %v300
      %v317 = vpack.c.b16 %v303, %v302
      %v318 = vpack.c.b16 %v305, %v304
      %v319 = vpack.c.b16 %v307, %v306
      %v320 = vpack.c.b16 %v309, %v308
      %v321 = vpack.c.b16 %v311, %v310
      %v322 = vpack.c.b16 %v313, %v312
      %v323 = vpack.c.b16 %v315, %v314
      %332 = vmatprep.subr.bf16.mxu0 0
      %333 = vmatpush1.bf16.msra.mxu0 %v316
      %334 = vmatprep.subr.bf16.mxu0 0
      %335 = vmatpush1.bf16.msra.mxu0 %v317
      %336 = vmatprep.subr.bf16.mxu0 0
      %337 = vmatpush1.bf16.msra.mxu0 %v318
      %338 = vmatprep.subr.bf16.mxu0 0
      %339 = vmatpush1.bf16.msra.mxu0 %v319
      %340 = vmatprep.subr.bf16.mxu0 0
      %341 = vmatpush1.bf16.msra.mxu0 %v320
      %342 = vmatprep.subr.bf16.mxu0 0
      %343 = vmatpush1.bf16.msra.mxu0 %v321
      %344 = vmatprep.subr.bf16.mxu0 0
      %345 = vmatpush1.bf16.msra.mxu0 %v322
      %346 = vmatprep.subr.bf16.mxu0 0
      %347 = vmatpush1.bf16.msra.mxu0 %v323
      %348 = vmatprep.subr.bf16.mxu0 0
      %349 = vmatpush1.bf16.msra.mxu0 0
      %350 = vmatprep.subr.bf16.mxu0 0
      %351 = vmatpush1.bf16.msra.mxu0 0
      %352 = vmatprep.subr.bf16.mxu0 0
      %353 = vmatpush1.bf16.msra.mxu0 0
      %354 = vmatprep.subr.bf16.mxu0 0
      %355 = vmatpush1.bf16.msra.mxu0 0
      %356 = vmatprep.subr.bf16.mxu0 0
      %357 = vmatpush1.bf16.msra.mxu0 0
      %358 = vmatprep.subr.bf16.mxu0 0
      %359 = vmatpush1.bf16.msra.mxu0 0
      %360 = vmatprep.subr.bf16.mxu0 0
      %361 = vmatpush1.bf16.msra.mxu0 0
      %362 = vmatprep.subr.bf16.mxu0 0
      %363 = vmatpush1.bf16.msra.mxu0 0
      %364 = vmatprep.mubr.bf16.mxu0 0
      %365 = vmatmul.mubr.bf16.gmra.mrb[0].mxu0 %v268
      %v366 = vpop.f32.mrb[0].mxu0
      %v367 = vadd.f32 0.0, %v366
      %v368 = vpop.f32.mrb[0].mxu0
      %v369 = vpop.f32.mrb[0].mxu0
      %v370 = vadd.f32 0.0, %v369
      %v371 = vpop.f32.mrb[0].mxu0
      %372 = vmatprep.mubr.bf16.mxu0 0
      %373 = vmatmul.mubr.bf16.gmra.mrb[0].mxu0 %v269
      %v374 = vpop.f32.mrb[0].mxu0
      %v375 = vadd.f32 0.0, %v374
      %v376 = vpop.f32.mrb[0].mxu0
      %v377 = vpop.f32.mrb[0].mxu0
      %v378 = vadd.f32 0.0, %v377
      %v379 = vpop.f32.mrb[0].mxu0
      %380 = vmatprep.mubr.bf16.mxu0 0
      %381 = vmatmul.mubr.bf16.gmra.mrb[0].mxu0 %v270
      %v382 = vpop.f32.mrb[0].mxu0
      %v383 = vadd.f32 0.0, %v382
      %v384 = vpop.f32.mrb[0].mxu0
      %v385 = vpop.f32.mrb[0].mxu0
      %v386 = vadd.f32 0.0, %v385
      %v387 = vpop.f32.mrb[0].mxu0
      %388 = vmatprep.mubr.bf16.mxu0 0
      %389 = vmatmul.mubr.bf16.gmra.mrb[0].mxu0 %v271
      %v390 = vpop.f32.mrb[0].mxu0
      %v391 = vadd.f32 0.0, %v390
      %v392 = vpop.f32.mrb[0].mxu0
      %v393 = vpop.f32.mrb[0].mxu0
      %v394 = vadd.f32 0.0, %v393
      %v395 = vpop.f32.mrb[0].mxu0
      %396 = vmatprep.mubr.bf16.mxu0 0
      %397 = vmatmul.mubr.bf16.gmra.mrb[0].mxu0 %v272
      %v398 = vpop.f32.mrb[0].mxu0
      %v399 = vadd.f32 0.0, %v398
      %v400 = vpop.f32.mrb[0].mxu0
      %v401 = vpop.f32.mrb[0].mxu0
      %v402 = vadd.f32 0.0, %v401
      %v403 = vpop.f32.mrb[0].mxu0
      %404 = vmatprep.mubr.bf16.mxu0 0
      %405 = vmatmul.mubr.bf16.gmra.mrb[0].mxu0 %v273
      %v406 = vpop.f32.mrb[0].mxu0
      %v407 = vadd.f32 0.0, %v406
      %v408 = vpop.f32.mrb[0].mxu0
      %v409 = vpop.f32.mrb[0].mxu0
      %v410 = vadd.f32 0.0, %v409
      %v411 = vpop.f32.mrb[0].mxu0
      %412 = vmatprep.mubr.bf16.mxu0 0
      %413 = vmatmul.mubr.bf16.gmra.mrb[0].mxu0 %v274
      %v414 = vpop.f32.mrb[0].mxu0
      %v415 = vadd.f32 0.0, %v414
      %v416 = vpop.f32.mrb[0].mxu0
      %v417 = vpop.f32.mrb[0].mxu0
      %v418 = vadd.f32 0.0, %v417
      %v419 = vpop.f32.mrb[0].mxu0
      %420 = vmatprep.mubr.bf16.mxu0 0
      %421 = vmatmul.mubr.bf16.gmra.mrb[0].mxu0 %v275
      %v422 = vpop.f32.mrb[0].mxu0
      %v423 = vadd.f32 0.0, %v422
      %v424 = vpop.f32.mrb[0].mxu0
      %v425 = vpop.f32.mrb[0].mxu0
      %v426 = vadd.f32 0.0, %v425
      %v427 = vpop.f32.mrb[0].mxu0
      %428 = vdwg.mxu0
      %v429 = vmax.f32 %v367, 0.0
      %v430 = vmax.f32 %v370, 0.0
      %v431 = vmax.f32 %v375, 0.0
      %v432 = vmax.f32 %v378, 0.0
      %v433 = vmax.f32 %v383, 0.0
      %v434 = vmax.f32 %v386, 0.0
      %v435 = vmax.f32 %v391, 0.0
      %v436 = vmax.f32 %v394, 0.0
      %v437 = vmax.f32 %v399, 0.0
      %v438 = vmax.f32 %v402, 0.0
      %v439 = vmax.f32 %v407, 0.0
      %v440 = vmax.f32 %v410, 0.0
      %v441 = vmax.f32 %v415, 0.0
      %v442 = vmax.f32 %v418, 0.0
      %v443 = vmax.f32 %v423, 0.0
      %v444 = vmax.f32 %v426, 0.0
      %v445 = vpack.c.bf16 %v430, %v429
      %v446 = vpack.c.bf16 %v432, %v431
      %v447 = vpack.c.bf16 %v434, %v433
      %v448 = vpack.c.bf16 %v436, %v435
      %v449 = vpack.c.bf16 %v438, %v437
      %v450 = vpack.c.bf16 %v440, %v439
      %v451 = vpack.c.bf16 %v442, %v441
      %v452 = vpack.c.bf16 %v444, %v443
      %v461 = vunpack.c.l.b16 %v445
      %v462 = vunpack.c.h.b16 %v445
      %v463 = vunpack.c.l.b16 %v446
      %v464 = vunpack.c.h.b16 %v446
      %v465 = vunpack.c.l.b16 %v447
      %v466 = vunpack.c.h.b16 %v447
      %v467 = vunpack.c.l.b16 %v448
      %v468 = vunpack.c.h.b16 %v448
      %v469 = vunpack.c.l.b16 %v449
      %v470 = vunpack.c.h.b16 %v449
      %v471 = vunpack.c.l.b16 %v450
      %v472 = vunpack.c.h.b16 %v450
      %v473 = vunpack.c.l.b16 %v451
      %v474 = vunpack.c.h.b16 %v451
      %v475 = vunpack.c.l.b16 %v452
      %v476 = vunpack.c.h.b16 %v452
      %v477 = vpack.c.b16 %v461, %v461
      %v478 = vpack.c.b16 %v462, %v462
      %v479 = vpack.c.b16 %v463, %v463
      %v480 = vpack.c.b16 %v464, %v464
      %v481 = vpack.c.b16 %v465, %v465
      %v482 = vpack.c.b16 %v466, %v466
      %v483 = vpack.c.b16 %v467, %v467
      %v484 = vpack.c.b16 %v468, %v468
      %v485 = vpack.c.b16 %v469, %v469
      %v486 = vpack.c.b16 %v470, %v470
      %v487 = vpack.c.b16 %v471, %v471
      %v488 = vpack.c.b16 %v472, %v472
      %v489 = vpack.c.b16 %v473, %v473
      %v490 = vpack.c.b16 %v474, %v474
      %v491 = vpack.c.b16 %v475, %v475
      %v492 = vpack.c.b16 %v476, %v476
      %509 = vst [vmem:[%s201] sm:$0xf] %v477
      %510 = vst [vmem:[%s201 + $0x4] sm:$0xf] %v478
      %511 = vst [vmem:[%s201 + $0x8] sm:$0xf] %v479
      %512 = vst [vmem:[%s201 + $0xc] sm:$0xf] %v480
      %513 = vst [vmem:[%s201 + $0x10] sm:$0xf] %v481
      %514 = vst [vmem:[%s201 + $0x14] sm:$0xf] %v482
      %515 = vst [vmem:[%s201 + $0x18] sm:$0xf] %v483
      %516 = vst [vmem:[%s201 + $0x1c] sm:$0xf] %v484
      %517 = vst [vmem:[%s201 + $0x20] sm:$0xf] %v485
      %518 = vst [vmem:[%s201 + $0x24] sm:$0xf] %v486
      %519 = vst [vmem:[%s201 + $0x28] sm:$0xf] %v487
      %520 = vst [vmem:[%s201 + $0x2c] sm:$0xf] %v488
      %521 = vst [vmem:[%s201 + $0x30] sm:$0xf] %v489
      %522 = vst [vmem:[%s201 + $0x34] sm:$0xf] %v490
      %523 = vst [vmem:[%s201 + $0x38] sm:$0xf] %v491
      %524 = vst [vmem:[%s201 + $0x3c] sm:$0xf] %v492
      %s525 = smul.u32 16, %s18
      %p526 = scmp.lt.s32.totalorder %s17, 3
      %s527 = scalar_select %p526, %s17, 3
      %p528 = scmp.lt.s32.totalorder %s525, 15
      %s529 = scalar_select %p528, %s525, 15
      %s530 = smul.addr %s527, 16
      %s531 = sadd.s32 %s529, %s530
      %s532 = smul.addr %s531, 4
      %s533 = scalar_lea.vmem %s2, %s532
      // Predicated region
      $region29: #{generator_forward.7} parent=27 // pred_check
        %p534 = pneg %p99
      $region30: #{generator_forward.7} parent=27 // pred_check_branch
        %536 = sbr.rel (%p534) target = $region32
      $region31: #{generator_forward.7} parent=27 // pred_region
        %s537 = smul.u32 16, %s18
      $region32: #{generator_forward.7} parent=27 // pred_fallthru
        _
    $region28: #{generator_forward.7} parent=5 // pred_fallthru
      _
    %p538 = scmp.le.s32.totalorder 2, %s8
    // Predicated region
    $region33: #{generator_forward.7} parent=5 // pred_check
      %p539 = pneg %p538
    $region34: #{generator_forward.7} parent=5 // pred_check_branch
      %541 = sbr.rel (%p539) target = $region36
    $region35: #{generator_forward.7} parent=5 // pred_region
      %s542 = ssub.s32 %s8, 2
      // Predicated region
      $region37: #{generator_forward.7} parent=35 // pred_check
        %p543 = pneg %p105
      $region38: #{generator_forward.7} parent=35 // pred_check_branch
        %545 = sbr.rel (%p543) target = $region40
      $region39: #{generator_forward.7} parent=35 // pred_region
        %s546 = smul.u32 16, %s20
        %p547 = scmp.lt.s32.totalorder %s19, 3
        %s548 = scalar_select %p547, %s19, 3
        %p549 = scmp.lt.s32.totalorder %s546, 15
        %s550 = scalar_select %p549, %s546, 15
        %s551 = smul.addr %s548, 16
        %s552 = sadd.s32 %s550, %s551
        %s553 = smul.addr %s552, 4
        %s554 = scalar_lea.vmem %s2, %s553
      $region40: #{generator_forward.7} parent=35 // pred_fallthru
        _
    $region36: #{generator_forward.7} parent=5 // pred_fallthru
      _
  $region6: #{generator_forward.7} parent=0 // loop_footer
    %s12 = sadd.s32 1, %s8
  $region7: #{generator_forward.7} parent=0 // loop_footer_branch
    %7 = sbr.rel target = $region3
  $region8: #{generator_forward.7} parent=0 // loop_exit
    _

// kernel: generator_forward.8
$region0: #{generator_forward.8}
  #allocation0 [shape = 'u32[]', space=smem, size = 0x4, offset = 0x4, fixed_abs, tag = 'smem constant byte address 0x4 - core index']
  #allocation1 [shape = 'u32[144,128]{1,0:T(1,128)}', space=vmem, size = 0x12000, scoped, tag = 'internal scratch']
  %s0 = inlined_call_operand.vmem [shape: bf16[4,512,128], index: 0, kind: input, shape index: {}]
  %s1 = inlined_call_operand.vmem [shape: bf16[4,128,128], index: 1, kind: input, shape index: {}]
  %s2 = inlined_call_operand.vmem [shape: bf16[4,512,128], index: 2, kind: output, shape index: {}]
  %s3 = sld [smem:[#allocation0]]
  $region41: #{generator_forward.8} parent=0
    _
  %s5 = ssub.s32 1, %s3
  %s6 = scalar_select 0, %s5, %s3
  loop: start=0, step=1, limit=6
  $region2: #{generator_forward.8} parent=0 // loop_pre_header
    _
  $region3: #{generator_forward.8} parent=0 // loop_header
    %s8 = sphi 0, %s12
    %p9 = scmp.ge.s32.totalorder %s8, 6
    %s15 = sphi 0, %s27
    %s16 = sphi 0, %s23
    %s17 = sphi 0, %s15
    %s18 = sphi 0, %s16
    %s19 = sphi 0, %s17
    %s20 = sphi 0, %s18
    %s32 = sphi 0, %s34
    %s35 = sphi 0, %s32
    %s36 = sphi 0, %s35
    %s52 = sphi 0, %s36
    %s58 = sphi 0, %s60
    %s61 = sphi 0, %s58
    %s62 = sphi 0, %s61
    %s78 = sphi 0, %s62
    %s86 = sphi 0, %s88
    %s89 = sphi 0, %s86
    %s90 = sphi 0, %s89
    %s106 = sphi 0, %s90
  $region4: #{generator_forward.8} parent=0 // loop_header_branch
    %11 = sbr.rel (%p9) target = $region8
  $region5: #{generator_forward.8} parent=0 // loop_body
    %s13 = ssub.s32 %s8, 1
    %s14 = ssub.s32 %s8, 2
    %s21 = sadd.s32 1, %s16
    %p22 = scmp.ge.s32.totalorder %s21, 1
    %s23 = scalar_select %p22, 0, %s21
    %s24 = sadd.s32 1, %s15
    %s25 = scalar_select %p22, %s24, %s15
    %p26 = scmp.ge.s32.totalorder %s25, 4
    %s27 = scalar_select %p26, 0, %s25
    %s28 = ssub.s32 %s15, %s27
    %s29 = ssub.s32 %s16, %s23
    %s30 = sor.u32 %s28, %s29
    %p31 = scmp.eq.s32.totalorder %s30, 0
    %s33 = sadd.s32 %s32, 1
    %s34 = scalar_select %p31, %s32, %s33
    %p37 = pneg %p31
    %p38 = scmp.eq.s32.totalorder %s8, 3
    %p39 = por %p37, %p38
    %p40 = scmp.ne.s32.totalorder %s32, %s35
    %p41 = scmp.eq.s32.totalorder %s8, 0
    %p42 = por %p40, %p41
    %p43 = scmp.ne.s32.totalorder %s32, %s35
    %p44 = scmp.eq.s32.totalorder %s13, 3
    %p45 = por %p43, %p44
    %p46 = scmp.ne.s32.totalorder %s35, %s36
    %p47 = scmp.eq.s32.totalorder %s13, 0
    %p48 = por %p46, %p47
    %p49 = scmp.ne.s32.totalorder %s35, %s36
    %p50 = scmp.eq.s32.totalorder %s14, 3
    %p51 = por %p49, %p50
    %p53 = scmp.ne.s32.totalorder %s36, %s52
    %p54 = scmp.eq.s32.totalorder %s14, 0
    %p55 = por %p53, %p54
    %s56 = ssub.s32 %s15, %s27
    %p57 = scmp.eq.s32.totalorder %s56, 0
    %s59 = sadd.s32 %s58, 1
    %s60 = scalar_select %p57, %s58, %s59
    %p63 = pneg %p57
    %p64 = scmp.eq.s32.totalorder %s8, 3
    %p65 = por %p63, %p64
    %p66 = scmp.ne.s32.totalorder %s58, %s61
    %p67 = scmp.eq.s32.totalorder %s8, 0
    %p68 = por %p66, %p67
    %p69 = scmp.ne.s32.totalorder %s58, %s61
    %p70 = scmp.eq.s32.totalorder %s13, 3
    %p71 = por %p69, %p70
    %p72 = scmp.ne.s32.totalorder %s61, %s62
    %p73 = scmp.eq.s32.totalorder %s13, 0
    %p74 = por %p72, %p73
    %p75 = scmp.ne.s32.totalorder %s61, %s62
    %p76 = scmp.eq.s32.totalorder %s14, 3
    %p77 = por %p75, %p76
    %p79 = scmp.ne.s32.totalorder %s62, %s78
    %p80 = scmp.eq.s32.totalorder %s14, 0
    %p81 = por %p79, %p80
    %s82 = ssub.s32 %s15, %s27
    %s83 = ssub.s32 %s16, %s23
    %s84 = sor.u32 %s82, %s83
    %p85 = scmp.eq.s32.totalorder %s84, 0
    %s87 = sadd.s32 %s86, 1
    %s88 = scalar_select %p85, %s86, %s87
    %p91 = pneg %p85
    %p92 = scmp.eq.s32.totalorder %s8, 3
    %p93 = por %p91, %p92
    %p94 = scmp.ne.s32.totalorder %s86, %s89
    %p95 = scmp.eq.s32.totalorder %s8, 0
    %p96 = por %p94, %p95
    %p97 = scmp.ne.s32.totalorder %s86, %s89
    %p98 = scmp.eq.s32.totalorder %s13, 3
    %p99 = por %p97, %p98
    %p100 = scmp.ne.s32.totalorder %s89, %s90
    %p101 = scmp.eq.s32.totalorder %s13, 0
    %p102 = por %p100, %p101
    %p103 = scmp.ne.s32.totalorder %s89, %s90
    %p104 = scmp.eq.s32.totalorder %s14, 3
    %p105 = por %p103, %p104
    %p107 = scmp.ne.s32.totalorder %s90, %s106
    %p108 = scmp.eq.s32.totalorder %s14, 0
    %p109 = por %p107, %p108
    %p110 = scmp.le.s32.totalorder 1, %s8
    %p111 = scmp.lt.s32.totalorder %s8, 5
    %p112 = pnand %p110, %p111
    %p113 = pneg %p112
    // Predicated region
    $region9: #{generator_forward.8} parent=5 // pred_check
      _
    $region10: #{generator_forward.8} parent=5 // pred_check_branch
      %115 = sbr.rel (%p112) target = $region12
    $region11: #{generator_forward.8} parent=5 // pred_region
      %s116 = ssub.s32 %s8, 1
    $region12: #{generator_forward.8} parent=5 // pred_fallthru
      _
    %p117 = scmp.lt.s32.totalorder %s8, 4
    // Predicated region
    $region13: #{generator_forward.8} parent=5 // pred_check
      %p118 = pneg %p117
    $region14: #{generator_forward.8} parent=5 // pred_check_branch
      %120 = sbr.rel (%p118) target = $region16
    $region15: #{generator_forward.8} parent=5 // pred_region
      // Predicated region
      $region17: #{generator_forward.8} parent=15 // pred_check
        %p121 = pneg %p42
      $region18: #{generator_forward.8} parent=15 // pred_check_branch
        %123 = sbr.rel (%p121) target = $region20
      $region19: #{generator_forward.8} parent=15 // pred_region
        %s124 = smul.u32 64, %s16
        %p125 = scmp.lt.s32.totalorder %s15, 3
        %s126 = scalar_select %p125, %s15, 3
        %p127 = scmp.lt.s32.totalorder %s124, 63
        %s128 = scalar_select %p127, %s124, 63
        %s129 = smul.addr %s126, 64
        %s130 = sadd.s32 %s128, %s129
        %s131 = smul.addr %s130, 4
        %s132 = scalar_lea.vmem %s0, %s131
        %s133 = smul.u32 64, %s16
      $region20: #{generator_forward.8} parent=15 // pred_fallthru
        _
      // Predicated region
      $region21: #{generator_forward.8} parent=15 // pred_check
        %p134 = pneg %p68
      $region22: #{generator_forward.8} parent=15 // pred_check_branch
        %136 = sbr.rel (%p134) target = $region24
      $region23: #{generator_forward.8} parent=15 // pred_region
        %p137 = scmp.lt.s32.totalorder %s15, 3
        %s138 = scalar_select %p137, %s15, 3
        %s139 = smul.addr %s138, 16
        %s140 = smul.addr %s139, 4
        %s141 = scalar_lea.vmem %s1, %s140
      $region24: #{generator_forward.8} parent=15 // pred_fallthru
        _
    $region16: #{generator_forward.8} parent=5 // pred_fallthru
      _
    %p142 = scmp.le.s32.totalorder 1, %s8
    %p143 = scmp.lt.s32.totalorder %s8, 5
    %p144 = pnand %p142, %p143
    %p145 = pneg %p144
    // Predicated region
    $region25: #{generator_forward.8} parent=5 // pred_check
      _
    $region26: #{generator_forward.8} parent=5 // pred_check_branch
      %147 = sbr.rel (%p144) target = $region28
    $region27: #{generator_forward.8} parent=5 // pred_region
      %s148 = ssub.s32 %s8, 1
      %s149 = smul.u32 64, %s18
      %p150 = scmp.lt.s32.totalorder %s17, 3
      %s151 = scalar_select %p150, %s17, 3
      %p152 = scmp.lt.s32.totalorder %s149, 63
      %s153 = scalar_select %p152, %s149, 63
      %s154 = smul.addr %s151, 64
      %s155 = sadd.s32 %s153, %s154
      %s156 = smul.addr %s155, 4
      %s157 = scalar_lea.vmem %s0, %s156
      %p158 = pneg %p48
      %p159 = pneg %p45
      %p160 = scmp.lt.s32.totalorder %s17, 3
      %s161 = scalar_select %p160, %s17, 3
      %s162 = smul.addr %s161, 16
      %s163 = smul.addr %s162, 4
      %s164 = scalar_lea.vmem %s1, %s163
      %p165 = pneg %p74
      %p166 = pneg %p71
      %p167 = pneg %p102
      %p168 = pneg %p99
      %s169 = smul.u32 64, %s18
      %p170 = scmp.lt.s32.totalorder %s17, 3
      %s171 = scalar_select %p170, %s17, 3
      %p172 = scmp.lt.s32.totalorder %s169, 63
      %s173 = scalar_select %p172, %s169, 63
      %s174 = smul.addr %s171, 64
      %s175 = sadd.s32 %s173, %s174
      %s176 = smul.addr %s175, 4
      %s177 = scalar_lea.vmem %s2, %s176
      %s178 = smul.u32 64, %s18
      %p179 = scmp.lt.s32.totalorder %s17, 3
      %s180 = scalar_select %p179, %s17, 3
      %p181 = scmp.lt.s32.totalorder %s178, 63
      %s182 = scalar_select %p181, %s178, 63
      %s183 = smul.addr %s180, 64
      %s184 = sadd.s32 %s182, %s183
      %s185 = smul.addr %s184, 4
      %s186 = scalar_lea.vmem %s0, %s185
      %s187 = smul.u32 64, %s18
      %p188 = scmp.lt.s32.totalorder %s17, 3
      %s189 = scalar_select %p188, %s17, 3
      %s190 = smul.addr %s189, 16
      %s191 = smul.addr %s190, 4
      %s192 = scalar_lea.vmem %s1, %s191
      %s193 = smul.u32 64, %s18
      %p194 = scmp.lt.s32.totalorder %s17, 3
      %s195 = scalar_select %p194, %s17, 3
      %p196 = scmp.lt.s32.totalorder %s193, 63
      %s197 = scalar_select %p196, %s193, 63
      %s198 = smul.addr %s195, 64
      %s199 = sadd.s32 %s197, %s198
      %s200 = smul.addr %s199, 4
      %s201 = scalar_lea.vmem %s2, %s200
      %s202 = smul.u32 64, %s18
      %v204 = vld [vmem:[%s186] sm:$0xf]
      %v205 = vld [vmem:[%s186 + $0x4] sm:$0xf]
      %v206 = vld [vmem:[%s186 + $0x8] sm:$0xf]
      %v207 = vld [vmem:[%s186 + $0xc] sm:$0xf]
      %v208 = vld [vmem:[%s186 + $0x10] sm:$0xf]
      %v209 = vld [vmem:[%s186 + $0x14] sm:$0xf]
      %v210 = vld [vmem:[%s186 + $0x18] sm:$0xf]
      %v211 = vld [vmem:[%s186 + $0x1c] sm:$0xf]
      %v212 = vld [vmem:[%s186 + $0x20] sm:$0xf]
      %v213 = vld [vmem:[%s186 + $0x24] sm:$0xf]
      %v214 = vld [vmem:[%s186 + $0x28] sm:$0xf]
      %v215 = vld [vmem:[%s186 + $0x2c] sm:$0xf]
      %v216 = vld [vmem:[%s186 + $0x30] sm:$0xf]
      %v217 = vld [vmem:[%s186 + $0x34] sm:$0xf]
      %v218 = vld [vmem:[%s186 + $0x38] sm:$0xf]
      %v219 = vld [vmem:[%s186 + $0x3c] sm:$0xf]
      %v220 = vld [vmem:[%s186 + $0x40] sm:$0xf]
      %v221 = vld [vmem:[%s186 + $0x44] sm:$0xf]
      %v222 = vld [vmem:[%s186 + $0x48] sm:$0xf]
      %v223 = vld [vmem:[%s186 + $0x4c] sm:$0xf]
      %v224 = vld [vmem:[%s186 + $0x50] sm:$0xf]
      %v225 = vld [vmem:[%s186 + $0x54] sm:$0xf]
      %v226 = vld [vmem:[%s186 + $0x58] sm:$0xf]
      %v227 = vld [vmem:[%s186 + $0x5c] sm:$0xf]
      %v228 = vld [vmem:[%s186 + $0x60] sm:$0xf]
      %v229 = vld [vmem:[%s186 + $0x64] sm:$0xf]
      %v230 = vld [vmem:[%s186 + $0x68] sm:$0xf]
      %v231 = vld [vmem:[%s186 + $0x6c] sm:$0xf]
      %v232 = vld [vmem:[%s186 + $0x70] sm:$0xf]
      %v233 = vld [vmem:[%s186 + $0x74] sm:$0xf]
      %v234 = vld [vmem:[%s186 + $0x78] sm:$0xf]
      %v235 = vld [vmem:[%s186 + $0x7c] sm:$0xf]
      %v236 = vld [vmem:[%s186 + $0x80] sm:$0xf]
      %v237 = vld [vmem:[%s186 + $0x84] sm:$0xf]
      %v238 = vld [vmem:[%s186 + $0x88] sm:$0xf]
      %v239 = vld [vmem:[%s186 + $0x8c] sm:$0xf]
      %v240 = vld [vmem:[%s186 + $0x90] sm:$0xf]
      %v241 = vld [vmem:[%s186 + $0x94] sm:$0xf]
      %v242 = vld [vmem:[%s186 + $0x98] sm:$0xf]
      %v243 = vld [vmem:[%s186 + $0x9c] sm:$0xf]
      %v244 = vld [vmem:[%s186 + $0xa0] sm:$0xf]
      %v245 = vld [vmem:[%s186 + $0xa4] sm:$0xf]
      %v246 = vld [vmem:[%s186 + $0xa8] sm:$0xf]
      %v247 = vld [vmem:[%s186 + $0xac] sm:$0xf]
      %v248 = vld [vmem:[%s186 + $0xb0] sm:$0xf]
      %v249 = vld [vmem:[%s186 + $0xb4] sm:$0xf]
      %v250 = vld [vmem:[%s186 + $0xb8] sm:$0xf]
      %v251 = vld [vmem:[%s186 + $0xbc] sm:$0xf]
      %v252 = vld [vmem:[%s186 + $0xc0] sm:$0xf]
      %v253 = vld [vmem:[%s186 + $0xc4] sm:$0xf]
      %v254 = vld [vmem:[%s186 + $0xc8] sm:$0xf]
      %v255 = vld [vmem:[%s186 + $0xcc] sm:$0xf]
      %v256 = vld [vmem:[%s186 + $0xd0] sm:$0xf]
      %v257 = vld [vmem:[%s186 + $0xd4] sm:$0xf]
      %v258 = vld [vmem:[%s186 + $0xd8] sm:$0xf]
      %v259 = vld [vmem:[%s186 + $0xdc] sm:$0xf]
      %v260 = vld [vmem:[%s186 + $0xe0] sm:$0xf]
      %v261 = vld [vmem:[%s186 + $0xe4] sm:$0xf]
      %v262 = vld [vmem:[%s186 + $0xe8] sm:$0xf]
      %v263 = vld [vmem:[%s186 + $0xec] sm:$0xf]
      %v264 = vld [vmem:[%s186 + $0xf0] sm:$0xf]
      %v265 = vld [vmem:[%s186 + $0xf4] sm:$0xf]
      %v266 = vld [vmem:[%s186 + $0xf8] sm:$0xf]
      %v267 = vld [vmem:[%s186 + $0xfc] sm:$0xf]
      %v268 = vld [vmem:[%s192] sm:$0xf]
      %v269 = vld [vmem:[%s192 + $0x4] sm:$0xf]
      %v270 = vld [vmem:[%s192 + $0x8] sm:$0xf]
      %v271 = vld [vmem:[%s192 + $0xc] sm:$0xf]
      %v272 = vld [vmem:[%s192 + $0x10] sm:$0xf]
      %v273 = vld [vmem:[%s192 + $0x14] sm:$0xf]
      %v274 = vld [vmem:[%s192 + $0x18] sm:$0xf]
      %v275 = vld [vmem:[%s192 + $0x1c] sm:$0xf]
      %v276 = vld [vmem:[%s192 + $0x20] sm:$0xf]
      %v277 = vld [vmem:[%s192 + $0x24] sm:$0xf]
      %v278 = vld [vmem:[%s192 + $0x28] sm:$0xf]
      %v279 = vld [vmem:[%s192 + $0x2c] sm:$0xf]
      %v280 = vld [vmem:[%s192 + $0x30] sm:$0xf]
      %v281 = vld [vmem:[%s192 + $0x34] sm:$0xf]
      %v282 = vld [vmem:[%s192 + $0x38] sm:$0xf]
      %v283 = vld [vmem:[%s192 + $0x3c] sm:$0xf]
      %v348 = vunpack.c.l.b16 %v204
      %v349 = vunpack.c.l.b16 %v205
      %v350 = vunpack.c.l.b16 %v206
      %v351 = vunpack.c.l.b16 %v207
      %v352 = vunpack.c.l.b16 %v208
      %v353 = vunpack.c.l.b16 %v209
      %v354 = vunpack.c.l.b16 %v210
      %v355 = vunpack.c.l.b16 %v211
      %v356 = vunpack.c.l.b16 %v212
      %v357 = vunpack.c.l.b16 %v213
      %v358 = vunpack.c.l.b16 %v214
      %v359 = vunpack.c.l.b16 %v215
      %v360 = vunpack.c.l.b16 %v216
      %v361 = vunpack.c.l.b16 %v217
      %v362 = vunpack.c.l.b16 %v218
      %v363 = vunpack.c.l.b16 %v219
      %v364 = vunpack.c.l.b16 %v220
      %v365 = vunpack.c.l.b16 %v221
      %v366 = vunpack.c.l.b16 %v222
      %v367 = vunpack.c.l.b16 %v223
      %v368 = vunpack.c.l.b16 %v224
      %v369 = vunpack.c.l.b16 %v225
      %v370 = vunpack.c.l.b16 %v226
      %v371 = vunpack.c.l.b16 %v227
      %v372 = vunpack.c.l.b16 %v228
      %v373 = vunpack.c.l.b16 %v229
      %v374 = vunpack.c.l.b16 %v230
      %v375 = vunpack.c.l.b16 %v231
      %v376 = vunpack.c.l.b16 %v232
      %v377 = vunpack.c.l.b16 %v233
      %v378 = vunpack.c.l.b16 %v234
      %v379 = vunpack.c.l.b16 %v235
      %v380 = vunpack.c.l.b16 %v236
      %v381 = vunpack.c.l.b16 %v237
      %v382 = vunpack.c.l.b16 %v238
      %v383 = vunpack.c.l.b16 %v239
      %v384 = vunpack.c.l.b16 %v240
      %v385 = vunpack.c.l.b16 %v241
      %v386 = vunpack.c.l.b16 %v242
      %v387 = vunpack.c.l.b16 %v243
      %v388 = vunpack.c.l.b16 %v244
      %v389 = vunpack.c.l.b16 %v245
      %v390 = vunpack.c.l.b16 %v246
      %v391 = vunpack.c.l.b16 %v247
      %v392 = vunpack.c.l.b16 %v248
      %v393 = vunpack.c.l.b16 %v249
      %v394 = vunpack.c.l.b16 %v250
      %v395 = vunpack.c.l.b16 %v251
      %v396 = vunpack.c.l.b16 %v252
      %v397 = vunpack.c.l.b16 %v253
      %v398 = vunpack.c.l.b16 %v254
      %v399 = vunpack.c.l.b16 %v255
      %v400 = vunpack.c.l.b16 %v256
      %v401 = vunpack.c.l.b16 %v257
      %v402 = vunpack.c.l.b16 %v258
      %v403 = vunpack.c.l.b16 %v259
      %v404 = vunpack.c.l.b16 %v260
      %v405 = vunpack.c.l.b16 %v261
      %v406 = vunpack.c.l.b16 %v262
      %v407 = vunpack.c.l.b16 %v263
      %v408 = vunpack.c.l.b16 %v264
      %v409 = vunpack.c.l.b16 %v265
      %v410 = vunpack.c.l.b16 %v266
      %v411 = vunpack.c.l.b16 %v267
      %v412 = vpack.c.b16 %v349, %v348
      %v413 = vpack.c.b16 %v351, %v350
      %v414 = vpack.c.b16 %v353, %v352
      %v415 = vpack.c.b16 %v355, %v354
      %v416 = vpack.c.b16 %v357, %v356
      %v417 = vpack.c.b16 %v359, %v358
      %v418 = vpack.c.b16 %v361, %v360
      %v419 = vpack.c.b16 %v363, %v362
      %v420 = vpack.c.b16 %v365, %v364
      %v421 = vpack.c.b16 %v367, %v366
      %v422 = vpack.c.b16 %v369, %v368
      %v423 = vpack.c.b16 %v371, %v370
      %v424 = vpack.c.b16 %v373, %v372
      %v425 = vpack.c.b16 %v375, %v374
      %v426 = vpack.c.b16 %v377, %v376
      %v427 = vpack.c.b16 %v379, %v378
      %v428 = vpack.c.b16 %v381, %v380
      %v429 = vpack.c.b16 %v383, %v382
      %v430 = vpack.c.b16 %v385, %v384
      %v431 = vpack.c.b16 %v387, %v386
      %v432 = vpack.c.b16 %v389, %v388
      %v433 = vpack.c.b16 %v391, %v390
      %v434 = vpack.c.b16 %v393, %v392
      %v435 = vpack.c.b16 %v395, %v394
      %v436 = vpack.c.b16 %v397, %v396
      %v437 = vpack.c.b16 %v399, %v398
      %v438 = vpack.c.b16 %v401, %v400
      %v439 = vpack.c.b16 %v403, %v402
      %v440 = vpack.c.b16 %v405, %v404
      %v441 = vpack.c.b16 %v407, %v406
      %v442 = vpack.c.b16 %v409, %v408
      %v443 = vpack.c.b16 %v411, %v410
      %v492 = vunpack.c.l.b16 %v268
      %v493 = vunpack.c.l.b16 %v269
      %v494 = vunpack.c.l.b16 %v270
      %v495 = vunpack.c.l.b16 %v271
      %v496 = vunpack.c.l.b16 %v272
      %v497 = vunpack.c.l.b16 %v273
      %v498 = vunpack.c.l.b16 %v274
      %v499 = vunpack.c.l.b16 %v275
      %v500 = vunpack.c.l.b16 %v276
      %v501 = vunpack.c.l.b16 %v277
      %v502 = vunpack.c.l.b16 %v278
      %v503 = vunpack.c.l.b16 %v279
      %v504 = vunpack.c.l.b16 %v280
      %v505 = vunpack.c.l.b16 %v281
      %v506 = vunpack.c.l.b16 %v282
      %v507 = vunpack.c.l.b16 %v283
      %v508 = vpack.c.b16 %v493, %v492
      %v509 = vpack.c.b16 %v495, %v494
      %v510 = vpack.c.b16 %v497, %v496
      %v511 = vpack.c.b16 %v499, %v498
      %v512 = vpack.c.b16 %v501, %v500
      %v513 = vpack.c.b16 %v503, %v502
      %v514 = vpack.c.b16 %v505, %v504
      %v515 = vpack.c.b16 %v507, %v506
      %524 = vmatprep.subr.bf16.mxu0 0
      %525 = vmatpush1.bf16.msra.mxu0 %v508
      %526 = vmatprep.subr.bf16.mxu0 0
      %527 = vmatpush1.bf16.msra.mxu0 %v509
      %528 = vmatprep.subr.bf16.mxu0 0
      %529 = vmatpush1.bf16.msra.mxu0 %v510
      %530 = vmatprep.subr.bf16.mxu0 0
      %531 = vmatpush1.bf16.msra.mxu0 %v511
      %532 = vmatprep.subr.bf16.mxu0 0
      %533 = vmatpush1.bf16.msra.mxu0 %v512
      %534 = vmatprep.subr.bf16.mxu0 0
      %535 = vmatpush1.bf16.msra.mxu0 %v513
      %536 = vmatprep.subr.bf16.mxu0 0
      %537 = vmatpush1.bf16.msra.mxu0 %v514
      %538 = vmatprep.subr.bf16.mxu0 0
      %539 = vmatpush1.bf16.msra.mxu0 %v515
      %540 = vmatprep.subr.bf16.mxu0 0
      %541 = vmatpush1.bf16.msra.mxu0 0
      %542 = vmatprep.subr.bf16.mxu0 0
      %543 = vmatpush1.bf16.msra.mxu0 0
      %544 = vmatprep.subr.bf16.mxu0 0
      %545 = vmatpush1.bf16.msra.mxu0 0
      %546 = vmatprep.subr.bf16.mxu0 0
      %547 = vmatpush1.bf16.msra.mxu0 0
      %548 = vmatprep.subr.bf16.mxu0 0
      %549 = vmatpush1.bf16.msra.mxu0 0
      %550 = vmatprep.subr.bf16.mxu0 0
      %551 = vmatpush1.bf16.msra.mxu0 0
      %552 = vmatprep.subr.bf16.mxu0 0
      %553 = vmatpush1.bf16.msra.mxu0 0
      %554 = vmatprep.subr.bf16.mxu0 0
      %555 = vmatpush1.bf16.msra.mxu0 0
      %556 = vmatprep.mubr.bf16.mxu0 0
      %557 = vmatmul.mubr.bf16.gmra.mrb[0].mxu0 %v412
      %v558 = vpop.f32.mrb[0].mxu0
      %v559 = vadd.f32 0.0, %v558
      %v560 = vpop.f32.mrb[0].mxu0
      %v561 = vpop.f32.mrb[0].mxu0
      %v562 = vadd.f32 0.0, %v561
      %v563 = vpop.f32.mrb[0].mxu0
      %564 = vmatprep.mubr.bf16.mxu0 0
      %565 = vmatmul.mubr.bf16.gmra.mrb[0].mxu0 %v413
      %v566 = vpop.f32.mrb[0].mxu0
      %v567 = vadd.f32 0.0, %v566
      %v568 = vpop.f32.mrb[0].mxu0
      %v569 = vpop.f32.mrb[0].mxu0
      %v570 = vadd.f32 0.0, %v569
      %v571 = vpop.f32.mrb[0].mxu0
      %572 = vmatprep.mubr.bf16.mxu0 0
      %573 = vmatmul.mubr.bf16.gmra.mrb[0].mxu0 %v414
      %v574 = vpop.f32.mrb[0].mxu0
      %v575 = vadd.f32 0.0, %v574
      %v576 = vpop.f32.mrb[0].mxu0
      %v577 = vpop.f32.mrb[0].mxu0
      %v578 = vadd.f32 0.0, %v577
      %v579 = vpop.f32.mrb[0].mxu0
      %580 = vmatprep.mubr.bf16.mxu0 0
      %581 = vmatmul.mubr.bf16.gmra.mrb[0].mxu0 %v415
      %v582 = vpop.f32.mrb[0].mxu0
      %v583 = vadd.f32 0.0, %v582
      %v584 = vpop.f32.mrb[0].mxu0
      %v585 = vpop.f32.mrb[0].mxu0
      %v586 = vadd.f32 0.0, %v585
      %v587 = vpop.f32.mrb[0].mxu0
      %588 = vmatprep.mubr.bf16.mxu0 0
      %589 = vmatmul.mubr.bf16.gmra.mrb[0].mxu0 %v416
      %v590 = vpop.f32.mrb[0].mxu0
      %v591 = vadd.f32 0.0, %v590
      %v592 = vpop.f32.mrb[0].mxu0
      %v593 = vpop.f32.mrb[0].mxu0
      %v594 = vadd.f32 0.0, %v593
      %v595 = vpop.f32.mrb[0].mxu0
      %596 = vmatprep.mubr.bf16.mxu0 0
      %597 = vmatmul.mubr.bf16.gmra.mrb[0].mxu0 %v417
      %v598 = vpop.f32.mrb[0].mxu0
      %v599 = vadd.f32 0.0, %v598
      %v600 = vpop.f32.mrb[0].mxu0
      %v601 = vpop.f32.mrb[0].mxu0
      %v602 = vadd.f32 0.0, %v601
      %v603 = vpop.f32.mrb[0].mxu0
      %604 = vmatprep.mubr.bf16.mxu0 0
      %605 = vmatmul.mubr.bf16.gmra.mrb[0].mxu0 %v418
      %v606 = vpop.f32.mrb[0].mxu0
      %v607 = vadd.f32 0.0, %v606
      %v608 = vpop.f32.mrb[0].mxu0
      %v609 = vpop.f32.mrb[0].mxu0
      %v610 = vadd.f32 0.0, %v609
      %v611 = vpop.f32.mrb[0].mxu0
      %612 = vmatprep.mubr.bf16.mxu0 0
      %613 = vmatmul.mubr.bf16.gmra.mrb[0].mxu0 %v419
      %v614 = vpop.f32.mrb[0].mxu0
      %v615 = vadd.f32 0.0, %v614
      %v616 = vpop.f32.mrb[0].mxu0
      %v617 = vpop.f32.mrb[0].mxu0
      %v618 = vadd.f32 0.0, %v617
      %v619 = vpop.f32.mrb[0].mxu0
      %620 = vmatprep.mubr.bf16.mxu0 0
      %621 = vmatmul.mubr.bf16.gmra.mrb[0].mxu0 %v420
      %v622 = vpop.f32.mrb[0].mxu0
      %v623 = vadd.f32 0.0, %v622
      %v624 = vpop.f32.mrb[0].mxu0
      %v625 = vpop.f32.mrb[0].mxu0
      %v626 = vadd.f32 0.0, %v625
      %v627 = vpop.f32.mrb[0].mxu0
      %628 = vmatprep.mubr.bf16.mxu0 0
      %629 = vmatmul.mubr.bf16.gmra.mrb[0].mxu0 %v421
      %v630 = vpop.f32.mrb[0].mxu0
      %v631 = vadd.f32 0.0, %v630
      %v632 = vpop.f32.mrb[0].mxu0
      %v633 = vpop.f32.mrb[0].mxu0
      %v634 = vadd.f32 0.0, %v633
      %v635 = vpop.f32.mrb[0].mxu0
      %636 = vmatprep.mubr.bf16.mxu0 0
      %637 = vmatmul.mubr.bf16.gmra.mrb[0].mxu0 %v422
      %v638 = vpop.f32.mrb[0].mxu0
      %v639 = vadd.f32 0.0, %v638
      %v640 = vpop.f32.mrb[0].mxu0
      %v641 = vpop.f32.mrb[0].mxu0
      %v642 = vadd.f32 0.0, %v641
      %v643 = vpop.f32.mrb[0].mxu0
      %644 = vmatprep.mubr.bf16.mxu0 0
      %645 = vmatmul.mubr.bf16.gmra.mrb[0].mxu0 %v423
      %v646 = vpop.f32.mrb[0].mxu0
      %v647 = vadd.f32 0.0, %v646
      %v648 = vpop.f32.mrb[0].mxu0
      %v649 = vpop.f32.mrb[0].mxu0
      %v650 = vadd.f32 0.0, %v649
      %v651 = vpop.f32.mrb[0].mxu0
      %652 = vmatprep.mubr.bf16.mxu0 0
      %653 = vmatmul.mubr.bf16.gmra.mrb[0].mxu0 %v424
      %v654 = vpop.f32.mrb[0].mxu0
      %v655 = vadd.f32 0.0, %v654
      %v656 = vpop.f32.mrb[0].mxu0
      %v657 = vpop.f32.mrb[0].mxu0
      %v658 = vadd.f32 0.0, %v657
      %v659 = vpop.f32.mrb[0].mxu0
      %660 = vmatprep.mubr.bf16.mxu0 0
      %661 = vmatmul.mubr.bf16.gmra.mrb[0].mxu0 %v425
      %v662 = vpop.f32.mrb[0].mxu0
      %v663 = vadd.f32 0.0, %v662
      %v664 = vpop.f32.mrb[0].mxu0
      %v665 = vpop.f32.mrb[0].mxu0
      %v666 = vadd.f32 0.0, %v665
      %v667 = vpop.f32.mrb[0].mxu0
      %668 = vmatprep.mubr.bf16.mxu0 0
      %669 = vmatmul.mubr.bf16.gmra.mrb[0].mxu0 %v426
      %v670 = vpop.f32.mrb[0].mxu0
      %v671 = vadd.f32 0.0, %v670
      %v672 = vpop.f32.mrb[0].mxu0
      %v673 = vpop.f32.mrb[0].mxu0
      %v674 = vadd.f32 0.0, %v673
      %v675 = vpop.f32.mrb[0].mxu0
      %676 = vmatprep.mubr.bf16.mxu0 0
      %677 = vmatmul.mubr.bf16.gmra.mrb[0].mxu0 %v427
      %v678 = vpop.f32.mrb[0].mxu0
      %v679 = vadd.f32 0.0, %v678
      %v680 = vpop.f32.mrb[0].mxu0
      %v681 = vpop.f32.mrb[0].mxu0
      %v682 = vadd.f32 0.0, %v681
      %v683 = vpop.f32.mrb[0].mxu0
      %684 = vmatprep.mubr.bf16.mxu0 0
      %685 = vmatmul.mubr.bf16.gmra.mrb[0].mxu0 %v428
      %v686 = vpop.f32.mrb[0].mxu0
      %v687 = vadd.f32 0.0, %v686
      %v688 = vpop.f32.mrb[0].mxu0
      %v689 = vpop.f32.mrb[0].mxu0
      %v690 = vadd.f32 0.0, %v689
      %v691 = vpop.f32.mrb[0].mxu0
      %692 = vmatprep.mubr.bf16.mxu0 0
      %693 = vmatmul.mubr.bf16.gmra.mrb[0].mxu0 %v429
      %v694 = vpop.f32.mrb[0].mxu0
      %v695 = vadd.f32 0.0, %v694
      %v696 = vpop.f32.mrb[0].mxu0
      %v697 = vpop.f32.mrb[0].mxu0
      %v698 = vadd.f32 0.0, %v697
      %v699 = vpop.f32.mrb[0].mxu0
      %700 = vmatprep.mubr.bf16.mxu0 0
      %701 = vmatmul.mubr.bf16.gmra.mrb[0].mxu0 %v430
      %v702 = vpop.f32.mrb[0].mxu0
      %v703 = vadd.f32 0.0, %v702
      %v704 = vpop.f32.mrb[0].mxu0
      %v705 = vpop.f32.mrb[0].mxu0
      %v706 = vadd.f32 0.0, %v705
      %v707 = vpop.f32.mrb[0].mxu0
      %708 = vmatprep.mubr.bf16.mxu0 0
      %709 = vmatmul.mubr.bf16.gmra.mrb[0].mxu0 %v431
      %v710 = vpop.f32.mrb[0].mxu0
      %v711 = vadd.f32 0.0, %v710
      %v712 = vpop.f32.mrb[0].mxu0
      %v713 = vpop.f32.mrb[0].mxu0
      %v714 = vadd.f32 0.0, %v713
      %v715 = vpop.f32.mrb[0].mxu0
      %716 = vmatprep.mubr.bf16.mxu0 0
      %717 = vmatmul.mubr.bf16.gmra.mrb[0].mxu0 %v432
      %v718 = vpop.f32.mrb[0].mxu0
      %v719 = vadd.f32 0.0, %v718
      %v720 = vpop.f32.mrb[0].mxu0
      %v721 = vpop.f32.mrb[0].mxu0
      %v722 = vadd.f32 0.0, %v721
      %v723 = vpop.f32.mrb[0].mxu0
      %724 = vmatprep.mubr.bf16.mxu0 0
      %725 = vmatmul.mubr.bf16.gmra.mrb[0].mxu0 %v433
      %v726 = vpop.f32.mrb[0].mxu0
      %v727 = vadd.f32 0.0, %v726
      %v728 = vpop.f32.mrb[0].mxu0
      %v729 = vpop.f32.mrb[0].mxu0
      %v730 = vadd.f32 0.0, %v729
      %v731 = vpop.f32.mrb[0].mxu0
      %732 = vmatprep.mubr.bf16.mxu0 0
      %733 = vmatmul.mubr.bf16.gmra.mrb[0].mxu0 %v434
      %v734 = vpop.f32.mrb[0].mxu0
      %v735 = vadd.f32 0.0, %v734
      %v736 = vpop.f32.mrb[0].mxu0
      %v737 = vpop.f32.mrb[0].mxu0
      %v738 = vadd.f32 0.0, %v737
      %v739 = vpop.f32.mrb[0].mxu0
      %740 = vmatprep.mubr.bf16.mxu0 0
      %741 = vmatmul.mubr.bf16.gmra.mrb[0].mxu0 %v435
      %v742 = vpop.f32.mrb[0].mxu0
      %v743 = vadd.f32 0.0, %v742
      %v744 = vpop.f32.mrb[0].mxu0
      %v745 = vpop.f32.mrb[0].mxu0
      %v746 = vadd.f32 0.0, %v745
      %v747 = vpop.f32.mrb[0].mxu0
      %748 = vmatprep.mubr.bf16.mxu0 0
      %749 = vmatmul.mubr.bf16.gmra.mrb[0].mxu0 %v436
      %v750 = vpop.f32.mrb[0].mxu0
      %v751 = vadd.f32 0.0, %v750
      %v752 = vpop.f32.mrb[0].mxu0
      %v753 = vpop.f32.mrb[0].mxu0
      %v754 = vadd.f32 0.0, %v753
      %v755 = vpop.f32.mrb[0].mxu0
      %756 = vmatprep.mubr.bf16.mxu0 0
      %757 = vmatmul.mubr.bf16.gmra.mrb[0].mxu0 %v437
      %v758 = vpop.f32.mrb[0].mxu0
      %v759 = vadd.f32 0.0, %v758
      %v760 = vpop.f32.mrb[0].mxu0
      %v761 = vpop.f32.mrb[0].mxu0
      %v762 = vadd.f32 0.0, %v761
      %v763 = vpop.f32.mrb[0].mxu0
      %764 = vmatprep.mubr.bf16.mxu0 0
      %765 = vmatmul.mubr.bf16.gmra.mrb[0].mxu0 %v438
      %v766 = vpop.f32.mrb[0].mxu0
      %v767 = vadd.f32 0.0, %v766
      %v768 = vpop.f32.mrb[0].mxu0
      %v769 = vpop.f32.mrb[0].mxu0
      %v770 = vadd.f32 0.0, %v769
      %v771 = vpop.f32.mrb[0].mxu0
      %772 = vmatprep.mubr.bf16.mxu0 0
      %773 = vmatmul.mubr.bf16.gmra.mrb[0].mxu0 %v439
      %v774 = vpop.f32.mrb[0].mxu0
      %v775 = vadd.f32 0.0, %v774
      %v776 = vpop.f32.mrb[0].mxu0
      %v777 = vpop.f32.mrb[0].mxu0
      %v778 = vadd.f32 0.0, %v777
      %v779 = vpop.f32.mrb[0].mxu0
      %780 = vmatprep.mubr.bf16.mxu0 0
      %781 = vmatmul.mubr.bf16.gmra.mrb[0].mxu0 %v440
      %v782 = vpop.f32.mrb[0].mxu0
      %v783 = vadd.f32 0.0, %v782
      %v784 = vpop.f32.mrb[0].mxu0
      %v785 = vpop.f32.mrb[0].mxu0
      %v786 = vadd.f32 0.0, %v785
      %v787 = vpop.f32.mrb[0].mxu0
      %788 = vmatprep.mubr.bf16.mxu0 0
      %789 = vmatmul.mubr.bf16.gmra.mrb[0].mxu0 %v441
      %v790 = vpop.f32.mrb[0].mxu0
      %v791 = vadd.f32 0.0, %v790
      %v792 = vpop.f32.mrb[0].mxu0
      %v793 = vpop.f32.mrb[0].mxu0
      %v794 = vadd.f32 0.0, %v793
      %v795 = vpop.f32.mrb[0].mxu0
      %796 = vmatprep.mubr.bf16.mxu0 0
      %797 = vmatmul.mubr.bf16.gmra.mrb[0].mxu0 %v442
      %v798 = vpop.f32.mrb[0].mxu0
      %v799 = vadd.f32 0.0, %v798
      %v800 = vpop.f32.mrb[0].mxu0
      %v801 = vpop.f32.mrb[0].mxu0
      %v802 = vadd.f32 0.0, %v801
      %v803 = vpop.f32.mrb[0].mxu0
      %804 = vmatprep.mubr.bf16.mxu0 0
      %805 = vmatmul.mubr.bf16.gmra.mrb[0].mxu0 %v443
      %v806 = vpop.f32.mrb[0].mxu0
      %v807 = vadd.f32 0.0, %v806
      %v808 = vpop.f32.mrb[0].mxu0
      %v809 = vpop.f32.mrb[0].mxu0
      %v810 = vadd.f32 0.0, %v809
      %v811 = vpop.f32.mrb[0].mxu0
      %812 = vdwg.mxu0
      %v813 = vmax.f32 %v559, 0.0
      %v814 = vmax.f32 %v562, 0.0
      %v815 = vmax.f32 %v567, 0.0
      %v816 = vmax.f32 %v570, 0.0
      %v817 = vmax.f32 %v575, 0.0
      %v818 = vmax.f32 %v578, 0.0
      %v819 = vmax.f32 %v583, 0.0
      %v820 = vmax.f32 %v586, 0.0
      %v821 = vmax.f32 %v591, 0.0
      %v822 = vmax.f32 %v594, 0.0
      %v823 = vmax.f32 %v599, 0.0
      %v824 = vmax.f32 %v602, 0.0
      %v825 = vmax.f32 %v607, 0.0
      %v826 = vmax.f32 %v610, 0.0
      %v827 = vmax.f32 %v615, 0.0
      %v828 = vmax.f32 %v618, 0.0
      %v829 = vmax.f32 %v623, 0.0
      %v830 = vmax.f32 %v626, 0.0
      %v831 = vmax.f32 %v631, 0.0
      %v832 = vmax.f32 %v634, 0.0
      %v833 = vmax.f32 %v639, 0.0
      %v834 = vmax.f32 %v642, 0.0
      %v835 = vmax.f32 %v647, 0.0
      %v836 = vmax.f32 %v650, 0.0
      %v837 = vmax.f32 %v655, 0.0
      %v838 = vmax.f32 %v658, 0.0
      %v839 = vmax.f32 %v663, 0.0
      %v840 = vmax.f32 %v666, 0.0
      %v841 = vmax.f32 %v671, 0.0
      %v842 = vmax.f32 %v674, 0.0
      %v843 = vmax.f32 %v679, 0.0
      %v844 = vmax.f32 %v682, 0.0
      %v845 = vmax.f32 %v687, 0.0
      %v846 = vmax.f32 %v690, 0.0
      %v847 = vmax.f32 %v695, 0.0
      %v848 = vmax.f32 %v698, 0.0
      %v849 = vmax.f32 %v703, 0.0
      %v850 = vmax.f32 %v706, 0.0
      %v851 = vmax.f32 %v711, 0.0
      %v852 = vmax.f32 %v714, 0.0
      %v853 = vmax.f32 %v719, 0.0
      %v854 = vmax.f32 %v722, 0.0
      %v855 = vmax.f32 %v727, 0.0
      %v856 = vmax.f32 %v730, 0.0
      %v857 = vmax.f32 %v735, 0.0
      %v858 = vmax.f32 %v738, 0.0
      %v859 = vmax.f32 %v743, 0.0
      %v860 = vmax.f32 %v746, 0.0
      %v861 = vmax.f32 %v751, 0.0
      %v862 = vmax.f32 %v754, 0.0
      %v863 = vmax.f32 %v759, 0.0
      %v864 = vmax.f32 %v762, 0.0
      %v865 = vmax.f32 %v767, 0.0
      %v866 = vmax.f32 %v770, 0.0
      %v867 = vmax.f32 %v775, 0.0
      %v868 = vmax.f32 %v778, 0.0
      %v869 = vmax.f32 %v783, 0.0
      %v870 = vmax.f32 %v786, 0.0
      %v871 = vmax.f32 %v791, 0.0
      %v872 = vmax.f32 %v794, 0.0
      %v873 = vmax.f32 %v799, 0.0
      %v874 = vmax.f32 %v802, 0.0
      %v875 = vmax.f32 %v807, 0.0
      %v876 = vmax.f32 %v810, 0.0
      %v877 = vpack.c.bf16 %v814, %v813
      %v878 = vpack.c.bf16 %v816, %v815
      %v879 = vpack.c.bf16 %v818, %v817
      %v880 = vpack.c.bf16 %v820, %v819
      %v881 = vpack.c.bf16 %v822, %v821
      %v882 = vpack.c.bf16 %v824, %v823
      %v883 = vpack.c.bf16 %v826, %v825
      %v884 = vpack.c.bf16 %v828, %v827
      %v885 = vpack.c.bf16 %v830, %v829
      %v886 = vpack.c.bf16 %v832, %v831
      %v887 = vpack.c.bf16 %v834, %v833
      %v888 = vpack.c.bf16 %v836, %v835
      %v889 = vpack.c.bf16 %v838, %v837
      %v890 = vpack.c.bf16 %v840, %v839
      %v891 = vpack.c.bf16 %v842, %v841
      %v892 = vpack.c.bf16 %v844, %v843
      %v893 = vpack.c.bf16 %v846, %v845
      %v894 = vpack.c.bf16 %v848, %v847
      %v895 = vpack.c.bf16 %v850, %v849
      %v896 = vpack.c.bf16 %v852, %v851
      %v897 = vpack.c.bf16 %v854, %v853
      %v898 = vpack.c.bf16 %v856, %v855
      %v899 = vpack.c.bf16 %v858, %v857
      %v900 = vpack.c.bf16 %v860, %v859
      %v901 = vpack.c.bf16 %v862, %v861
      %v902 = vpack.c.bf16 %v864, %v863
      %v903 = vpack.c.bf16 %v866, %v865
      %v904 = vpack.c.bf16 %v868, %v867
      %v905 = vpack.c.bf16 %v870, %v869
      %v906 = vpack.c.bf16 %v872, %v871
      %v907 = vpack.c.bf16 %v874, %v873
      %v908 = vpack.c.bf16 %v876, %v875
      %v941 = vunpack.c.l.b16 %v877
      %v942 = vunpack.c.h.b16 %v877
      %v943 = vunpack.c.l.b16 %v878
      %v944 = vunpack.c.h.b16 %v878
      %v945 = vunpack.c.l.b16 %v879
      %v946 = vunpack.c.h.b16 %v879
      %v947 = vunpack.c.l.b16 %v880
      %v948 = vunpack.c.h.b16 %v880
      %v949 = vunpack.c.l.b16 %v881
      %v950 = vunpack.c.h.b16 %v881
      %v951 = vunpack.c.l.b16 %v882
      %v952 = vunpack.c.h.b16 %v882
      %v953 = vunpack.c.l.b16 %v883
      %v954 = vunpack.c.h.b16 %v883
      %v955 = vunpack.c.l.b16 %v884
      %v956 = vunpack.c.h.b16 %v884
      %v957 = vunpack.c.l.b16 %v885
      %v958 = vunpack.c.h.b16 %v885
      %v959 = vunpack.c.l.b16 %v886
      %v960 = vunpack.c.h.b16 %v886
      %v961 = vunpack.c.l.b16 %v887
      %v962 = vunpack.c.h.b16 %v887
      %v963 = vunpack.c.l.b16 %v888
      %v964 = vunpack.c.h.b16 %v888
      %v965 = vunpack.c.l.b16 %v889
      %v966 = vunpack.c.h.b16 %v889
      %v967 = vunpack.c.l.b16 %v890
      %v968 = vunpack.c.h.b16 %v890
      %v969 = vunpack.c.l.b16 %v891
      %v970 = vunpack.c.h.b16 %v891
      %v971 = vunpack.c.l.b16 %v892
      %v972 = vunpack.c.h.b16 %v892
      %v973 = vunpack.c.l.b16 %v893
      %v974 = vunpack.c.h.b16 %v893
      %v975 = vunpack.c.l.b16 %v894
      %v976 = vunpack.c.h.b16 %v894
      %v977 = vunpack.c.l.b16 %v895
      %v978 = vunpack.c.h.b16 %v895
      %v979 = vunpack.c.l.b16 %v896
      %v980 = vunpack.c.h.b16 %v896
      %v981 = vunpack.c.l.b16 %v897
      %v982 = vunpack.c.h.b16 %v897
      %v983 = vunpack.c.l.b16 %v898
      %v984 = vunpack.c.h.b16 %v898
      %v985 = vunpack.c.l.b16 %v899
      %v986 = vunpack.c.h.b16 %v899
      %v987 = vunpack.c.l.b16 %v900
      %v988 = vunpack.c.h.b16 %v900
      %v989 = vunpack.c.l.b16 %v901
      %v990 = vunpack.c.h.b16 %v901
      %v991 = vunpack.c.l.b16 %v902
      %v992 = vunpack.c.h.b16 %v902
      %v993 = vunpack.c.l.b16 %v903
      %v994 = vunpack.c.h.b16 %v903
      %v995 = vunpack.c.l.b16 %v904
      %v996 = vunpack.c.h.b16 %v904
      %v997 = vunpack.c.l.b16 %v905
      %v998 = vunpack.c.h.b16 %v905
      %v999 = vunpack.c.l.b16 %v906
      %v1000 = vunpack.c.h.b16 %v906
      %v1001 = vunpack.c.l.b16 %v907
      %v1002 = vunpack.c.h.b16 %v907
      %v1003 = vunpack.c.l.b16 %v908
      %v1004 = vunpack.c.h.b16 %v908
      %v1005 = vpack.c.b16 %v941, %v941
      %v1006 = vpack.c.b16 %v942, %v942
      %v1007 = vpack.c.b16 %v943, %v943
      %v1008 = vpack.c.b16 %v944, %v944
      %v1009 = vpack.c.b16 %v945, %v945
      %v1010 = vpack.c.b16 %v946, %v946
      %v1011 = vpack.c.b16 %v947, %v947
      %v1012 = vpack.c.b16 %v948, %v948
      %v1013 = vpack.c.b16 %v949, %v949
      %v1014 = vpack.c.b16 %v950, %v950
      %v1015 = vpack.c.b16 %v951, %v951
      %v1016 = vpack.c.b16 %v952, %v952
      %v1017 = vpack.c.b16 %v953, %v953
      %v1018 = vpack.c.b16 %v954, %v954
      %v1019 = vpack.c.b16 %v955, %v955
      %v1020 = vpack.c.b16 %v956, %v956
      %v1021 = vpack.c.b16 %v957, %v957
      %v1022 = vpack.c.b16 %v958, %v958
      %v1023 = vpack.c.b16 %v959, %v959
      %v1024 = vpack.c.b16 %v960, %v960
      %v1025 = vpack.c.b16 %v961, %v961
      %v1026 = vpack.c.b16 %v962, %v962
      %v1027 = vpack.c.b16 %v963, %v963
      %v1028 = vpack.c.b16 %v964, %v964
      %v1029 = vpack.c.b16 %v965, %v965
      %v1030 = vpack.c.b16 %v966, %v966
      %v1031 = vpack.c.b16 %v967, %v967
      %v1032 = vpack.c.b16 %v968, %v968
      %v1033 = vpack.c.b16 %v969, %v969
      %v1034 = vpack.c.b16 %v970, %v970
      %v1035 = vpack.c.b16 %v971, %v971
      %v1036 = vpack.c.b16 %v972, %v972
      %v1037 = vpack.c.b16 %v973, %v973
      %v1038 = vpack.c.b16 %v974, %v974
      %v1039 = vpack.c.b16 %v975, %v975
      %v1040 = vpack.c.b16 %v976, %v976
      %v1041 = vpack.c.b16 %v977, %v977
      %v1042 = vpack.c.b16 %v978, %v978
      %v1043 = vpack.c.b16 %v979, %v979
      %v1044 = vpack.c.b16 %v980, %v980
      %v1045 = vpack.c.b16 %v981, %v981
      %v1046 = vpack.c.b16 %v982, %v982
      %v1047 = vpack.c.b16 %v983, %v983
      %v1048 = vpack.c.b16 %v984, %v984
      %v1049 = vpack.c.b16 %v985, %v985
      %v1050 = vpack.c.b16 %v986, %v986
      %v1051 = vpack.c.b16 %v987, %v987
      %v1052 = vpack.c.b16 %v988, %v988
      %v1053 = vpack.c.b16 %v989, %v989
      %v1054 = vpack.c.b16 %v990, %v990
      %v1055 = vpack.c.b16 %v991, %v991
      %v1056 = vpack.c.b16 %v992, %v992
      %v1057 = vpack.c.b16 %v993, %v993
      %v1058 = vpack.c.b16 %v994, %v994
      %v1059 = vpack.c.b16 %v995, %v995
      %v1060 = vpack.c.b16 %v996, %v996
      %v1061 = vpack.c.b16 %v997, %v997
      %v1062 = vpack.c.b16 %v998, %v998
      %v1063 = vpack.c.b16 %v999, %v999
      %v1064 = vpack.c.b16 %v1000, %v1000
      %v1065 = vpack.c.b16 %v1001, %v1001
      %v1066 = vpack.c.b16 %v1002, %v1002
      %v1067 = vpack.c.b16 %v1003, %v1003
      %v1068 = vpack.c.b16 %v1004, %v1004
      %1133 = vst [vmem:[%s201] sm:$0xf] %v1005
      %1134 = vst [vmem:[%s201 + $0x4] sm:$0xf] %v1006
      %1135 = vst [vmem:[%s201 + $0x8] sm:$0xf] %v1007
      %1136 = vst [vmem:[%s201 + $0xc] sm:$0xf] %v1008
      %1137 = vst [vmem:[%s201 + $0x10] sm:$0xf] %v1009
      %1138 = vst [vmem:[%s201 + $0x14] sm:$0xf] %v1010
      %1139 = vst [vmem:[%s201 + $0x18] sm:$0xf] %v1011
      %1140 = vst [vmem:[%s201 + $0x1c] sm:$0xf] %v1012
      %1141 = vst [vmem:[%s201 + $0x20] sm:$0xf] %v1013
      %1142 = vst [vmem:[%s201 + $0x24] sm:$0xf] %v1014
      %1143 = vst [vmem:[%s201 + $0x28] sm:$0xf] %v1015
      %1144 = vst [vmem:[%s201 + $0x2c] sm:$0xf] %v1016
      %1145 = vst [vmem:[%s201 + $0x30] sm:$0xf] %v1017
      %1146 = vst [vmem:[%s201 + $0x34] sm:$0xf] %v1018
      %1147 = vst [vmem:[%s201 + $0x38] sm:$0xf] %v1019
      %1148 = vst [vmem:[%s201 + $0x3c] sm:$0xf] %v1020
      %1149 = vst [vmem:[%s201 + $0x40] sm:$0xf] %v1021
      %1150 = vst [vmem:[%s201 + $0x44] sm:$0xf] %v1022
      %1151 = vst [vmem:[%s201 + $0x48] sm:$0xf] %v1023
      %1152 = vst [vmem:[%s201 + $0x4c] sm:$0xf] %v1024
      %1153 = vst [vmem:[%s201 + $0x50] sm:$0xf] %v1025
      %1154 = vst [vmem:[%s201 + $0x54] sm:$0xf] %v1026
      %1155 = vst [vmem:[%s201 + $0x58] sm:$0xf] %v1027
      %1156 = vst [vmem:[%s201 + $0x5c] sm:$0xf] %v1028
      %1157 = vst [vmem:[%s201 + $0x60] sm:$0xf] %v1029
      %1158 = vst [vmem:[%s201 + $0x64] sm:$0xf] %v1030
      %1159 = vst [vmem:[%s201 + $0x68] sm:$0xf] %v1031
      %1160 = vst [vmem:[%s201 + $0x6c] sm:$0xf] %v1032
      %1161 = vst [vmem:[%s201 + $0x70] sm:$0xf] %v1033
      %1162 = vst [vmem:[%s201 + $0x74] sm:$0xf] %v1034
      %1163 = vst [vmem:[%s201 + $0x78] sm:$0xf] %v1035
      %1164 = vst [vmem:[%s201 + $0x7c] sm:$0xf] %v1036
      %1165 = vst [vmem:[%s201 + $0x80] sm:$0xf] %v1037
      %1166 = vst [vmem:[%s201 + $0x84] sm:$0xf] %v1038
      %1167 = vst [vmem:[%s201 + $0x88] sm:$0xf] %v1039
      %1168 = vst [vmem:[%s201 + $0x8c] sm:$0xf] %v1040
      %1169 = vst [vmem:[%s201 + $0x90] sm:$0xf] %v1041
      %1170 = vst [vmem:[%s201 + $0x94] sm:$0xf] %v1042
      %1171 = vst [vmem:[%s201 + $0x98] sm:$0xf] %v1043
      %1172 = vst [vmem:[%s201 + $0x9c] sm:$0xf] %v1044
      %1173 = vst [vmem:[%s201 + $0xa0] sm:$0xf] %v1045
      %1174 = vst [vmem:[%s201 + $0xa4] sm:$0xf] %v1046
      %1175 = vst [vmem:[%s201 + $0xa8] sm:$0xf] %v1047
      %1176 = vst [vmem:[%s201 + $0xac] sm:$0xf] %v1048
      %1177 = vst [vmem:[%s201 + $0xb0] sm:$0xf] %v1049
      %1178 = vst [vmem:[%s201 + $0xb4] sm:$0xf] %v1050
      %1179 = vst [vmem:[%s201 + $0xb8] sm:$0xf] %v1051
      %1180 = vst [vmem:[%s201 + $0xbc] sm:$0xf] %v1052
      %1181 = vst [vmem:[%s201 + $0xc0] sm:$0xf] %v1053
      %1182 = vst [vmem:[%s201 + $0xc4] sm:$0xf] %v1054
      %1183 = vst [vmem:[%s201 + $0xc8] sm:$0xf] %v1055
      %1184 = vst [vmem:[%s201 + $0xcc] sm:$0xf] %v1056
      %1185 = vst [vmem:[%s201 + $0xd0] sm:$0xf] %v1057
      %1186 = vst [vmem:[%s201 + $0xd4] sm:$0xf] %v1058
      %1187 = vst [vmem:[%s201 + $0xd8] sm:$0xf] %v1059
      %1188 = vst [vmem:[%s201 + $0xdc] sm:$0xf] %v1060
      %1189 = vst [vmem:[%s201 + $0xe0] sm:$0xf] %v1061
      %1190 = vst [vmem:[%s201 + $0xe4] sm:$0xf] %v1062
      %1191 = vst [vmem:[%s201 + $0xe8] sm:$0xf] %v1063
      %1192 = vst [vmem:[%s201 + $0xec] sm:$0xf] %v1064
      %1193 = vst [vmem:[%s201 + $0xf0] sm:$0xf] %v1065
      %1194 = vst [vmem:[%s201 + $0xf4] sm:$0xf] %v1066
      %1195 = vst [vmem:[%s201 + $0xf8] sm:$0xf] %v1067
      %1196 = vst [vmem:[%s201 + $0xfc] sm:$0xf] %v1068
      %s1197 = smul.u32 64, %s18
      %p1198 = scmp.lt.s32.totalorder %s17, 3
      %s1199 = scalar_select %p1198, %s17, 3
      %p1200 = scmp.lt.s32.totalorder %s1197, 63
      %s1201 = scalar_select %p1200, %s1197, 63
      %s1202 = smul.addr %s1199, 64
      %s1203 = sadd.s32 %s1201, %s1202
      %s1204 = smul.addr %s1203, 4
      %s1205 = scalar_lea.vmem %s2, %s1204
      // Predicated region
      $region29: #{generator_forward.8} parent=27 // pred_check
        %p1206 = pneg %p99
      $region30: #{generator_forward.8} parent=27 // pred_check_branch
        %1208 = sbr.rel (%p1206) target = $region32
      $region31: #{generator_forward.8} parent=27 // pred_region
        %s1209 = smul.u32 64, %s18
      $region32: #{generator_forward.8} parent=27 // pred_fallthru
        _
    $region28: #{generator_forward.8} parent=5 // pred_fallthru
      _
    %p1210 = scmp.le.s32.totalorder 2, %s8
    // Predicated region
    $region33: #{generator_forward.8} parent=5 // pred_check
      %p1211 = pneg %p1210
    $region34: #{generator_forward.8} parent=5 // pred_check_branch
      %1213 = sbr.rel (%p1211) target = $region36
    $region35: #{generator_forward.8} parent=5 // pred_region
      %s1214 = ssub.s32 %s8, 2
      // Predicated region
      $region37: #{generator_forward.8} parent=35 // pred_check
        %p1215 = pneg %p105
      $region38: #{generator_forward.8} parent=35 // pred_check_branch
        %1217 = sbr.rel (%p1215) target = $region40
      $region39: #{generator_forward.8} parent=35 // pred_region
        %s1218 = smul.u32 64, %s20
        %p1219 = scmp.lt.s32.totalorder %s19, 3
        %s1220 = scalar_select %p1219, %s19, 3
        %p1221 = scmp.lt.s32.totalorder %s1218, 63
        %s1222 = scalar_select %p1221, %s1218, 63
        %s1223 = smul.addr %s1220, 64
        %s1224 = sadd.s32 %s1222, %s1223
        %s1225 = smul.addr %s1224, 4
        %s1226 = scalar_lea.vmem %s2, %s1225
      $region40: #{generator_forward.8} parent=35 // pred_fallthru
        _
    $region36: #{generator_forward.8} parent=5 // pred_fallthru
      _
  $region6: #{generator_forward.8} parent=0 // loop_footer
    %s12 = sadd.s32 1, %s8
  $region7: #{generator_forward.8} parent=0 // loop_footer_branch
    %7 = sbr.rel target = $region3
  $region8: #{generator_forward.8} parent=0 // loop_exit
    _

// kernel: generator_forward.9
$region0: #{generator_forward.9}
  #allocation0 [shape = 'u32[]', space=smem, size = 0x4, offset = 0x4, fixed_abs, tag = 'smem constant byte address 0x4 - core index']
  #allocation1 [shape = 'u32[144,128]{1,0:T(1,128)}', space=vmem, size = 0x12000, scoped, tag = 'internal scratch']
  %s0 = inlined_call_operand.vmem [shape: bf16[4,2048,128], index: 0, kind: input, shape index: {}]
  %s1 = inlined_call_operand.vmem [shape: bf16[4,128,128], index: 1, kind: input, shape index: {}]
  %s2 = inlined_call_operand.vmem [shape: f32[1,128], index: 2, kind: input, shape index: {}]
  %s3 = inlined_call_operand.vmem [shape: f32[4,2048,128], index: 3, kind: output, shape index: {}]
  %s4 = sld [smem:[#allocation0]]
  $region45: #{generator_forward.9} parent=0
    _
  %s6 = ssub.s32 1, %s4
  %s7 = scalar_select 0, %s6, %s4
  loop: start=0, step=1, limit=18
  $region2: #{generator_forward.9} parent=0 // loop_pre_header
    _
  $region3: #{generator_forward.9} parent=0 // loop_header
    %s9 = sphi 0, %s13
    %p10 = scmp.ge.s32.totalorder %s9, 18
    %s16 = sphi 0, %s28
    %s17 = sphi 0, %s24
    %s18 = sphi 0, %s16
    %s19 = sphi 0, %s17
    %s20 = sphi 0, %s18
    %s21 = sphi 0, %s19
    %s33 = sphi 0, %s35
    %s36 = sphi 0, %s33
    %s37 = sphi 0, %s36
    %s53 = sphi 0, %s37
    %s59 = sphi 0, %s61
    %s62 = sphi 0, %s59
    %s63 = sphi 0, %s62
    %s79 = sphi 0, %s63
    %s83 = sphi 0, %s83
    %s85 = sphi 0, %s83
    %s86 = sphi 0, %s85
    %s100 = sphi 0, %s86
    %s108 = sphi 0, %s110
    %s111 = sphi 0, %s108
    %s112 = sphi 0, %s111
    %s128 = sphi 0, %s112
  $region4: #{generator_forward.9} parent=0 // loop_header_branch
    %12 = sbr.rel (%p10) target = $region8
  $region5: #{generator_forward.9} parent=0 // loop_body
    %s14 = ssub.s32 %s9, 1
    %s15 = ssub.s32 %s9, 2
    %s22 = sadd.s32 1, %s17
    %p23 = scmp.ge.s32.totalorder %s22, 4
    %s24 = scalar_select %p23, 0, %s22
    %s25 = sadd.s32 1, %s16
    %s26 = scalar_select %p23, %s25, %s16
    %p27 = scmp.ge.s32.totalorder %s26, 4
    %s28 = scalar_select %p27, 0, %s26
    %s29 = ssub.s32 %s16, %s28
    %s30 = ssub.s32 %s17, %s24
    %s31 = sor.u32 %s29, %s30
    %p32 = scmp.eq.s32.totalorder %s31, 0
    %s34 = sadd.s32 %s33, 1
    %s35 = scalar_select %p32, %s33, %s34
    %p38 = pneg %p32
    %p39 = scmp.eq.s32.totalorder %s9, 15
    %p40 = por %p38, %p39
    %p41 = scmp.ne.s32.totalorder %s33, %s36
    %p42 = scmp.eq.s32.totalorder %s9, 0
    %p43 = por %p41, %p42
    %p44 = scmp.ne.s32.totalorder %s33, %s36
    %p45 = scmp.eq.s32.totalorder %s14, 15
    %p46 = por %p44, %p45
    %p47 = scmp.ne.s32.totalorder %s36, %s37
    %p48 = scmp.eq.s32.totalorder %s14, 0
    %p49 = por %p47, %p48
    %p50 = scmp.ne.s32.totalorder %s36, %s37
    %p51 = scmp.eq.s32.totalorder %s15, 15
    %p52 = por %p50, %p51
    %p54 = scmp.ne.s32.totalorder %s37, %s53
    %p55 = scmp.eq.s32.totalorder %s15, 0
    %p56 = por %p54, %p55
    %s57 = ssub.s32 %s16, %s28
    %p58 = scmp.eq.s32.totalorder %s57, 0
    %s60 = sadd.s32 %s59, 1
    %s61 = scalar_select %p58, %s59, %s60
    %p64 = pneg %p58
    %p65 = scmp.eq.s32.totalorder %s9, 15
    %p66 = por %p64, %p65
    %p67 = scmp.ne.s32.totalorder %s59, %s62
    %p68 = scmp.eq.s32.totalorder %s9, 0
    %p69 = por %p67, %p68
    %p70 = scmp.ne.s32.totalorder %s59, %s62
    %p71 = scmp.eq.s32.totalorder %s14, 15
    %p72 = por %p70, %p71
    %p73 = scmp.ne.s32.totalorder %s62, %s63
    %p74 = scmp.eq.s32.totalorder %s14, 0
    %p75 = por %p73, %p74
    %p76 = scmp.ne.s32.totalorder %s62, %s63
    %p77 = scmp.eq.s32.totalorder %s15, 15
    %p78 = por %p76, %p77
    %p80 = scmp.ne.s32.totalorder %s63, %s79
    %p81 = scmp.eq.s32.totalorder %s15, 0
    %p82 = por %p80, %p81
    %s84 = sadd.s32 %s83, 1
    %p87 = scmp.eq.s32.totalorder %s9, 15
    %p88 = scmp.ne.s32.totalorder %s83, %s85
    %p89 = scmp.eq.s32.totalorder %s9, 0
    %p90 = por %p88, %p89
    %p91 = scmp.ne.s32.totalorder %s83, %s85
    %p92 = scmp.eq.s32.totalorder %s14, 15
    %p93 = por %p91, %p92
    %p94 = scmp.ne.s32.totalorder %s85, %s86
    %p95 = scmp.eq.s32.totalorder %s14, 0
    %p96 = por %p94, %p95
    %p97 = scmp.ne.s32.totalorder %s85, %s86
    %p98 = scmp.eq.s32.totalorder %s15, 15
    %p99 = por %p97, %p98
    %p101 = scmp.ne.s32.totalorder %s86, %s100
    %p102 = scmp.eq.s32.totalorder %s15, 0
    %p103 = por %p101, %p102
    %s104 = ssub.s32 %s16, %s28
    %s105 = ssub.s32 %s17, %s24
    %s106 = sor.u32 %s104, %s105
    %p107 = scmp.eq.s32.totalorder %s106, 0
    %s109 = sadd.s32 %s108, 1
    %s110 = scalar_select %p107, %s108, %s109
    %p113 = pneg %p107
    %p114 = scmp.eq.s32.totalorder %s9, 15
    %p115 = por %p113, %p114
    %p116 = scmp.ne.s32.totalorder %s108, %s111
    %p117 = scmp.eq.s32.totalorder %s9, 0
    %p118 = por %p116, %p117
    %p119 = scmp.ne.s32.totalorder %s108, %s111
    %p120 = scmp.eq.s32.totalorder %s14, 15
    %p121 = por %p119, %p120
    %p122 = scmp.ne.s32.totalorder %s111, %s112
    %p123 = scmp.eq.s32.totalorder %s14, 0
    %p124 = por %p122, %p123
    %p125 = scmp.ne.s32.totalorder %s111, %s112
    %p126 = scmp.eq.s32.totalorder %s15, 15
    %p127 = por %p125, %p126
    %p129 = scmp.ne.s32.totalorder %s112, %s128
    %p130 = scmp.eq.s32.totalorder %s15, 0
    %p131 = por %p129, %p130
    %p132 = scmp.le.s32.totalorder 1, %s9
    %p133 = scmp.lt.s32.totalorder %s9, 17
    %p134 = pnand %p132, %p133
    %p135 = pneg %p134
    // Predicated region
    $region9: #{generator_forward.9} parent=5 // pred_check
      _
    $region10: #{generator_forward.9} parent=5 // pred_check_branch
      %137 = sbr.rel (%p134) target = $region12
    $region11: #{generator_forward.9} parent=5 // pred_region
      %s138 = ssub.s32 %s9, 1
      // Predicated region
      $region13: #{generator_forward.9} parent=11 // pred_check
        %p139 = pneg %p96
      $region14: #{generator_forward.9} parent=11 // pred_check_branch
        %141 = sbr.rel (%p139) target = $region16
      $region15: #{generator_forward.9} parent=11 // pred_region
        _
      $region16: #{generator_forward.9} parent=11 // pred_fallthru
        _
    $region12: #{generator_forward.9} parent=5 // pred_fallthru
      _
    %p142 = scmp.lt.s32.totalorder %s9, 16
    // Predicated region
    $region17: #{generator_forward.9} parent=5 // pred_check
      %p143 = pneg %p142
    $region18: #{generator_forward.9} parent=5 // pred_check_branch
      %145 = sbr.rel (%p143) target = $region20
    $region19: #{generator_forward.9} parent=5 // pred_region
      // Predicated region
      $region21: #{generator_forward.9} parent=19 // pred_check
        %p146 = pneg %p43
      $region22: #{generator_forward.9} parent=19 // pred_check_branch
        %148 = sbr.rel (%p146) target = $region24
      $region23: #{generator_forward.9} parent=19 // pred_region
        %s149 = smul.u32 64, %s17
        %p150 = scmp.lt.s32.totalorder %s16, 3
        %s151 = scalar_select %p150, %s16, 3
        %p152 = scmp.lt.s32.totalorder %s149, 255
        %s153 = scalar_select %p152, %s149, 255
        %s154 = smul.addr %s151, 256
        %s155 = sadd.s32 %s153, %s154
        %s156 = smul.addr %s155, 4
        %s157 = scalar_lea.vmem %s0, %s156
        %s158 = smul.u32 64, %s17
      $region24: #{generator_forward.9} parent=19 // pred_fallthru
        _
      // Predicated region
      $region25: #{generator_forward.9} parent=19 // pred_check
        %p159 = pneg %p69
      $region26: #{generator_forward.9} parent=19 // pred_check_branch
        %161 = sbr.rel (%p159) target = $region28
      $region27: #{generator_forward.9} parent=19 // pred_region
        %p162 = scmp.lt.s32.totalorder %s16, 3
        %s163 = scalar_select %p162, %s16, 3
        %s164 = smul.addr %s163, 16
        %s165 = smul.addr %s164, 4
        %s166 = scalar_lea.vmem %s1, %s165
      $region28: #{generator_forward.9} parent=19 // pred_fallthru
        _
    $region20: #{generator_forward.9} parent=5 // pred_fallthru
      _
    %p167 = scmp.le.s32.totalorder 1, %s9
    %p168 = scmp.lt.s32.totalorder %s9, 17
    %p169 = pnand %p167, %p168
    %p170 = pneg %p169
    // Predicated region
    $region29: #{generator_forward.9} parent=5 // pred_check
      _
    $region30: #{generator_forward.9} parent=5 // pred_check_branch
      %172 = sbr.rel (%p169) target = $region32
    $region31: #{generator_forward.9} parent=5 // pred_region
      %s173 = ssub.s32 %s9, 1
      %s174 = smul.u32 64, %s19
      %p175 = scmp.lt.s32.totalorder %s18, 3
      %s176 = scalar_select %p175, %s18, 3
      %p177 = scmp.lt.s32.totalorder %s174, 255
      %s178 = scalar_select %p177, %s174, 255
      %s179 = smul.addr %s176, 256
      %s180 = sadd.s32 %s178, %s179
      %s181 = smul.addr %s180, 4
      %s182 = scalar_lea.vmem %s0, %s181
      %p183 = pneg %p49
      %p184 = pneg %p46
      %p185 = scmp.lt.s32.totalorder %s18, 3
      %s186 = scalar_select %p185, %s18, 3
      %s187 = smul.addr %s186, 16
      %s188 = smul.addr %s187, 4
      %s189 = scalar_lea.vmem %s1, %s188
      %p190 = pneg %p75
      %p191 = pneg %p72
      %p192 = pneg %p96
      %p193 = pneg %p93
      %p194 = pneg %p124
      %p195 = pneg %p121
      %s196 = smul.u32 64, %s19
      %p197 = scmp.lt.s32.totalorder %s18, 3
      %s198 = scalar_select %p197, %s18, 3
      %p199 = scmp.lt.s32.totalorder %s196, 255
      %s200 = scalar_select %p199, %s196, 255
      %s201 = smul.addr %s198, 256
      %s202 = sadd.s32 %s200, %s201
      %s203 = smul.addr %s202, 8
      %s204 = scalar_lea.vmem %s3, %s203
      %s205 = smul.u32 64, %s19
      %p206 = scmp.lt.s32.totalorder %s18, 3
      %s207 = scalar_select %p206, %s18, 3
      %p208 = scmp.lt.s32.totalorder %s205, 255
      %s209 = scalar_select %p208, %s205, 255
      %s210 = smul.addr %s207, 256
      %s211 = sadd.s32 %s209, %s210
      %s212 = smul.addr %s211, 4
      %s213 = scalar_lea.vmem %s0, %s212
      %s214 = smul.u32 64, %s19
      %p215 = scmp.lt.s32.totalorder %s18, 3
      %s216 = scalar_select %p215, %s18, 3
      %s217 = smul.addr %s216, 16
      %s218 = smul.addr %s217, 4
      %s219 = scalar_lea.vmem %s1, %s218
      %s220 = smul.u32 64, %s19
      %p221 = scmp.lt.s32.totalorder %s18, 3
      %s222 = scalar_select %p221, %s18, 3
      %p223 = scmp.lt.s32.totalorder %s220, 255
      %s224 = scalar_select %p223, %s220, 255
      %s225 = smul.addr %s222, 256
      %s226 = sadd.s32 %s224, %s225
      %s227 = smul.addr %s226, 8
      %s228 = scalar_lea.vmem %s3, %s227
      %s229 = smul.u32 64, %s19
      %v231 = vld [vmem:[%s213] sm:$0xf]
      %v232 = vld [vmem:[%s213 + $0x4] sm:$0xf]
      %v233 = vld [vmem:[%s213 + $0x8] sm:$0xf]
      %v234 = vld [vmem:[%s213 + $0xc] sm:$0xf]
      %v235 = vld [vmem:[%s213 + $0x10] sm:$0xf]
      %v236 = vld [vmem:[%s213 + $0x14] sm:$0xf]
      %v237 = vld [vmem:[%s213 + $0x18] sm:$0xf]
      %v238 = vld [vmem:[%s213 + $0x1c] sm:$0xf]
      %v239 = vld [vmem:[%s213 + $0x20] sm:$0xf]
      %v240 = vld [vmem:[%s213 + $0x24] sm:$0xf]
      %v241 = vld [vmem:[%s213 + $0x28] sm:$0xf]
      %v242 = vld [vmem:[%s213 + $0x2c] sm:$0xf]
      %v243 = vld [vmem:[%s213 + $0x30] sm:$0xf]
      %v244 = vld [vmem:[%s213 + $0x34] sm:$0xf]
      %v245 = vld [vmem:[%s213 + $0x38] sm:$0xf]
      %v246 = vld [vmem:[%s213 + $0x3c] sm:$0xf]
      %v247 = vld [vmem:[%s213 + $0x40] sm:$0xf]
      %v248 = vld [vmem:[%s213 + $0x44] sm:$0xf]
      %v249 = vld [vmem:[%s213 + $0x48] sm:$0xf]
      %v250 = vld [vmem:[%s213 + $0x4c] sm:$0xf]
      %v251 = vld [vmem:[%s213 + $0x50] sm:$0xf]
      %v252 = vld [vmem:[%s213 + $0x54] sm:$0xf]
      %v253 = vld [vmem:[%s213 + $0x58] sm:$0xf]
      %v254 = vld [vmem:[%s213 + $0x5c] sm:$0xf]
      %v255 = vld [vmem:[%s213 + $0x60] sm:$0xf]
      %v256 = vld [vmem:[%s213 + $0x64] sm:$0xf]
      %v257 = vld [vmem:[%s213 + $0x68] sm:$0xf]
      %v258 = vld [vmem:[%s213 + $0x6c] sm:$0xf]
      %v259 = vld [vmem:[%s213 + $0x70] sm:$0xf]
      %v260 = vld [vmem:[%s213 + $0x74] sm:$0xf]
      %v261 = vld [vmem:[%s213 + $0x78] sm:$0xf]
      %v262 = vld [vmem:[%s213 + $0x7c] sm:$0xf]
      %v263 = vld [vmem:[%s213 + $0x80] sm:$0xf]
      %v264 = vld [vmem:[%s213 + $0x84] sm:$0xf]
      %v265 = vld [vmem:[%s213 + $0x88] sm:$0xf]
      %v266 = vld [vmem:[%s213 + $0x8c] sm:$0xf]
      %v267 = vld [vmem:[%s213 + $0x90] sm:$0xf]
      %v268 = vld [vmem:[%s213 + $0x94] sm:$0xf]
      %v269 = vld [vmem:[%s213 + $0x98] sm:$0xf]
      %v270 = vld [vmem:[%s213 + $0x9c] sm:$0xf]
      %v271 = vld [vmem:[%s213 + $0xa0] sm:$0xf]
      %v272 = vld [vmem:[%s213 + $0xa4] sm:$0xf]
      %v273 = vld [vmem:[%s213 + $0xa8] sm:$0xf]
      %v274 = vld [vmem:[%s213 + $0xac] sm:$0xf]
      %v275 = vld [vmem:[%s213 + $0xb0] sm:$0xf]
      %v276 = vld [vmem:[%s213 + $0xb4] sm:$0xf]
      %v277 = vld [vmem:[%s213 + $0xb8] sm:$0xf]
      %v278 = vld [vmem:[%s213 + $0xbc] sm:$0xf]
      %v279 = vld [vmem:[%s213 + $0xc0] sm:$0xf]
      %v280 = vld [vmem:[%s213 + $0xc4] sm:$0xf]
      %v281 = vld [vmem:[%s213 + $0xc8] sm:$0xf]
      %v282 = vld [vmem:[%s213 + $0xcc] sm:$0xf]
      %v283 = vld [vmem:[%s213 + $0xd0] sm:$0xf]
      %v284 = vld [vmem:[%s213 + $0xd4] sm:$0xf]
      %v285 = vld [vmem:[%s213 + $0xd8] sm:$0xf]
      %v286 = vld [vmem:[%s213 + $0xdc] sm:$0xf]
      %v287 = vld [vmem:[%s213 + $0xe0] sm:$0xf]
      %v288 = vld [vmem:[%s213 + $0xe4] sm:$0xf]
      %v289 = vld [vmem:[%s213 + $0xe8] sm:$0xf]
      %v290 = vld [vmem:[%s213 + $0xec] sm:$0xf]
      %v291 = vld [vmem:[%s213 + $0xf0] sm:$0xf]
      %v292 = vld [vmem:[%s213 + $0xf4] sm:$0xf]
      %v293 = vld [vmem:[%s213 + $0xf8] sm:$0xf]
      %v294 = vld [vmem:[%s213 + $0xfc] sm:$0xf]
      %v295 = vld [vmem:[%s219] sm:$0xf]
      %v296 = vld [vmem:[%s219 + $0x4] sm:$0xf]
      %v297 = vld [vmem:[%s219 + $0x8] sm:$0xf]
      %v298 = vld [vmem:[%s219 + $0xc] sm:$0xf]
      %v299 = vld [vmem:[%s219 + $0x10] sm:$0xf]
      %v300 = vld [vmem:[%s219 + $0x14] sm:$0xf]
      %v301 = vld [vmem:[%s219 + $0x18] sm:$0xf]
      %v302 = vld [vmem:[%s219 + $0x1c] sm:$0xf]
      %v303 = vld [vmem:[%s219 + $0x20] sm:$0xf]
      %v304 = vld [vmem:[%s219 + $0x24] sm:$0xf]
      %v305 = vld [vmem:[%s219 + $0x28] sm:$0xf]
      %v306 = vld [vmem:[%s219 + $0x2c] sm:$0xf]
      %v307 = vld [vmem:[%s219 + $0x30] sm:$0xf]
      %v308 = vld [vmem:[%s219 + $0x34] sm:$0xf]
      %v309 = vld [vmem:[%s219 + $0x38] sm:$0xf]
      %v310 = vld [vmem:[%s219 + $0x3c] sm:$0xf]
      %v311 = vld [vmem:[%s2] sm:$0x1]
      %v313 = vlaneseq
      %v314 = vshrl.u32 %v313, 7
      %v315 = vsub.s32 0, %v314
      %v316 = vrot.slane %v311, %v315
      %v382 = vunpack.c.l.b16 %v231
      %v383 = vunpack.c.l.b16 %v232
      %v384 = vunpack.c.l.b16 %v233
      %v385 = vunpack.c.l.b16 %v234
      %v386 = vunpack.c.l.b16 %v235
      %v387 = vunpack.c.l.b16 %v236
      %v388 = vunpack.c.l.b16 %v237
      %v389 = vunpack.c.l.b16 %v238
      %v390 = vunpack.c.l.b16 %v239
      %v391 = vunpack.c.l.b16 %v240
      %v392 = vunpack.c.l.b16 %v241
      %v393 = vunpack.c.l.b16 %v242
      %v394 = vunpack.c.l.b16 %v243
      %v395 = vunpack.c.l.b16 %v244
      %v396 = vunpack.c.l.b16 %v245
      %v397 = vunpack.c.l.b16 %v246
      %v398 = vunpack.c.l.b16 %v247
      %v399 = vunpack.c.l.b16 %v248
      %v400 = vunpack.c.l.b16 %v249
      %v401 = vunpack.c.l.b16 %v250
      %v402 = vunpack.c.l.b16 %v251
      %v403 = vunpack.c.l.b16 %v252
      %v404 = vunpack.c.l.b16 %v253
      %v405 = vunpack.c.l.b16 %v254
      %v406 = vunpack.c.l.b16 %v255
      %v407 = vunpack.c.l.b16 %v256
      %v408 = vunpack.c.l.b16 %v257
      %v409 = vunpack.c.l.b16 %v258
      %v410 = vunpack.c.l.b16 %v259
      %v411 = vunpack.c.l.b16 %v260
      %v412 = vunpack.c.l.b16 %v261
      %v413 = vunpack.c.l.b16 %v262
      %v414 = vunpack.c.l.b16 %v263
      %v415 = vunpack.c.l.b16 %v264
      %v416 = vunpack.c.l.b16 %v265
      %v417 = vunpack.c.l.b16 %v266
      %v418 = vunpack.c.l.b16 %v267
      %v419 = vunpack.c.l.b16 %v268
      %v420 = vunpack.c.l.b16 %v269
      %v421 = vunpack.c.l.b16 %v270
      %v422 = vunpack.c.l.b16 %v271
      %v423 = vunpack.c.l.b16 %v272
      %v424 = vunpack.c.l.b16 %v273
      %v425 = vunpack.c.l.b16 %v274
      %v426 = vunpack.c.l.b16 %v275
      %v427 = vunpack.c.l.b16 %v276
      %v428 = vunpack.c.l.b16 %v277
      %v429 = vunpack.c.l.b16 %v278
      %v430 = vunpack.c.l.b16 %v279
      %v431 = vunpack.c.l.b16 %v280
      %v432 = vunpack.c.l.b16 %v281
      %v433 = vunpack.c.l.b16 %v282
      %v434 = vunpack.c.l.b16 %v283
      %v435 = vunpack.c.l.b16 %v284
      %v436 = vunpack.c.l.b16 %v285
      %v437 = vunpack.c.l.b16 %v286
      %v438 = vunpack.c.l.b16 %v287
      %v439 = vunpack.c.l.b16 %v288
      %v440 = vunpack.c.l.b16 %v289
      %v441 = vunpack.c.l.b16 %v290
      %v442 = vunpack.c.l.b16 %v291
      %v443 = vunpack.c.l.b16 %v292
      %v444 = vunpack.c.l.b16 %v293
      %v445 = vunpack.c.l.b16 %v294
      %v446 = vpack.c.b16 %v383, %v382
      %v447 = vpack.c.b16 %v385, %v384
      %v448 = vpack.c.b16 %v387, %v386
      %v449 = vpack.c.b16 %v389, %v388
      %v450 = vpack.c.b16 %v391, %v390
      %v451 = vpack.c.b16 %v393, %v392
      %v452 = vpack.c.b16 %v395, %v394
      %v453 = vpack.c.b16 %v397, %v396
      %v454 = vpack.c.b16 %v399, %v398
      %v455 = vpack.c.b16 %v401, %v400
      %v456 = vpack.c.b16 %v403, %v402
      %v457 = vpack.c.b16 %v405, %v404
      %v458 = vpack.c.b16 %v407, %v406
      %v459 = vpack.c.b16 %v409, %v408
      %v460 = vpack.c.b16 %v411, %v410
      %v461 = vpack.c.b16 %v413, %v412
      %v462 = vpack.c.b16 %v415, %v414
      %v463 = vpack.c.b16 %v417, %v416
      %v464 = vpack.c.b16 %v419, %v418
      %v465 = vpack.c.b16 %v421, %v420
      %v466 = vpack.c.b16 %v423, %v422
      %v467 = vpack.c.b16 %v425, %v424
      %v468 = vpack.c.b16 %v427, %v426
      %v469 = vpack.c.b16 %v429, %v428
      %v470 = vpack.c.b16 %v431, %v430
      %v471 = vpack.c.b16 %v433, %v432
      %v472 = vpack.c.b16 %v435, %v434
      %v473 = vpack.c.b16 %v437, %v436
      %v474 = vpack.c.b16 %v439, %v438
      %v475 = vpack.c.b16 %v441, %v440
      %v476 = vpack.c.b16 %v443, %v442
      %v477 = vpack.c.b16 %v445, %v444
      %v526 = vunpack.c.l.b16 %v295
      %v527 = vunpack.c.l.b16 %v296
      %v528 = vunpack.c.l.b16 %v297
      %v529 = vunpack.c.l.b16 %v298
      %v530 = vunpack.c.l.b16 %v299
      %v531 = vunpack.c.l.b16 %v300
      %v532 = vunpack.c.l.b16 %v301
      %v533 = vunpack.c.l.b16 %v302
      %v534 = vunpack.c.l.b16 %v303
      %v535 = vunpack.c.l.b16 %v304
      %v536 = vunpack.c.l.b16 %v305
      %v537 = vunpack.c.l.b16 %v306
      %v538 = vunpack.c.l.b16 %v307
      %v539 = vunpack.c.l.b16 %v308
      %v540 = vunpack.c.l.b16 %v309
      %v541 = vunpack.c.l.b16 %v310
      %v542 = vpack.c.b16 %v527, %v526
      %v543 = vpack.c.b16 %v529, %v528
      %v544 = vpack.c.b16 %v531, %v530
      %v545 = vpack.c.b16 %v533, %v532
      %v546 = vpack.c.b16 %v535, %v534
      %v547 = vpack.c.b16 %v537, %v536
      %v548 = vpack.c.b16 %v539, %v538
      %v549 = vpack.c.b16 %v541, %v540
      %558 = vmatprep.subr.bf16.mxu0 0
      %559 = vmatpush1.bf16.msra.mxu0 %v542
      %560 = vmatprep.subr.bf16.mxu0 0
      %561 = vmatpush1.bf16.msra.mxu0 %v543
      %562 = vmatprep.subr.bf16.mxu0 0
      %563 = vmatpush1.bf16.msra.mxu0 %v544
      %564 = vmatprep.subr.bf16.mxu0 0
      %565 = vmatpush1.bf16.msra.mxu0 %v545
      %566 = vmatprep.subr.bf16.mxu0 0
      %567 = vmatpush1.bf16.msra.mxu0 %v546
      %568 = vmatprep.subr.bf16.mxu0 0
      %569 = vmatpush1.bf16.msra.mxu0 %v547
      %570 = vmatprep.subr.bf16.mxu0 0
      %571 = vmatpush1.bf16.msra.mxu0 %v548
      %572 = vmatprep.subr.bf16.mxu0 0
      %573 = vmatpush1.bf16.msra.mxu0 %v549
      %574 = vmatprep.subr.bf16.mxu0 0
      %575 = vmatpush1.bf16.msra.mxu0 0
      %576 = vmatprep.subr.bf16.mxu0 0
      %577 = vmatpush1.bf16.msra.mxu0 0
      %578 = vmatprep.subr.bf16.mxu0 0
      %579 = vmatpush1.bf16.msra.mxu0 0
      %580 = vmatprep.subr.bf16.mxu0 0
      %581 = vmatpush1.bf16.msra.mxu0 0
      %582 = vmatprep.subr.bf16.mxu0 0
      %583 = vmatpush1.bf16.msra.mxu0 0
      %584 = vmatprep.subr.bf16.mxu0 0
      %585 = vmatpush1.bf16.msra.mxu0 0
      %586 = vmatprep.subr.bf16.mxu0 0
      %587 = vmatpush1.bf16.msra.mxu0 0
      %588 = vmatprep.subr.bf16.mxu0 0
      %589 = vmatpush1.bf16.msra.mxu0 0
      %590 = vmatprep.mubr.bf16.mxu0 0
      %591 = vmatmul.mubr.bf16.gmra.mrb[0].mxu0 %v446
      %v592 = vpop.f32.mrb[0].mxu0
      %v593 = vadd.f32 %v316, %v592
      %v594 = vpop.f32.mrb[0].mxu0
      %v595 = vpop.f32.mrb[0].mxu0
      %v596 = vadd.f32 %v316, %v595
      %v597 = vpop.f32.mrb[0].mxu0
      %598 = vmatprep.mubr.bf16.mxu0 0
      %599 = vmatmul.mubr.bf16.gmra.mrb[0].mxu0 %v447
      %v600 = vpop.f32.mrb[0].mxu0
      %v601 = vadd.f32 %v316, %v600
      %v602 = vpop.f32.mrb[0].mxu0
      %v603 = vpop.f32.mrb[0].mxu0
      %v604 = vadd.f32 %v316, %v603
      %v605 = vpop.f32.mrb[0].mxu0
      %606 = vmatprep.mubr.bf16.mxu0 0
      %607 = vmatmul.mubr.bf16.gmra.mrb[0].mxu0 %v448
      %v608 = vpop.f32.mrb[0].mxu0
      %v609 = vadd.f32 %v316, %v608
      %v610 = vpop.f32.mrb[0].mxu0
      %v611 = vpop.f32.mrb[0].mxu0
      %v612 = vadd.f32 %v316, %v611
      %v613 = vpop.f32.mrb[0].mxu0
      %614 = vmatprep.mubr.bf16.mxu0 0
      %615 = vmatmul.mubr.bf16.gmra.mrb[0].mxu0 %v449
      %v616 = vpop.f32.mrb[0].mxu0
      %v617 = vadd.f32 %v316, %v616
      %v618 = vpop.f32.mrb[0].mxu0
      %v619 = vpop.f32.mrb[0].mxu0
      %v620 = vadd.f32 %v316, %v619
      %v621 = vpop.f32.mrb[0].mxu0
      %622 = vmatprep.mubr.bf16.mxu0 0
      %623 = vmatmul.mubr.bf16.gmra.mrb[0].mxu0 %v450
      %v624 = vpop.f32.mrb[0].mxu0
      %v625 = vadd.f32 %v316, %v624
      %v626 = vpop.f32.mrb[0].mxu0
      %v627 = vpop.f32.mrb[0].mxu0
      %v628 = vadd.f32 %v316, %v627
      %v629 = vpop.f32.mrb[0].mxu0
      %630 = vmatprep.mubr.bf16.mxu0 0
      %631 = vmatmul.mubr.bf16.gmra.mrb[0].mxu0 %v451
      %v632 = vpop.f32.mrb[0].mxu0
      %v633 = vadd.f32 %v316, %v632
      %v634 = vpop.f32.mrb[0].mxu0
      %v635 = vpop.f32.mrb[0].mxu0
      %v636 = vadd.f32 %v316, %v635
      %v637 = vpop.f32.mrb[0].mxu0
      %638 = vmatprep.mubr.bf16.mxu0 0
      %639 = vmatmul.mubr.bf16.gmra.mrb[0].mxu0 %v452
      %v640 = vpop.f32.mrb[0].mxu0
      %v641 = vadd.f32 %v316, %v640
      %v642 = vpop.f32.mrb[0].mxu0
      %v643 = vpop.f32.mrb[0].mxu0
      %v644 = vadd.f32 %v316, %v643
      %v645 = vpop.f32.mrb[0].mxu0
      %646 = vmatprep.mubr.bf16.mxu0 0
      %647 = vmatmul.mubr.bf16.gmra.mrb[0].mxu0 %v453
      %v648 = vpop.f32.mrb[0].mxu0
      %v649 = vadd.f32 %v316, %v648
      %v650 = vpop.f32.mrb[0].mxu0
      %v651 = vpop.f32.mrb[0].mxu0
      %v652 = vadd.f32 %v316, %v651
      %v653 = vpop.f32.mrb[0].mxu0
      %654 = vmatprep.mubr.bf16.mxu0 0
      %655 = vmatmul.mubr.bf16.gmra.mrb[0].mxu0 %v454
      %v656 = vpop.f32.mrb[0].mxu0
      %v657 = vadd.f32 %v316, %v656
      %v658 = vpop.f32.mrb[0].mxu0
      %v659 = vpop.f32.mrb[0].mxu0
      %v660 = vadd.f32 %v316, %v659
      %v661 = vpop.f32.mrb[0].mxu0
      %662 = vmatprep.mubr.bf16.mxu0 0
      %663 = vmatmul.mubr.bf16.gmra.mrb[0].mxu0 %v455
      %v664 = vpop.f32.mrb[0].mxu0
      %v665 = vadd.f32 %v316, %v664
      %v666 = vpop.f32.mrb[0].mxu0
      %v667 = vpop.f32.mrb[0].mxu0
      %v668 = vadd.f32 %v316, %v667
      %v669 = vpop.f32.mrb[0].mxu0
      %670 = vmatprep.mubr.bf16.mxu0 0
      %671 = vmatmul.mubr.bf16.gmra.mrb[0].mxu0 %v456
      %v672 = vpop.f32.mrb[0].mxu0
      %v673 = vadd.f32 %v316, %v672
      %v674 = vpop.f32.mrb[0].mxu0
      %v675 = vpop.f32.mrb[0].mxu0
      %v676 = vadd.f32 %v316, %v675
      %v677 = vpop.f32.mrb[0].mxu0
      %678 = vmatprep.mubr.bf16.mxu0 0
      %679 = vmatmul.mubr.bf16.gmra.mrb[0].mxu0 %v457
      %v680 = vpop.f32.mrb[0].mxu0
      %v681 = vadd.f32 %v316, %v680
      %v682 = vpop.f32.mrb[0].mxu0
      %v683 = vpop.f32.mrb[0].mxu0
      %v684 = vadd.f32 %v316, %v683
      %v685 = vpop.f32.mrb[0].mxu0
      %686 = vmatprep.mubr.bf16.mxu0 0
      %687 = vmatmul.mubr.bf16.gmra.mrb[0].mxu0 %v458
      %v688 = vpop.f32.mrb[0].mxu0
      %v689 = vadd.f32 %v316, %v688
      %v690 = vpop.f32.mrb[0].mxu0
      %v691 = vpop.f32.mrb[0].mxu0
      %v692 = vadd.f32 %v316, %v691
      %v693 = vpop.f32.mrb[0].mxu0
      %694 = vmatprep.mubr.bf16.mxu0 0
      %695 = vmatmul.mubr.bf16.gmra.mrb[0].mxu0 %v459
      %v696 = vpop.f32.mrb[0].mxu0
      %v697 = vadd.f32 %v316, %v696
      %v698 = vpop.f32.mrb[0].mxu0
      %v699 = vpop.f32.mrb[0].mxu0
      %v700 = vadd.f32 %v316, %v699
      %v701 = vpop.f32.mrb[0].mxu0
      %702 = vmatprep.mubr.bf16.mxu0 0
      %703 = vmatmul.mubr.bf16.gmra.mrb[0].mxu0 %v460
      %v704 = vpop.f32.mrb[0].mxu0
      %v705 = vadd.f32 %v316, %v704
      %v706 = vpop.f32.mrb[0].mxu0
      %v707 = vpop.f32.mrb[0].mxu0
      %v708 = vadd.f32 %v316, %v707
      %v709 = vpop.f32.mrb[0].mxu0
      %710 = vmatprep.mubr.bf16.mxu0 0
      %711 = vmatmul.mubr.bf16.gmra.mrb[0].mxu0 %v461
      %v712 = vpop.f32.mrb[0].mxu0
      %v713 = vadd.f32 %v316, %v712
      %v714 = vpop.f32.mrb[0].mxu0
      %v715 = vpop.f32.mrb[0].mxu0
      %v716 = vadd.f32 %v316, %v715
      %v717 = vpop.f32.mrb[0].mxu0
      %718 = vmatprep.mubr.bf16.mxu0 0
      %719 = vmatmul.mubr.bf16.gmra.mrb[0].mxu0 %v462
      %v720 = vpop.f32.mrb[0].mxu0
      %v721 = vadd.f32 %v316, %v720
      %v722 = vpop.f32.mrb[0].mxu0
      %v723 = vpop.f32.mrb[0].mxu0
      %v724 = vadd.f32 %v316, %v723
      %v725 = vpop.f32.mrb[0].mxu0
      %726 = vmatprep.mubr.bf16.mxu0 0
      %727 = vmatmul.mubr.bf16.gmra.mrb[0].mxu0 %v463
      %v728 = vpop.f32.mrb[0].mxu0
      %v729 = vadd.f32 %v316, %v728
      %v730 = vpop.f32.mrb[0].mxu0
      %v731 = vpop.f32.mrb[0].mxu0
      %v732 = vadd.f32 %v316, %v731
      %v733 = vpop.f32.mrb[0].mxu0
      %734 = vmatprep.mubr.bf16.mxu0 0
      %735 = vmatmul.mubr.bf16.gmra.mrb[0].mxu0 %v464
      %v736 = vpop.f32.mrb[0].mxu0
      %v737 = vadd.f32 %v316, %v736
      %v738 = vpop.f32.mrb[0].mxu0
      %v739 = vpop.f32.mrb[0].mxu0
      %v740 = vadd.f32 %v316, %v739
      %v741 = vpop.f32.mrb[0].mxu0
      %742 = vmatprep.mubr.bf16.mxu0 0
      %743 = vmatmul.mubr.bf16.gmra.mrb[0].mxu0 %v465
      %v744 = vpop.f32.mrb[0].mxu0
      %v745 = vadd.f32 %v316, %v744
      %v746 = vpop.f32.mrb[0].mxu0
      %v747 = vpop.f32.mrb[0].mxu0
      %v748 = vadd.f32 %v316, %v747
      %v749 = vpop.f32.mrb[0].mxu0
      %750 = vmatprep.mubr.bf16.mxu0 0
      %751 = vmatmul.mubr.bf16.gmra.mrb[0].mxu0 %v466
      %v752 = vpop.f32.mrb[0].mxu0
      %v753 = vadd.f32 %v316, %v752
      %v754 = vpop.f32.mrb[0].mxu0
      %v755 = vpop.f32.mrb[0].mxu0
      %v756 = vadd.f32 %v316, %v755
      %v757 = vpop.f32.mrb[0].mxu0
      %758 = vmatprep.mubr.bf16.mxu0 0
      %759 = vmatmul.mubr.bf16.gmra.mrb[0].mxu0 %v467
      %v760 = vpop.f32.mrb[0].mxu0
      %v761 = vadd.f32 %v316, %v760
      %v762 = vpop.f32.mrb[0].mxu0
      %v763 = vpop.f32.mrb[0].mxu0
      %v764 = vadd.f32 %v316, %v763
      %v765 = vpop.f32.mrb[0].mxu0
      %766 = vmatprep.mubr.bf16.mxu0 0
      %767 = vmatmul.mubr.bf16.gmra.mrb[0].mxu0 %v468
      %v768 = vpop.f32.mrb[0].mxu0
      %v769 = vadd.f32 %v316, %v768
      %v770 = vpop.f32.mrb[0].mxu0
      %v771 = vpop.f32.mrb[0].mxu0
      %v772 = vadd.f32 %v316, %v771
      %v773 = vpop.f32.mrb[0].mxu0
      %774 = vmatprep.mubr.bf16.mxu0 0
      %775 = vmatmul.mubr.bf16.gmra.mrb[0].mxu0 %v469
      %v776 = vpop.f32.mrb[0].mxu0
      %v777 = vadd.f32 %v316, %v776
      %v778 = vpop.f32.mrb[0].mxu0
      %v779 = vpop.f32.mrb[0].mxu0
      %v780 = vadd.f32 %v316, %v779
      %v781 = vpop.f32.mrb[0].mxu0
      %782 = vmatprep.mubr.bf16.mxu0 0
      %783 = vmatmul.mubr.bf16.gmra.mrb[0].mxu0 %v470
      %v784 = vpop.f32.mrb[0].mxu0
      %v785 = vadd.f32 %v316, %v784
      %v786 = vpop.f32.mrb[0].mxu0
      %v787 = vpop.f32.mrb[0].mxu0
      %v788 = vadd.f32 %v316, %v787
      %v789 = vpop.f32.mrb[0].mxu0
      %790 = vmatprep.mubr.bf16.mxu0 0
      %791 = vmatmul.mubr.bf16.gmra.mrb[0].mxu0 %v471
      %v792 = vpop.f32.mrb[0].mxu0
      %v793 = vadd.f32 %v316, %v792
      %v794 = vpop.f32.mrb[0].mxu0
      %v795 = vpop.f32.mrb[0].mxu0
      %v796 = vadd.f32 %v316, %v795
      %v797 = vpop.f32.mrb[0].mxu0
      %798 = vmatprep.mubr.bf16.mxu0 0
      %799 = vmatmul.mubr.bf16.gmra.mrb[0].mxu0 %v472
      %v800 = vpop.f32.mrb[0].mxu0
      %v801 = vadd.f32 %v316, %v800
      %v802 = vpop.f32.mrb[0].mxu0
      %v803 = vpop.f32.mrb[0].mxu0
      %v804 = vadd.f32 %v316, %v803
      %v805 = vpop.f32.mrb[0].mxu0
      %806 = vmatprep.mubr.bf16.mxu0 0
      %807 = vmatmul.mubr.bf16.gmra.mrb[0].mxu0 %v473
      %v808 = vpop.f32.mrb[0].mxu0
      %v809 = vadd.f32 %v316, %v808
      %v810 = vpop.f32.mrb[0].mxu0
      %v811 = vpop.f32.mrb[0].mxu0
      %v812 = vadd.f32 %v316, %v811
      %v813 = vpop.f32.mrb[0].mxu0
      %814 = vmatprep.mubr.bf16.mxu0 0
      %815 = vmatmul.mubr.bf16.gmra.mrb[0].mxu0 %v474
      %v816 = vpop.f32.mrb[0].mxu0
      %v817 = vadd.f32 %v316, %v816
      %v818 = vpop.f32.mrb[0].mxu0
      %v819 = vpop.f32.mrb[0].mxu0
      %v820 = vadd.f32 %v316, %v819
      %v821 = vpop.f32.mrb[0].mxu0
      %822 = vmatprep.mubr.bf16.mxu0 0
      %823 = vmatmul.mubr.bf16.gmra.mrb[0].mxu0 %v475
      %v824 = vpop.f32.mrb[0].mxu0
      %v825 = vadd.f32 %v316, %v824
      %v826 = vpop.f32.mrb[0].mxu0
      %v827 = vpop.f32.mrb[0].mxu0
      %v828 = vadd.f32 %v316, %v827
      %v829 = vpop.f32.mrb[0].mxu0
      %830 = vmatprep.mubr.bf16.mxu0 0
      %831 = vmatmul.mubr.bf16.gmra.mrb[0].mxu0 %v476
      %v832 = vpop.f32.mrb[0].mxu0
      %v833 = vadd.f32 %v316, %v832
      %v834 = vpop.f32.mrb[0].mxu0
      %v835 = vpop.f32.mrb[0].mxu0
      %v836 = vadd.f32 %v316, %v835
      %v837 = vpop.f32.mrb[0].mxu0
      %838 = vmatprep.mubr.bf16.mxu0 0
      %839 = vmatmul.mubr.bf16.gmra.mrb[0].mxu0 %v477
      %v840 = vpop.f32.mrb[0].mxu0
      %v841 = vadd.f32 %v316, %v840
      %v842 = vpop.f32.mrb[0].mxu0
      %v843 = vpop.f32.mrb[0].mxu0
      %v844 = vadd.f32 %v316, %v843
      %v845 = vpop.f32.mrb[0].mxu0
      %846 = vdwg.mxu0
      %v847 = vtanh.pop %v593
      %v848 = vtanh.pop %v596
      %v849 = vtanh.pop %v601
      %v850 = vtanh.pop %v604
      %v851 = vtanh.pop %v609
      %v852 = vtanh.pop %v612
      %v853 = vtanh.pop %v617
      %v854 = vtanh.pop %v620
      %v855 = vtanh.pop %v625
      %v856 = vtanh.pop %v628
      %v857 = vtanh.pop %v633
      %v858 = vtanh.pop %v636
      %v859 = vtanh.pop %v641
      %v860 = vtanh.pop %v644
      %v861 = vtanh.pop %v649
      %v862 = vtanh.pop %v652
      %v863 = vtanh.pop %v657
      %v864 = vtanh.pop %v660
      %v865 = vtanh.pop %v665
      %v866 = vtanh.pop %v668
      %v867 = vtanh.pop %v673
      %v868 = vtanh.pop %v676
      %v869 = vtanh.pop %v681
      %v870 = vtanh.pop %v684
      %v871 = vtanh.pop %v689
      %v872 = vtanh.pop %v692
      %v873 = vtanh.pop %v697
      %v874 = vtanh.pop %v700
      %v875 = vtanh.pop %v705
      %v876 = vtanh.pop %v708
      %v877 = vtanh.pop %v713
      %v878 = vtanh.pop %v716
      %v879 = vtanh.pop %v721
      %v880 = vtanh.pop %v724
      %v881 = vtanh.pop %v729
      %v882 = vtanh.pop %v732
      %v883 = vtanh.pop %v737
      %v884 = vtanh.pop %v740
      %v885 = vtanh.pop %v745
      %v886 = vtanh.pop %v748
      %v887 = vtanh.pop %v753
      %v888 = vtanh.pop %v756
      %v889 = vtanh.pop %v761
      %v890 = vtanh.pop %v764
      %v891 = vtanh.pop %v769
      %v892 = vtanh.pop %v772
      %v893 = vtanh.pop %v777
      %v894 = vtanh.pop %v780
      %v895 = vtanh.pop %v785
      %v896 = vtanh.pop %v788
      %v897 = vtanh.pop %v793
      %v898 = vtanh.pop %v796
      %v899 = vtanh.pop %v801
      %v900 = vtanh.pop %v804
      %v901 = vtanh.pop %v809
      %v902 = vtanh.pop %v812
      %v903 = vtanh.pop %v817
      %v904 = vtanh.pop %v820
      %v905 = vtanh.pop %v825
      %v906 = vtanh.pop %v828
      %v907 = vtanh.pop %v833
      %v908 = vtanh.pop %v836
      %v909 = vtanh.pop %v841
      %v910 = vtanh.pop %v844
      %911 = vst [vmem:[%s228] sm:$0xff] %v847
      %912 = vst [vmem:[%s228 + $0x8] sm:$0xff] %v848
      %913 = vst [vmem:[%s228 + $0x10] sm:$0xff] %v849
      %914 = vst [vmem:[%s228 + $0x18] sm:$0xff] %v850
      %915 = vst [vmem:[%s228 + $0x20] sm:$0xff] %v851
      %916 = vst [vmem:[%s228 + $0x28] sm:$0xff] %v852
      %917 = vst [vmem:[%s228 + $0x30] sm:$0xff] %v853
      %918 = vst [vmem:[%s228 + $0x38] sm:$0xff] %v854
      %919 = vst [vmem:[%s228 + $0x40] sm:$0xff] %v855
      %920 = vst [vmem:[%s228 + $0x48] sm:$0xff] %v856
      %921 = vst [vmem:[%s228 + $0x50] sm:$0xff] %v857
      %922 = vst [vmem:[%s228 + $0x58] sm:$0xff] %v858
      %923 = vst [vmem:[%s228 + $0x60] sm:$0xff] %v859
      %924 = vst [vmem:[%s228 + $0x68] sm:$0xff] %v860
      %925 = vst [vmem:[%s228 + $0x70] sm:$0xff] %v861
      %926 = vst [vmem:[%s228 + $0x78] sm:$0xff] %v862
      %927 = vst [vmem:[%s228 + $0x80] sm:$0xff] %v863
      %928 = vst [vmem:[%s228 + $0x88] sm:$0xff] %v864
      %929 = vst [vmem:[%s228 + $0x90] sm:$0xff] %v865
      %930 = vst [vmem:[%s228 + $0x98] sm:$0xff] %v866
      %931 = vst [vmem:[%s228 + $0xa0] sm:$0xff] %v867
      %932 = vst [vmem:[%s228 + $0xa8] sm:$0xff] %v868
      %933 = vst [vmem:[%s228 + $0xb0] sm:$0xff] %v869
      %934 = vst [vmem:[%s228 + $0xb8] sm:$0xff] %v870
      %935 = vst [vmem:[%s228 + $0xc0] sm:$0xff] %v871
      %936 = vst [vmem:[%s228 + $0xc8] sm:$0xff] %v872
      %937 = vst [vmem:[%s228 + $0xd0] sm:$0xff] %v873
      %938 = vst [vmem:[%s228 + $0xd8] sm:$0xff] %v874
      %939 = vst [vmem:[%s228 + $0xe0] sm:$0xff] %v875
      %940 = vst [vmem:[%s228 + $0xe8] sm:$0xff] %v876
      %941 = vst [vmem:[%s228 + $0xf0] sm:$0xff] %v877
      %942 = vst [vmem:[%s228 + $0xf8] sm:$0xff] %v878
      %943 = vst [vmem:[%s228 + $0x100] sm:$0xff] %v879
      %944 = vst [vmem:[%s228 + $0x108] sm:$0xff] %v880
      %945 = vst [vmem:[%s228 + $0x110] sm:$0xff] %v881
      %946 = vst [vmem:[%s228 + $0x118] sm:$0xff] %v882
      %947 = vst [vmem:[%s228 + $0x120] sm:$0xff] %v883
      %948 = vst [vmem:[%s228 + $0x128] sm:$0xff] %v884
      %949 = vst [vmem:[%s228 + $0x130] sm:$0xff] %v885
      %950 = vst [vmem:[%s228 + $0x138] sm:$0xff] %v886
      %951 = vst [vmem:[%s228 + $0x140] sm:$0xff] %v887
      %952 = vst [vmem:[%s228 + $0x148] sm:$0xff] %v888
      %953 = vst [vmem:[%s228 + $0x150] sm:$0xff] %v889
      %954 = vst [vmem:[%s228 + $0x158] sm:$0xff] %v890
      %955 = vst [vmem:[%s228 + $0x160] sm:$0xff] %v891
      %956 = vst [vmem:[%s228 + $0x168] sm:$0xff] %v892
      %957 = vst [vmem:[%s228 + $0x170] sm:$0xff] %v893
      %958 = vst [vmem:[%s228 + $0x178] sm:$0xff] %v894
      %959 = vst [vmem:[%s228 + $0x180] sm:$0xff] %v895
      %960 = vst [vmem:[%s228 + $0x188] sm:$0xff] %v896
      %961 = vst [vmem:[%s228 + $0x190] sm:$0xff] %v897
      %962 = vst [vmem:[%s228 + $0x198] sm:$0xff] %v898
      %963 = vst [vmem:[%s228 + $0x1a0] sm:$0xff] %v899
      %964 = vst [vmem:[%s228 + $0x1a8] sm:$0xff] %v900
      %965 = vst [vmem:[%s228 + $0x1b0] sm:$0xff] %v901
      %966 = vst [vmem:[%s228 + $0x1b8] sm:$0xff] %v902
      %967 = vst [vmem:[%s228 + $0x1c0] sm:$0xff] %v903
      %968 = vst [vmem:[%s228 + $0x1c8] sm:$0xff] %v904
      %969 = vst [vmem:[%s228 + $0x1d0] sm:$0xff] %v905
      %970 = vst [vmem:[%s228 + $0x1d8] sm:$0xff] %v906
      %971 = vst [vmem:[%s228 + $0x1e0] sm:$0xff] %v907
      %972 = vst [vmem:[%s228 + $0x1e8] sm:$0xff] %v908
      %973 = vst [vmem:[%s228 + $0x1f0] sm:$0xff] %v909
      %974 = vst [vmem:[%s228 + $0x1f8] sm:$0xff] %v910
      %s975 = smul.u32 64, %s19
      %p976 = scmp.lt.s32.totalorder %s18, 3
      %s977 = scalar_select %p976, %s18, 3
      %p978 = scmp.lt.s32.totalorder %s975, 255
      %s979 = scalar_select %p978, %s975, 255
      %s980 = smul.addr %s977, 256
      %s981 = sadd.s32 %s979, %s980
      %s982 = smul.addr %s981, 8
      %s983 = scalar_lea.vmem %s3, %s982
      // Predicated region
      $region33: #{generator_forward.9} parent=31 // pred_check
        %p984 = pneg %p121
      $region34: #{generator_forward.9} parent=31 // pred_check_branch
        %986 = sbr.rel (%p984) target = $region36
      $region35: #{generator_forward.9} parent=31 // pred_region
        %s987 = smul.u32 64, %s19
      $region36: #{generator_forward.9} parent=31 // pred_fallthru
        _
    $region32: #{generator_forward.9} parent=5 // pred_fallthru
      _
    %p988 = scmp.le.s32.totalorder 2, %s9
    // Predicated region
    $region37: #{generator_forward.9} parent=5 // pred_check
      %p989 = pneg %p988
    $region38: #{generator_forward.9} parent=5 // pred_check_branch
      %991 = sbr.rel (%p989) target = $region40
    $region39: #{generator_forward.9} parent=5 // pred_region
      %s992 = ssub.s32 %s9, 2
      // Predicated region
      $region41: #{generator_forward.9} parent=39 // pred_check
        %p993 = pneg %p127
      $region42: #{generator_forward.9} parent=39 // pred_check_branch
        %995 = sbr.rel (%p993) target = $region44
      $region43: #{generator_forward.9} parent=39 // pred_region
        %s996 = smul.u32 64, %s21
        %p997 = scmp.lt.s32.totalorder %s20, 3
        %s998 = scalar_select %p997, %s20, 3
        %p999 = scmp.lt.s32.totalorder %s996, 255
        %s1000 = scalar_select %p999, %s996, 255
        %s1001 = smul.addr %s998, 256
        %s1002 = sadd.s32 %s1000, %s1001
        %s1003 = smul.addr %s1002, 8
        %s1004 = scalar_lea.vmem %s3, %s1003
      $region44: #{generator_forward.9} parent=39 // pred_fallthru
        _
    $region40: #{generator_forward.9} parent=5 // pred_fallthru
      _
  $region6: #{generator_forward.9} parent=0 // loop_footer
    %s13 = sadd.s32 1, %s9
  $region7: #{generator_forward.9} parent=0 // loop_footer_branch
    %8 = sbr.rel target = $region3
  $region8: #{generator_forward.9} parent=0 // loop_exit
    _

</llo_original>
